<compile_context>
chip_gen: v5e
topology: v5e:2x2
jax: 0.10.0
libtpu: 0.0.40
codegen_flags: <defaults>
</compile_context>

<pallas_src>
import functools

import jax
import jax.numpy as jnp
from jax.experimental import pallas as pl
from jax.experimental.pallas import tpu as pltpu

_LN_EPS = 1e-5  # torch.nn.LayerNorm default eps; gamma=1, beta=0 (module never re-inits)


def _ln(x):
    mu = jnp.mean(x, axis=-1, keepdims=True)
    var = jnp.mean(jnp.square(x - mu), axis=-1, keepdims=True)
    return (x - mu) * jax.lax.rsqrt(var + _LN_EPS)


def _neighbour_sums(h3, c3, kernel_size):
    """sum_{d=1..K} of h/c shifted by +/-d along S, zero-padded at sequence edges.

    Uses pltpu.roll (XLU) + positional masks instead of a dense (B*S,B*S) matmul.
    A rolled iota routes each element by its true source index, so the result is
    independent of the roll direction convention and wrapped rows are zeroed.
    """
    BT, S, H = h3.shape
    pos = jax.lax.broadcasted_iota(jnp.int32, (BT, S, H), 1)
    h_before = jnp.zeros_like(h3)
    h_after = jnp.zeros_like(h3)
    c_before = jnp.zeros_like(c3)
    c_after = jnp.zeros_like(c3)
    for d in range(1, kernel_size + 1):
        if d >= S:
            continue  # module yields all-zero padding for shifts >= S
        for shift in sorted({d % S, (S - d) % S}):
            r_pos = pltpu.roll(pos, shift, axis=1)
            r_h = pltpu.roll(h3, shift, axis=1)
            r_c = pltpu.roll(c3, shift, axis=1)
            is_before = (pos - r_pos) == d   # element sourced from position s - d
            is_after = (r_pos - pos) == d    # element sourced from position s + d
            zero = jnp.zeros_like(r_h)
            h_before = h_before + jnp.where(is_before, r_h, zero)
            h_after = h_after + jnp.where(is_after, r_h, zero)
            c_before = c_before + jnp.where(is_before, r_c, zero)
            c_after = c_after + jnp.where(is_after, r_c, zero)
    return h_before, h_after, c_before, c_after


def _slstm_kernel(
    # inputs
    mask_ref, x_ref,
    wn_ref, bn_ref, we_ref, wet_ref, bet_ref,
    wd_ref, bd_ref, wf_ref, bf_ref,
    # outputs
    h_out_ref, c_out_ref, dh_out_ref, dc_out_ref, mem_out_ref,
    # scratch (persists across grid steps)
    dh_scr, dc_scr, wecat_scr, embt_scr,
    *, BT, S, H, kernel_size, inv_temp,
):
    step = pl.program_id(1)
    bf16 = jnp.bfloat16

    mask = mask_ref[...]                                # (BT, S, 1), 1.0 == padded
    seq_mask = 1.0 - mask
    mask_score = mask * (-1e25)
    # guard max(lengths, 1): only differs from the module on fully-padded rows (NaN there)
    lengths = jnp.maximum(jnp.sum(seq_mask, axis=1), 1.0)   # (BT, 1)
    inv_len = pl.reciprocal(lengths, approx=True)

    # ---- layer 0: initialise carried state + step-invariant projections -----
    @pl.when(step == 0)
    def _():
        filtered = x_ref[...] * seq_mask
        h_out_ref[...] = filtered                       # carried masked hidden state
        c_out_ref[...] = filtered                       # carried masked cell state
        init_dummy = jnp.sum(filtered, axis=1) * inv_len
        dh_scr[...] = init_dummy
        dc_scr[...] = init_dummy
        x_bf = filtered.reshape(BT * S, H).astype(bf16)
        wecat_scr[...] = jnp.dot(x_bf, we_ref[...], preferred_element_type=jnp.float32)
        embt_scr[...] = jnp.tanh(
            jnp.dot(x_bf, wet_ref[...], preferred_element_type=jnp.float32) + bet_ref[...])

    h3 = h_out_ref[...]           # (BT, S, H) masked hidden from previous layer
    c3 = c_out_ref[...]
    dh = dh_scr[...]              # (BT, H) dummy (global) node hidden
    dc = dc_scr[...]

    hb3, ha3, cb3, ca3 = _neighbour_sums(h3, c3, kernel_size)
    hb3 = hb3 * seq_mask
    ha3 = ha3 * seq_mask
    cb3 = cb3 * seq_mask
    ca3 = ca3 * seq_mask

    h_flat = h3.reshape(BT * S, H)
    c_flat = c3.reshape(BT * S, H)
    cb = cb3.reshape(BT * S, H)
    ca = ca3.reshape(BT * S, H)

    # ---- fused norm_gate: [h, before, after] in one dot, dummy part at batch rank ----
    cat = jnp.concatenate([h_flat, hb3.reshape(BT * S, H), ha3.reshape(BT * S, H)],
                          axis=1).astype(bf16)                          # (BT*S, 3H)
    gate = jnp.dot(cat, wn_ref[0:3 * H, :], preferred_element_type=jnp.float32)
    gate_d = jnp.dot(dh.astype(bf16), wn_ref[3 * H:4 * H, :],
                     preferred_element_type=jnp.float32)                # (BT, 8H)
    gate = (gate
            + jnp.broadcast_to(gate_d[:, None, :], (BT, S, 8 * H)).reshape(BT * S, 8 * H)
            + bn_ref[...] + wecat_scr[...])                             # (BT*S, 8H)

    c_fl = gate[:, 0 * H:1 * H]
    c_fr = gate[:, 1 * H:2 * H]
    c_fc = gate[:, 2 * H:3 * H]
    c_fd = gate[:, 3 * H:4 * H]
    c_i = gate[:, 4 * H:5 * H]
    c_e = gate[:, 5 * H:6 * H]
    c_w = gate[:, 6 * H:7 * H]
    c_o = gate[:, 7 * H:8 * H]

    g_fl = _ln(c_fl)
    g_fr = _ln(c_fr)
    g_fc = _ln(c_fc)
    g_fd = jax.nn.sigmoid(_ln(c_fd))
    g_i = jax.nn.sigmoid(_ln(c_i))
    g_e = jax.nn.sigmoid(_ln(c_e))
    g_o = jax.nn.sigmoid(_ln(c_o))
    g_w = jnp.tanh(c_w) + g_e * embt_scr[...]

    # softmax over the three local forget gates
    m3 = jnp.maximum(jnp.maximum(g_fl, g_fr), g_fc)
    e_l = jnp.exp(g_fl - m3)
    e_r = jnp.exp(g_fr - m3)
    e_c = jnp.exp(g_fc - m3)
    inv_d3 = pl.reciprocal(e_l + e_r + e_c, approx=True)
    g_fl = e_l * inv_d3
    g_fr = e_r * inv_d3
    g_fc = e_c * inv_d3

    dummy_c_rep = jnp.broadcast_to(dc[:, None, :], (BT, S, H)).reshape(BT * S, H)
    local_c = cb * g_fl + ca * g_fr + c_flat * g_fc
    lg_c = local_c * (1.0 - g_fd) + dummy_c_rep * g_fd
    c_new = g_w * g_i + lg_c * (1.0 - g_i)
    h_new = _ln(g_o * jnp.tanh(c_new) + h_flat)

    h_new3 = h_new.reshape(BT, S, H)
    c_new3 = c_new.reshape(BT, S, H)
    mem_out_ref[...] = h_new3.reshape(1, BT, S, H)        # all_mem_hidden[step] (unmasked)

    h_m3 = h_new3 * seq_mask
    c_m3 = c_new3 * seq_mask
    h_out_ref[...] = h_m3                                  # carried + final output
    c_out_ref[...] = c_m3

    combined = jnp.sum(h_m3, axis=1) * inv_len             # (BT, H)

    # ---- dummy (global) node gates ----
    dg = (jnp.dot(jnp.concatenate([dh, combined], axis=1).astype(bf16), wd_ref[...],
                  preferred_element_type=jnp.float32)
          + bd_ref[...])                                   # (BT, 2H)
    gated_d = jax.nn.sigmoid(_ln(dg[:, 0:H]))
    gated_o = jax.nn.sigmoid(_ln(dg[:, H:2 * H]))

    gf_word = jnp.dot(h_m3.reshape(BT * S, H).astype(bf16), wf_ref[H:2 * H, :],
                      preferred_element_type=jnp.float32)  # (BT*S, H)
    gf_dummy = jnp.dot(dh.astype(bf16), wf_ref[0:H, :],
                       preferred_element_type=jnp.float32)  # (BT, H)
    gf_v = (gf_word
            + jnp.broadcast_to(gf_dummy[:, None, :], (BT, S, H)).reshape(BT * S, H)
            + bf_ref[...])
    gated_f = jax.nn.sigmoid(_ln(gf_v)).reshape(BT, S, H)

    # softmax over (S word positions + dummy) along the sequence axis
    f_sc = (gated_f + mask_score) * inv_temp               # (BT, S, H)
    d_sc = gated_d[:, None, :] * inv_temp                  # (BT, 1, H)
    m = jnp.maximum(jnp.max(f_sc, axis=1, keepdims=True), d_sc)
    ef = jnp.exp(f_sc - m)
    ed = jnp.exp(d_sc - m)
    inv_den = pl.reciprocal(jnp.sum(ef, axis=1, keepdims=True) + ed, approx=True)
    new_f = ef * inv_den
    new_d = (ed * inv_den)[:, 0, :]

    dc_new = jnp.sum(new_f * c_m3, axis=1) + new_d * dc
    dh_new = gated_o * jnp.tanh(dc_new)

    dh_out_ref[...] = dh_new.reshape(1, BT, 1, H)
    dc_out_ref[...] = dc_new.reshape(1, BT, 1, H)
    dh_scr[...] = dh_new
    dc_scr[...] = dc_new


def slstm_forward_pallas(x, mask, params, *, num_layers, kernel_size, temperature,
                         batch_tile=1):
    B, S, H = x.shape
    BT = batch_tile
    assert B % BT == 0
    nb = B // BT

    x = x.astype(jnp.float32)
    mask3 = mask.astype(jnp.float32).reshape(B, S, 1)

    # bf16 matmul operands (weights); biases stay f32.
    wn = params["wn"].astype(jnp.bfloat16)
    we = params["we"].astype(jnp.bfloat16)
    wet = params["wet"].astype(jnp.bfloat16)
    wd = params["wd"].astype(jnp.bfloat16)
    wf = params["wf"].astype(jnp.bfloat16)
    bn = params["bn"].astype(jnp.float32)
    bet = params["bet"].astype(jnp.float32)
    bd = params["bd"].astype(jnp.float32)
    bf = params["bf"].astype(jnp.float32)

    kernel = functools.partial(_slstm_kernel, BT=BT, S=S, H=H,
                               kernel_size=kernel_size,
                               inv_temp=float(1.0 / temperature))

    def const_spec(shape):
        nd = len(shape)
        return pl.BlockSpec(shape, lambda i, j, _nd=nd: (0,) * _nd)

    in_specs = [
        pl.BlockSpec((BT, S, 1), lambda i, j: (i, 0, 0)),   # mask
        pl.BlockSpec((BT, S, H), lambda i, j: (i, 0, 0)),   # word inputs
        const_spec(wn.shape), const_spec(bn.shape),
        const_spec(we.shape), const_spec(wet.shape), const_spec(bet.shape),
        const_spec(wd.shape), const_spec(bd.shape),
        const_spec(wf.shape), const_spec(bf.shape),
    ]

    out_shape = (
        jax.ShapeDtypeStruct((B, S, H), jnp.float32),               # word_hidden (masked)
        jax.ShapeDtypeStruct((B, S, H), jnp.float32),               # word_cell (masked)
        jax.ShapeDtypeStruct((num_layers, B, 1, H), jnp.float32),   # all_dummy_hidden
        jax.ShapeDtypeStruct((num_layers, B, 1, H), jnp.float32),   # all_dummy_cell
        jax.ShapeDtypeStruct((num_layers, B, S, H), jnp.float32),   # all_mem_hidden
    )
    out_specs = [
        pl.BlockSpec((BT, S, H), lambda i, j: (i, 0, 0)),           # resident across layers
        pl.BlockSpec((BT, S, H), lambda i, j: (i, 0, 0)),
        pl.BlockSpec((1, BT, 1, H), lambda i, j: (j, i, 0, 0)),
        pl.BlockSpec((1, BT, 1, H), lambda i, j: (j, i, 0, 0)),
        pl.BlockSpec((1, BT, S, H), lambda i, j: (j, i, 0, 0)),
    ]
    scratch_shapes = [
        pltpu.VMEM((BT, H), jnp.float32),           # dummy hidden
        pltpu.VMEM((BT, H), jnp.float32),           # dummy cell
        pltpu.VMEM((BT * S, 8 * H), jnp.float32),   # step-invariant emb_gate_linear output
        pltpu.VMEM((BT * S, H), jnp.float32),       # step-invariant tanh(emb_trans) output
    ]

    outs = pl.pallas_call(
        kernel,
        out_shape=out_shape,
        grid_spec=pltpu.PrefetchScalarGridSpec(
            num_scalar_prefetch=0,
            grid=(nb, num_layers),
            in_specs=in_specs,
            out_specs=out_specs,
            scratch_shapes=scratch_shapes,
        ),
        compiler_params=pltpu.CompilerParams(
            dimension_semantics=("parallel", "arbitrary"),
            vmem_limit_bytes=48 * 1024 * 1024,
        ),
    )(mask3, x, wn, bn, we, wet, bet, wd, bd, wf, bf)

    h_out, c_out, dh_out, dc_out, mem_out = outs
    return h_out, c_out, dh_out[:, :, 0, :], dc_out[:, :, 0, :], mem_out


# ----------------------------- pure-JAX f32 reference -----------------------------
def slstm_forward_ref(x, mask, params, *, num_layers, kernel_size, temperature):
    B, S, H = x.shape
    seq_mask = (1.0 - mask)[:, :, None]
    lengths = jnp.sum(seq_mask, axis=1)
    mask_score = (-mask * 1e25)[:, :, None]
    filtered = x * seq_mask
    x_flat = filtered.reshape(-1, H)
    we_cat = x_flat @ params["we"]
    emb_t = jnp.tanh(x_flat @ params["wet"] + params["bet"])
    h, c = filtered, filtered
    dh = jnp.sum(filtered, axis=1) / lengths
    dc = jnp.sum(filtered, axis=1) / lengths
    mem_buf, dh_buf, dc_buf = [], [], []

    def shifted_sum(v, before):
        out = jnp.zeros_like(v)
        for d in range(1, kernel_size + 1):
            pad = jnp.zeros((B, d, H), v.dtype)
            sh = (jnp.concatenate([pad, v[:, :S - d, :]], axis=1) if before
                  else jnp.concatenate([v[:, d:, :], pad], axis=1))
            out = out + sh * seq_mask
        return out.reshape(-1, H)

    for _ in range(num_layers):
        h_before, h_after = shifted_sum(h, True), shifted_sum(h, False)
        c_before, c_after = shifted_sum(c, True), shifted_sum(c, False)
        h_flat, c_flat = h.reshape(-1, H), c.reshape(-1, H)
        dummy_rep = jnp.repeat(dh[:, None, :], S, axis=1).reshape(-1, H)
        dummy_c_rep = jnp.repeat(dc[:, None, :], S, axis=1).reshape(-1, H)
        gate = (jnp.concatenate([h_flat, h_before, h_after, dummy_rep], axis=1) @ params["wn"]
                + params["bn"] + we_cat)
        chs = [gate[:, k * H:(k + 1) * H] for k in range(8)]
        c_fl, c_fr, c_fc, c_fd, c_i, c_e, c_w, c_o = chs
        g_fl, g_fr, g_fc = _ln(c_fl), _ln(c_fr), _ln(c_fc)
        g_fd = jax.nn.sigmoid(_ln(c_fd))
        g_i = jax.nn.sigmoid(_ln(c_i))
        g_w = jnp.tanh(c_w)
        g_e = jax.nn.sigmoid(_ln(c_e))
        g_o = jax.nn.sigmoid(_ln(c_o))
        g_w = g_w + g_e * emb_t
        sm = jax.nn.softmax(jnp.stack([g_fl, g_fr, g_fc], axis=1), axis=1)
        g_fl, g_fr, g_fc = sm[:, 0], sm[:, 1], sm[:, 2]
        local_c = c_before * g_fl + c_after * g_fr + c_flat * g_fc
        lg_c = local_c * (1.0 - g_fd) + dummy_c_rep * g_fd
        c_new = g_w * g_i + lg_c * (1.0 - g_i)
        h_new = _ln(g_o * jnp.tanh(c_new) + h_flat)
        h3, c3 = h_new.reshape(B, S, H), c_new.reshape(B, S, H)
        mem_buf.append(h3)
        h, c = h3 * seq_mask, c3 * seq_mask
        combined = jnp.sum(h, axis=1) / lengths
        dg = jnp.concatenate([dh, combined], axis=1) @ params["wd"] + params["bd"]
        gated_d = jax.nn.sigmoid(_ln(dg[:, :H]))
        gated_o = jax.nn.sigmoid(_ln(dg[:, H:]))
        gf_v = jnp.concatenate([dummy_rep, h.reshape(-1, H)], axis=1) @ params["wf"] + params["bf"]
        gated_f = jax.nn.sigmoid(_ln(gf_v)).reshape(B, S, H)
        scores = jnp.concatenate([gated_f + mask_score, gated_d[:, None, :]], axis=1) / temperature
        sm2 = jax.nn.softmax(scores, axis=1)
        dc = jnp.sum(sm2[:, :S] * c, axis=1) + sm2[:, S] * dc
        dh = gated_o * jnp.tanh(dc)
        dh_buf.append(dh)
        dc_buf.append(dc)
    return h, c, jnp.stack(dh_buf), jnp.stack(dc_buf), jnp.stack(mem_buf)


def init_params(key, H):
    std = 0.1
    ks = jax.random.split(key, 9)
    return {
        "wn": std * jax.random.normal(ks[0], (4 * H, 8 * H), jnp.float32),   # norm_gate.weight.t()
        "bn": std * jax.random.normal(ks[1], (1, 8 * H), jnp.float32),       # norm_gate.bias
        "we": std * jax.random.normal(ks[2], (H, 8 * H), jnp.float32),       # emb_gate_linear.weight.t()
        "wet": std * jax.random.normal(ks[3], (H, H), jnp.float32),          # emb_trans.weight.t()
        "bet": std * jax.random.normal(ks[4], (1, H), jnp.float32),          # emb_trans.bias
        "wd": std * jax.random.normal(ks[5], (2 * H, 2 * H), jnp.float32),   # dummy_gate.weight.t()
        "bd": std * jax.random.normal(ks[6], (1, 2 * H), jnp.float32),       # dummy_gate.bias
        "wf": std * jax.random.normal(ks[7], (2 * H, H), jnp.float32),       # dummy_fgate.weight.t()
        "bf": std * jax.random.normal(ks[8], (1, H), jnp.float32),           # dummy_fgate.bias
    }


if __name__ == "__main__":
    B, S, H = 2, 8, 128          # batch, src_len, encoder_embed_dim
    kernel_size = 2
    num_layers = 3               # num_steps
    temperature = 2.0

    key = jax.random.PRNGKey(0)
    kx, kp = jax.random.split(key)
    x = jax.random.normal(kx, (B, S, H), jnp.float32)
    mask = jnp.zeros((B, S), jnp.float32).at[1, 6:].set(1.0)   # last 2 positions of batch 1 padded
    params = init_params(kp, H)

    # TODO(synk): dropout (eval no-op), merge_layer MultiheadAttention branch and
    # ffoncell FFN branch are disabled (args.* = False) and not implemented in-kernel.
    outs = slstm_forward_pallas(x, mask, params, num_layers=num_layers,
                                kernel_size=kernel_size, temperature=temperature,
                                batch_tile=1)
    outs = jax.block_until_ready(outs)

    refs = slstm_forward_ref(x, mask, params, num_layers=num_layers,
                             kernel_size=kernel_size, temperature=temperature)

    # Kernel uses bf16 MXU operands (f32 accumulation) and EUP approx reciprocals,
    # so compare against the f32 reference with a mixed abs/rel tolerance.
    names = ["word_hidden", "word_cell", "all_dummy_hidden", "all_dummy_cell", "all_mem_hidden"]
    for n, o, r in zip(names, outs, refs):
        assert o.shape == r.shape, (n, o.shape, r.shape)
        err = jnp.abs(o - r)
        ok = bool(jnp.all(err <= 6e-2 + 2e-2 * jnp.abs(r)))
        assert ok, f"{n} max abs err {float(jnp.max(err))}"
    print("KERNEL_OK")
</pallas_src>

<mosaic_0001>
module attributes {stable_mosaic.version = 11 : i64} {
  func.func @_slstm_kernel(%arg0: i32, %arg1: i32, %arg2: memref<1x8x1xf32, #tpu.memory_space<vmem>>, %arg3: memref<1x8x128xf32, #tpu.memory_space<vmem>>, %arg4: memref<512x1024xbf16, #tpu.memory_space<vmem>>, %arg5: memref<1x1024xf32, #tpu.memory_space<vmem>>, %arg6: memref<128x1024xbf16, #tpu.memory_space<vmem>>, %arg7: memref<128x128xbf16, #tpu.memory_space<vmem>>, %arg8: memref<1x128xf32, #tpu.memory_space<vmem>>, %arg9: memref<256x256xbf16, #tpu.memory_space<vmem>>, %arg10: memref<1x256xf32, #tpu.memory_space<vmem>>, %arg11: memref<256x128xbf16, #tpu.memory_space<vmem>>, %arg12: memref<1x128xf32, #tpu.memory_space<vmem>>, %arg13: memref<1x8x128xf32, #tpu.memory_space<vmem>>, %arg14: memref<1x8x128xf32, #tpu.memory_space<vmem>>, %arg15: memref<1x1x1x128xf32, #tpu.memory_space<vmem>>, %arg16: memref<1x1x1x128xf32, #tpu.memory_space<vmem>>, %arg17: memref<1x1x8x128xf32, #tpu.memory_space<vmem>>, %arg18: memref<1x128xf32, #tpu.memory_space<vmem>>, %arg19: memref<1x128xf32, #tpu.memory_space<vmem>>, %arg20: memref<8x1024xf32, #tpu.memory_space<vmem>>, %arg21: memref<8x128xf32, #tpu.memory_space<vmem>>) attributes {dimension_semantics = [#tpu.dimension_semantics<parallel>, #tpu.dimension_semantics<arbitrary>], iteration_bounds = array<i64: 2, 3>, scalar_prefetch = 0 : i64, scratch_operands = 4 : i64, tpu.core_type = #tpu.core_type<tc>, window_params = [{transform_indices = @transform_0, window_bounds = array<i64: 1, 8, 1>}, {transform_indices = @transform_1, window_bounds = array<i64: 1, 8, 128>}, {pipeline_mode = #tpu.pipeline_mode<synchronous>, transform_indices = @transform_2, window_bounds = array<i64: 512, 1024>}, {pipeline_mode = #tpu.pipeline_mode<synchronous>, transform_indices = @transform_3, window_bounds = array<i64: 1, 1024>}, {pipeline_mode = #tpu.pipeline_mode<synchronous>, transform_indices = @transform_4, window_bounds = array<i64: 128, 1024>}, {pipeline_mode = #tpu.pipeline_mode<synchronous>, transform_indices = @transform_5, window_bounds = array<i64: 128, 128>}, {pipeline_mode = #tpu.pipeline_mode<synchronous>, transform_indices = @transform_6, window_bounds = array<i64: 1, 128>}, {pipeline_mode = #tpu.pipeline_mode<synchronous>, transform_indices = @transform_7, window_bounds = array<i64: 256, 256>}, {pipeline_mode = #tpu.pipeline_mode<synchronous>, transform_indices = @transform_8, window_bounds = array<i64: 1, 256>}, {pipeline_mode = #tpu.pipeline_mode<synchronous>, transform_indices = @transform_9, window_bounds = array<i64: 256, 128>}, {pipeline_mode = #tpu.pipeline_mode<synchronous>, transform_indices = @transform_10, window_bounds = array<i64: 1, 128>}, {transform_indices = @transform_11, window_bounds = array<i64: 1, 8, 128>}, {transform_indices = @transform_12, window_bounds = array<i64: 1, 8, 128>}, {transform_indices = @transform_13, window_bounds = array<i64: 1, 1, 1, 128>}, {transform_indices = @transform_14, window_bounds = array<i64: 1, 1, 1, 128>}, {transform_indices = @transform_15, window_bounds = array<i64: 1, 1, 8, 128>}]} {
    %c0 = arith.constant 0 : index
    %c0_0 = arith.constant 0 : index
    %c0_1 = arith.constant 0 : index
    %0 = vector.load %arg2[%c0, %c0_0, %c0_1] : memref<1x8x1xf32, #tpu.memory_space<vmem>>, vector<1x8x1xf32>
    %cst = arith.constant 1.000000e+00 : f32
    %1 = vector.broadcast %cst : f32 to vector<1x8x1xf32>
    %2 = arith.subf %1, %0 : vector<1x8x1xf32>
    %cst_2 = arith.constant -9.99999956E+24 : f32
    %3 = vector.broadcast %cst_2 : f32 to vector<1x8x1xf32>
    %4 = arith.mulf %0, %3 : vector<1x8x1xf32>
    %cst_3 = arith.constant dense<0.000000e+00> : vector<1x1xf32>
    %5 = vector.multi_reduction <add>, %2, %cst_3 [1] : vector<1x8x1xf32> to vector<1x1xf32>
    %cst_4 = arith.constant 1.000000e+00 : f32
    %6 = vector.broadcast %cst_4 : f32 to vector<1x1xf32>
    %7 = arith.maximumf %5, %6 : vector<1x1xf32>
    %8 = tpu.reciprocal %7 {approx = true} : vector<1x1xf32> -> vector<1x1xf32>
    %c0_i32 = arith.constant 0 : i32
    %9 = arith.cmpi eq, %arg1, %c0_i32 : i32
    %10 = arith.extui %9 : i1 to i32
    %c0_i32_5 = arith.constant 0 : i32
    %11 = arith.cmpi ne, %10, %c0_i32_5 : i32
    scf.if %11 {
      %c0_155 = arith.constant 0 : index
      %c0_156 = arith.constant 0 : index
      %c0_157 = arith.constant 0 : index
      %477 = vector.load %arg3[%c0_155, %c0_156, %c0_157] : memref<1x8x128xf32, #tpu.memory_space<vmem>>, vector<1x8x128xf32>
      %478 = vector.broadcast %2 : vector<1x8x1xf32> to vector<1x8x128xf32>
      %479 = arith.mulf %477, %478 : vector<1x8x128xf32>
      %c0_158 = arith.constant 0 : index
      %c0_159 = arith.constant 0 : index
      %c0_160 = arith.constant 0 : index
      %480 = vector.load %arg13[%c0_158, %c0_159, %c0_160] : memref<1x8x128xf32, #tpu.memory_space<vmem>>, vector<1x8x128xf32>
      tpu.vector_store %arg13[%c0_158, %c0_159, %c0_160], %479 {strides = array<i32>} : memref<1x8x128xf32, #tpu.memory_space<vmem>>, vector<1x8x128xf32>,
      %c0_161 = arith.constant 0 : index
      %c0_162 = arith.constant 0 : index
      %c0_163 = arith.constant 0 : index
      %481 = vector.load %arg14[%c0_161, %c0_162, %c0_163] : memref<1x8x128xf32, #tpu.memory_space<vmem>>, vector<1x8x128xf32>
      tpu.vector_store %arg14[%c0_161, %c0_162, %c0_163], %479 {strides = array<i32>} : memref<1x8x128xf32, #tpu.memory_space<vmem>>, vector<1x8x128xf32>,
      %cst_164 = arith.constant dense<0.000000e+00> : vector<1x128xf32>
      %482 = vector.multi_reduction <add>, %479, %cst_164 [1] : vector<1x8x128xf32> to vector<1x128xf32>
      %483 = vector.broadcast %8 : vector<1x1xf32> to vector<1x128xf32>
      %484 = arith.mulf %482, %483 : vector<1x128xf32>
      %c0_165 = arith.constant 0 : index
      %c0_166 = arith.constant 0 : index
      %485 = vector.load %arg18[%c0_165, %c0_166] : memref<1x128xf32, #tpu.memory_space<vmem>>, vector<1x128xf32>
      tpu.vector_store %arg18[%c0_165, %c0_166], %484 {strides = array<i32>} : memref<1x128xf32, #tpu.memory_space<vmem>>, vector<1x128xf32>,
      %c0_167 = arith.constant 0 : index
      %c0_168 = arith.constant 0 : index
      %486 = vector.load %arg19[%c0_167, %c0_168] : memref<1x128xf32, #tpu.memory_space<vmem>>, vector<1x128xf32>
      tpu.vector_store %arg19[%c0_167, %c0_168], %484 {strides = array<i32>} : memref<1x128xf32, #tpu.memory_space<vmem>>, vector<1x128xf32>,
      %487 = vector.shape_cast %479 : vector<1x8x128xf32> to vector<8x128xf32>
      %488 = arith.truncf %487 : vector<8x128xf32> to vector<8x128xbf16>
      %c0_169 = arith.constant 0 : index
      %c0_170 = arith.constant 0 : index
      %489 = vector.load %arg6[%c0_169, %c0_170] : memref<128x1024xbf16, #tpu.memory_space<vmem>>, vector<128x1024xbf16>
      %cst_171 = arith.constant dense<0.000000e+00> : vector<8x1024xf32>
      %490 = tpu.matmul %488, %489, %cst_171 {dimension_numbers = #tpu.dot_dimension_numbers<[1], [0], [0], [1], [0, 0, 1, 1], [], []>} : vector<8x128xbf16>, vector<128x1024xbf16>, vector<8x1024xf32> -> vector<8x1024xf32>
      %c0_172 = arith.constant 0 : index
      %c0_173 = arith.constant 0 : index
      %491 = vector.load %arg20[%c0_172, %c0_173] : memref<8x1024xf32, #tpu.memory_space<vmem>>, vector<8x1024xf32>
      tpu.vector_store %arg20[%c0_172, %c0_173], %490 {strides = array<i32>} : memref<8x1024xf32, #tpu.memory_space<vmem>>, vector<8x1024xf32>,
      %c0_174 = arith.constant 0 : index
      %c0_175 = arith.constant 0 : index
      %492 = vector.load %arg7[%c0_174, %c0_175] : memref<128x128xbf16, #tpu.memory_space<vmem>>, vector<128x128xbf16>
      %cst_176 = arith.constant dense<0.000000e+00> : vector<8x128xf32>
      %493 = tpu.matmul %488, %492, %cst_176 {dimension_numbers = #tpu.dot_dimension_numbers<[1], [0], [0], [1], [0, 0, 1, 1], [], []>} : vector<8x128xbf16>, vector<128x128xbf16>, vector<8x128xf32> -> vector<8x128xf32>
      %c0_177 = arith.constant 0 : index
      %c0_178 = arith.constant 0 : index
      %494 = vector.load %arg8[%c0_177, %c0_178] : memref<1x128xf32, #tpu.memory_space<vmem>>, vector<1x128xf32>
      %495 = vector.broadcast %494 : vector<1x128xf32> to vector<8x128xf32>
      %496 = arith.addf %493, %495 : vector<8x128xf32>
      %497 = math.tanh %496 : vector<8x128xf32>
      %c0_179 = arith.constant 0 : index
      %c0_180 = arith.constant 0 : index
      %498 = vector.load %arg21[%c0_179, %c0_180] : memref<8x128xf32, #tpu.memory_space<vmem>>, vector<8x128xf32>
      tpu.vector_store %arg21[%c0_179, %c0_180], %497 {strides = array<i32>} : memref<8x128xf32, #tpu.memory_space<vmem>>, vector<8x128xf32>,
    } else {
    }
    %c0_6 = arith.constant 0 : index
    %c0_7 = arith.constant 0 : index
    %c0_8 = arith.constant 0 : index
    %12 = vector.load %arg13[%c0_6, %c0_7, %c0_8] : memref<1x8x128xf32, #tpu.memory_space<vmem>>, vector<1x8x128xf32>
    %c0_9 = arith.constant 0 : index
    %c0_10 = arith.constant 0 : index
    %c0_11 = arith.constant 0 : index
    %13 = vector.load %arg14[%c0_9, %c0_10, %c0_11] : memref<1x8x128xf32, #tpu.memory_space<vmem>>, vector<1x8x128xf32>
    %c0_12 = arith.constant 0 : index
    %c0_13 = arith.constant 0 : index
    %14 = vector.load %arg18[%c0_12, %c0_13] : memref<1x128xf32, #tpu.memory_space<vmem>>, vector<1x128xf32>
    %c0_14 = arith.constant 0 : index
    %c0_15 = arith.constant 0 : index
    %15 = vector.load %arg19[%c0_14, %c0_15] : memref<1x128xf32, #tpu.memory_space<vmem>>, vector<1x128xf32>
    %16 = tpu.iota {dimensions = array<i32: 1>} : vector<1x8x128xi32>
    %cst_16 = arith.constant 0.000000e+00 : f32
    %17 = vector.broadcast %cst_16 : f32 to vector<1x8x128xf32>
    %cst_17 = arith.constant 0.000000e+00 : f32
    %18 = vector.broadcast %cst_17 : f32 to vector<1x8x128xf32>
    %cst_18 = arith.constant 0.000000e+00 : f32
    %19 = vector.broadcast %cst_18 : f32 to vector<1x8x128xf32>
    %cst_19 = arith.constant 0.000000e+00 : f32
    %20 = vector.broadcast %cst_19 : f32 to vector<1x8x128xf32>
    %c1_i32 = arith.constant 1 : i32
    %21 = tpu.dynamic_rotate %16 by %c1_i32 dim 1 : vector<1x8x128xi32>, i32 -> vector<1x8x128xi32>
    %c1_i32_20 = arith.constant 1 : i32
    %22 = tpu.dynamic_rotate %12 by %c1_i32_20 dim 1 : vector<1x8x128xf32>, i32 -> vector<1x8x128xf32>
    %c1_i32_21 = arith.constant 1 : i32
    %23 = tpu.dynamic_rotate %13 by %c1_i32_21 dim 1 : vector<1x8x128xf32>, i32 -> vector<1x8x128xf32>
    %24 = arith.subi %16, %21 : vector<1x8x128xi32>
    %c1_i32_22 = arith.constant 1 : i32
    %25 = vector.broadcast %c1_i32_22 : i32 to vector<1x8x128xi32>
    %26 = arith.cmpi eq, %24, %25 : vector<1x8x128xi32>
    %27 = arith.subi %21, %16 : vector<1x8x128xi32>
    %c1_i32_23 = arith.constant 1 : i32
    %28 = vector.broadcast %c1_i32_23 : i32 to vector<1x8x128xi32>
    %29 = arith.cmpi eq, %27, %28 : vector<1x8x128xi32>
    %cst_24 = arith.constant 0.000000e+00 : f32
    %30 = vector.broadcast %cst_24 : f32 to vector<1x8x128xf32>
    %31 = arith.select %26, %22, %30 : vector<1x8x128xi1>, vector<1x8x128xf32>
    %32 = arith.addf %17, %31 : vector<1x8x128xf32>
    %33 = arith.select %29, %22, %30 : vector<1x8x128xi1>, vector<1x8x128xf32>
    %34 = arith.addf %18, %33 : vector<1x8x128xf32>
    %35 = arith.select %26, %23, %30 : vector<1x8x128xi1>, vector<1x8x128xf32>
    %36 = arith.addf %19, %35 : vector<1x8x128xf32>
    %37 = arith.select %29, %23, %30 : vector<1x8x128xi1>, vector<1x8x128xf32>
    %38 = arith.addf %20, %37 : vector<1x8x128xf32>
    %c7_i32 = arith.constant 7 : i32
    %39 = tpu.dynamic_rotate %16 by %c7_i32 dim 1 : vector<1x8x128xi32>, i32 -> vector<1x8x128xi32>
    %c7_i32_25 = arith.constant 7 : i32
    %40 = tpu.dynamic_rotate %12 by %c7_i32_25 dim 1 : vector<1x8x128xf32>, i32 -> vector<1x8x128xf32>
    %c7_i32_26 = arith.constant 7 : i32
    %41 = tpu.dynamic_rotate %13 by %c7_i32_26 dim 1 : vector<1x8x128xf32>, i32 -> vector<1x8x128xf32>
    %42 = arith.subi %16, %39 : vector<1x8x128xi32>
    %c1_i32_27 = arith.constant 1 : i32
    %43 = vector.broadcast %c1_i32_27 : i32 to vector<1x8x128xi32>
    %44 = arith.cmpi eq, %42, %43 : vector<1x8x128xi32>
    %45 = arith.subi %39, %16 : vector<1x8x128xi32>
    %c1_i32_28 = arith.constant 1 : i32
    %46 = vector.broadcast %c1_i32_28 : i32 to vector<1x8x128xi32>
    %47 = arith.cmpi eq, %45, %46 : vector<1x8x128xi32>
    %cst_29 = arith.constant 0.000000e+00 : f32
    %48 = vector.broadcast %cst_29 : f32 to vector<1x8x128xf32>
    %49 = arith.select %44, %40, %48 : vector<1x8x128xi1>, vector<1x8x128xf32>
    %50 = arith.addf %32, %49 : vector<1x8x128xf32>
    %51 = arith.select %47, %40, %48 : vector<1x8x128xi1>, vector<1x8x128xf32>
    %52 = arith.addf %34, %51 : vector<1x8x128xf32>
    %53 = arith.select %44, %41, %48 : vector<1x8x128xi1>, vector<1x8x128xf32>
    %54 = arith.addf %36, %53 : vector<1x8x128xf32>
    %55 = arith.select %47, %41, %48 : vector<1x8x128xi1>, vector<1x8x128xf32>
    %56 = arith.addf %38, %55 : vector<1x8x128xf32>
    %c2_i32 = arith.constant 2 : i32
    %57 = tpu.dynamic_rotate %16 by %c2_i32 dim 1 : vector<1x8x128xi32>, i32 -> vector<1x8x128xi32>
    %c2_i32_30 = arith.constant 2 : i32
    %58 = tpu.dynamic_rotate %12 by %c2_i32_30 dim 1 : vector<1x8x128xf32>, i32 -> vector<1x8x128xf32>
    %c2_i32_31 = arith.constant 2 : i32
    %59 = tpu.dynamic_rotate %13 by %c2_i32_31 dim 1 : vector<1x8x128xf32>, i32 -> vector<1x8x128xf32>
    %60 = arith.subi %16, %57 : vector<1x8x128xi32>
    %c2_i32_32 = arith.constant 2 : i32
    %61 = vector.broadcast %c2_i32_32 : i32 to vector<1x8x128xi32>
    %62 = arith.cmpi eq, %60, %61 : vector<1x8x128xi32>
    %63 = arith.subi %57, %16 : vector<1x8x128xi32>
    %c2_i32_33 = arith.constant 2 : i32
    %64 = vector.broadcast %c2_i32_33 : i32 to vector<1x8x128xi32>
    %65 = arith.cmpi eq, %63, %64 : vector<1x8x128xi32>
    %cst_34 = arith.constant 0.000000e+00 : f32
    %66 = vector.broadcast %cst_34 : f32 to vector<1x8x128xf32>
    %67 = arith.select %62, %58, %66 : vector<1x8x128xi1>, vector<1x8x128xf32>
    %68 = arith.addf %50, %67 : vector<1x8x128xf32>
    %69 = arith.select %65, %58, %66 : vector<1x8x128xi1>, vector<1x8x128xf32>
    %70 = arith.addf %52, %69 : vector<1x8x128xf32>
    %71 = arith.select %62, %59, %66 : vector<1x8x128xi1>, vector<1x8x128xf32>
    %72 = arith.addf %54, %71 : vector<1x8x128xf32>
    %73 = arith.select %65, %59, %66 : vector<1x8x128xi1>, vector<1x8x128xf32>
    %74 = arith.addf %56, %73 : vector<1x8x128xf32>
    %c6_i32 = arith.constant 6 : i32
    %75 = tpu.dynamic_rotate %16 by %c6_i32 dim 1 : vector<1x8x128xi32>, i32 -> vector<1x8x128xi32>
    %c6_i32_35 = arith.constant 6 : i32
    %76 = tpu.dynamic_rotate %12 by %c6_i32_35 dim 1 : vector<1x8x128xf32>, i32 -> vector<1x8x128xf32>
    %c6_i32_36 = arith.constant 6 : i32
    %77 = tpu.dynamic_rotate %13 by %c6_i32_36 dim 1 : vector<1x8x128xf32>, i32 -> vector<1x8x128xf32>
    %78 = arith.subi %16, %75 : vector<1x8x128xi32>
    %c2_i32_37 = arith.constant 2 : i32
    %79 = vector.broadcast %c2_i32_37 : i32 to vector<1x8x128xi32>
    %80 = arith.cmpi eq, %78, %79 : vector<1x8x128xi32>
    %81 = arith.subi %75, %16 : vector<1x8x128xi32>
    %c2_i32_38 = arith.constant 2 : i32
    %82 = vector.broadcast %c2_i32_38 : i32 to vector<1x8x128xi32>
    %83 = arith.cmpi eq, %81, %82 : vector<1x8x128xi32>
    %cst_39 = arith.constant 0.000000e+00 : f32
    %84 = vector.broadcast %cst_39 : f32 to vector<1x8x128xf32>
    %85 = arith.select %80, %76, %84 : vector<1x8x128xi1>, vector<1x8x128xf32>
    %86 = arith.addf %68, %85 : vector<1x8x128xf32>
    %87 = arith.select %83, %76, %84 : vector<1x8x128xi1>, vector<1x8x128xf32>
    %88 = arith.addf %70, %87 : vector<1x8x128xf32>
    %89 = arith.select %80, %77, %84 : vector<1x8x128xi1>, vector<1x8x128xf32>
    %90 = arith.addf %72, %89 : vector<1x8x128xf32>
    %91 = arith.select %83, %77, %84 : vector<1x8x128xi1>, vector<1x8x128xf32>
    %92 = arith.addf %74, %91 : vector<1x8x128xf32>
    %93 = vector.broadcast %2 : vector<1x8x1xf32> to vector<1x8x128xf32>
    %94 = arith.mulf %86, %93 : vector<1x8x128xf32>
    %95 = vector.broadcast %2 : vector<1x8x1xf32> to vector<1x8x128xf32>
    %96 = arith.mulf %88, %95 : vector<1x8x128xf32>
    %97 = vector.broadcast %2 : vector<1x8x1xf32> to vector<1x8x128xf32>
    %98 = arith.mulf %90, %97 : vector<1x8x128xf32>
    %99 = vector.broadcast %2 : vector<1x8x1xf32> to vector<1x8x128xf32>
    %100 = arith.mulf %92, %99 : vector<1x8x128xf32>
    %101 = vector.shape_cast %12 : vector<1x8x128xf32> to vector<8x128xf32>
    %102 = vector.shape_cast %13 : vector<1x8x128xf32> to vector<8x128xf32>
    %103 = vector.shape_cast %98 : vector<1x8x128xf32> to vector<8x128xf32>
    %104 = vector.shape_cast %100 : vector<1x8x128xf32> to vector<8x128xf32>
    %105 = vector.shape_cast %94 : vector<1x8x128xf32> to vector<8x128xf32>
    %106 = vector.shape_cast %96 : vector<1x8x128xf32> to vector<8x128xf32>
    %107 = tpu.concatenate %101, %105, %106 in 1 : vector<8x128xf32>, vector<8x128xf32>, vector<8x128xf32> -> vector<8x384xf32>
    %108 = arith.truncf %107 : vector<8x384xf32> to vector<8x384xbf16>
    %c0_40 = arith.constant 0 : index
    %c0_41 = arith.constant 0 : index
    %109 = vector.load %arg4[%c0_40, %c0_41] : memref<512x1024xbf16, #tpu.memory_space<vmem>>, vector<384x1024xbf16>
    %cst_42 = arith.constant dense<0.000000e+00> : vector<8x1024xf32>
    %110 = tpu.matmul %108, %109, %cst_42 {dimension_numbers = #tpu.dot_dimension_numbers<[1], [0], [0], [1], [0, 0, 1, 1], [], []>} : vector<8x384xbf16>, vector<384x1024xbf16>, vector<8x1024xf32> -> vector<8x1024xf32>
    %111 = arith.truncf %14 : vector<1x128xf32> to vector<1x128xbf16>
    %c384 = arith.constant 384 : index
    %c0_43 = arith.constant 0 : index
    %112 = vector.load %arg4[%c384, %c0_43] : memref<512x1024xbf16, #tpu.memory_space<vmem>>, vector<128x1024xbf16>
    %cst_44 = arith.constant dense<0.000000e+00> : vector<1x1024xf32>
    %113 = tpu.matmul %111, %112, %cst_44 {dimension_numbers = #tpu.dot_dimension_numbers<[1], [0], [0], [1], [0, 0, 1, 1], [], []>} : vector<1x128xbf16>, vector<128x1024xbf16>, vector<1x1024xf32> -> vector<1x1024xf32>
    %114 = vector.shape_cast %113 : vector<1x1024xf32> to vector<1x1x1024xf32>
    %115 = vector.shape_cast %114 : vector<1x1x1024xf32> to vector<1x1x1024xf32>
    %116 = vector.broadcast %115 : vector<1x1x1024xf32> to vector<1x8x1024xf32>
    %117 = vector.shape_cast %116 : vector<1x8x1024xf32> to vector<8x1024xf32>
    %118 = arith.addf %110, %117 : vector<8x1024xf32>
    %c0_45 = arith.constant 0 : index
    %c0_46 = arith.constant 0 : index
    %119 = vector.load %arg5[%c0_45, %c0_46] : memref<1x1024xf32, #tpu.memory_space<vmem>>, vector<1x1024xf32>
    %120 = vector.broadcast %119 : vector<1x1024xf32> to vector<8x1024xf32>
    %121 = arith.addf %118, %120 : vector<8x1024xf32>
    %c0_47 = arith.constant 0 : index
    %c0_48 = arith.constant 0 : index
    %122 = vector.load %arg20[%c0_47, %c0_48] : memref<8x1024xf32, #tpu.memory_space<vmem>>, vector<8x1024xf32>
    %123 = arith.addf %121, %122 : vector<8x1024xf32>
    %124 = vector.extract_strided_slice %123 {offsets = [0, 0], sizes = [8, 128], strides = [1, 1]} : vector<8x1024xf32> to vector<8x128xf32>
    %125 = vector.extract_strided_slice %123 {offsets = [0, 128], sizes = [8, 128], strides = [1, 1]} : vector<8x1024xf32> to vector<8x128xf32>
    %126 = vector.extract_strided_slice %123 {offsets = [0, 256], sizes = [8, 128], strides = [1, 1]} : vector<8x1024xf32> to vector<8x128xf32>
    %127 = vector.extract_strided_slice %123 {offsets = [0, 384], sizes = [8, 128], strides = [1, 1]} : vector<8x1024xf32> to vector<8x128xf32>
    %128 = vector.extract_strided_slice %123 {offsets = [0, 512], sizes = [8, 128], strides = [1, 1]} : vector<8x1024xf32> to vector<8x128xf32>
    %129 = vector.extract_strided_slice %123 {offsets = [0, 640], sizes = [8, 128], strides = [1, 1]} : vector<8x1024xf32> to vector<8x128xf32>
    %130 = vector.extract_strided_slice %123 {offsets = [0, 768], sizes = [8, 128], strides = [1, 1]} : vector<8x1024xf32> to vector<8x128xf32>
    %131 = vector.extract_strided_slice %123 {offsets = [0, 896], sizes = [8, 128], strides = [1, 1]} : vector<8x1024xf32> to vector<8x128xf32>
    %cst_49 = arith.constant dense<0.000000e+00> : vector<8xf32>
    %132 = vector.multi_reduction <add>, %124, %cst_49 [1] : vector<8x128xf32> to vector<8xf32>
    %133 = vector.shape_cast %132 : vector<8xf32> to vector<8x1xf32>
    %cst_50 = arith.constant 1.280000e+02 : f32
    %134 = vector.broadcast %cst_50 : f32 to vector<8x1xf32>
    %135 = arith.divf %133, %134 : vector<8x1xf32>
    %136 = vector.broadcast %135 : vector<8x1xf32> to vector<8x128xf32>
    %137 = arith.subf %124, %136 : vector<8x128xf32>
    %138 = arith.mulf %137, %137 : vector<8x128xf32>
    %cst_51 = arith.constant dense<0.000000e+00> : vector<8xf32>
    %139 = vector.multi_reduction <add>, %138, %cst_51 [1] : vector<8x128xf32> to vector<8xf32>
    %140 = vector.shape_cast %139 : vector<8xf32> to vector<8x1xf32>
    %cst_52 = arith.constant 1.280000e+02 : f32
    %141 = vector.broadcast %cst_52 : f32 to vector<8x1xf32>
    %142 = arith.divf %140, %141 : vector<8x1xf32>
    %143 = vector.broadcast %135 : vector<8x1xf32> to vector<8x128xf32>
    %144 = arith.subf %124, %143 : vector<8x128xf32>
    %cst_53 = arith.constant 9.99999974E-6 : f32
    %145 = vector.broadcast %cst_53 : f32 to vector<8x1xf32>
    %146 = arith.addf %142, %145 : vector<8x1xf32>
    %147 = math.rsqrt %146 : vector<8x1xf32>
    %148 = vector.broadcast %147 : vector<8x1xf32> to vector<8x128xf32>
    %149 = arith.mulf %144, %148 : vector<8x128xf32>
    %cst_54 = arith.constant dense<0.000000e+00> : vector<8xf32>
    %150 = vector.multi_reduction <add>, %125, %cst_54 [1] : vector<8x128xf32> to vector<8xf32>
    %151 = vector.shape_cast %150 : vector<8xf32> to vector<8x1xf32>
    %cst_55 = arith.constant 1.280000e+02 : f32
    %152 = vector.broadcast %cst_55 : f32 to vector<8x1xf32>
    %153 = arith.divf %151, %152 : vector<8x1xf32>
    %154 = vector.broadcast %153 : vector<8x1xf32> to vector<8x128xf32>
    %155 = arith.subf %125, %154 : vector<8x128xf32>
    %156 = arith.mulf %155, %155 : vector<8x128xf32>
    %cst_56 = arith.constant dense<0.000000e+00> : vector<8xf32>
    %157 = vector.multi_reduction <add>, %156, %cst_56 [1] : vector<8x128xf32> to vector<8xf32>
    %158 = vector.shape_cast %157 : vector<8xf32> to vector<8x1xf32>
    %cst_57 = arith.constant 1.280000e+02 : f32
    %159 = vector.broadcast %cst_57 : f32 to vector<8x1xf32>
    %160 = arith.divf %158, %159 : vector<8x1xf32>
    %161 = vector.broadcast %153 : vector<8x1xf32> to vector<8x128xf32>
    %162 = arith.subf %125, %161 : vector<8x128xf32>
    %cst_58 = arith.constant 9.99999974E-6 : f32
    %163 = vector.broadcast %cst_58 : f32 to vector<8x1xf32>
    %164 = arith.addf %160, %163 : vector<8x1xf32>
    %165 = math.rsqrt %164 : vector<8x1xf32>
    %166 = vector.broadcast %165 : vector<8x1xf32> to vector<8x128xf32>
    %167 = arith.mulf %162, %166 : vector<8x128xf32>
    %cst_59 = arith.constant dense<0.000000e+00> : vector<8xf32>
    %168 = vector.multi_reduction <add>, %126, %cst_59 [1] : vector<8x128xf32> to vector<8xf32>
    %169 = vector.shape_cast %168 : vector<8xf32> to vector<8x1xf32>
    %cst_60 = arith.constant 1.280000e+02 : f32
    %170 = vector.broadcast %cst_60 : f32 to vector<8x1xf32>
    %171 = arith.divf %169, %170 : vector<8x1xf32>
    %172 = vector.broadcast %171 : vector<8x1xf32> to vector<8x128xf32>
    %173 = arith.subf %126, %172 : vector<8x128xf32>
    %174 = arith.mulf %173, %173 : vector<8x128xf32>
    %cst_61 = arith.constant dense<0.000000e+00> : vector<8xf32>
    %175 = vector.multi_reduction <add>, %174, %cst_61 [1] : vector<8x128xf32> to vector<8xf32>
    %176 = vector.shape_cast %175 : vector<8xf32> to vector<8x1xf32>
    %cst_62 = arith.constant 1.280000e+02 : f32
    %177 = vector.broadcast %cst_62 : f32 to vector<8x1xf32>
    %178 = arith.divf %176, %177 : vector<8x1xf32>
    %179 = vector.broadcast %171 : vector<8x1xf32> to vector<8x128xf32>
    %180 = arith.subf %126, %179 : vector<8x128xf32>
    %cst_63 = arith.constant 9.99999974E-6 : f32
    %181 = vector.broadcast %cst_63 : f32 to vector<8x1xf32>
    %182 = arith.addf %178, %181 : vector<8x1xf32>
    %183 = math.rsqrt %182 : vector<8x1xf32>
    %184 = vector.broadcast %183 : vector<8x1xf32> to vector<8x128xf32>
    %185 = arith.mulf %180, %184 : vector<8x128xf32>
    %cst_64 = arith.constant dense<0.000000e+00> : vector<8xf32>
    %186 = vector.multi_reduction <add>, %127, %cst_64 [1] : vector<8x128xf32> to vector<8xf32>
    %187 = vector.shape_cast %186 : vector<8xf32> to vector<8x1xf32>
    %cst_65 = arith.constant 1.280000e+02 : f32
    %188 = vector.broadcast %cst_65 : f32 to vector<8x1xf32>
    %189 = arith.divf %187, %188 : vector<8x1xf32>
    %190 = vector.broadcast %189 : vector<8x1xf32> to vector<8x128xf32>
    %191 = arith.subf %127, %190 : vector<8x128xf32>
    %192 = arith.mulf %191, %191 : vector<8x128xf32>
    %cst_66 = arith.constant dense<0.000000e+00> : vector<8xf32>
    %193 = vector.multi_reduction <add>, %192, %cst_66 [1] : vector<8x128xf32> to vector<8xf32>
    %194 = vector.shape_cast %193 : vector<8xf32> to vector<8x1xf32>
    %cst_67 = arith.constant 1.280000e+02 : f32
    %195 = vector.broadcast %cst_67 : f32 to vector<8x1xf32>
    %196 = arith.divf %194, %195 : vector<8x1xf32>
    %197 = vector.broadcast %189 : vector<8x1xf32> to vector<8x128xf32>
    %198 = arith.subf %127, %197 : vector<8x128xf32>
    %cst_68 = arith.constant 9.99999974E-6 : f32
    %199 = vector.broadcast %cst_68 : f32 to vector<8x1xf32>
    %200 = arith.addf %196, %199 : vector<8x1xf32>
    %201 = math.rsqrt %200 : vector<8x1xf32>
    %202 = vector.broadcast %201 : vector<8x1xf32> to vector<8x128xf32>
    %203 = arith.mulf %198, %202 : vector<8x128xf32>
    %204 = arith.negf %203 : vector<8x128xf32>
    %205 = math.exp %204 : vector<8x128xf32>
    %cst_69 = arith.constant 1.000000e+00 : f32
    %206 = vector.broadcast %cst_69 : f32 to vector<8x128xf32>
    %207 = arith.addf %206, %205 : vector<8x128xf32>
    %208 = arith.divf %206, %207 : vector<8x128xf32>
    %cst_70 = arith.constant dense<0.000000e+00> : vector<8xf32>
    %209 = vector.multi_reduction <add>, %128, %cst_70 [1] : vector<8x128xf32> to vector<8xf32>
    %210 = vector.shape_cast %209 : vector<8xf32> to vector<8x1xf32>
    %cst_71 = arith.constant 1.280000e+02 : f32
    %211 = vector.broadcast %cst_71 : f32 to vector<8x1xf32>
    %212 = arith.divf %210, %211 : vector<8x1xf32>
    %213 = vector.broadcast %212 : vector<8x1xf32> to vector<8x128xf32>
    %214 = arith.subf %128, %213 : vector<8x128xf32>
    %215 = arith.mulf %214, %214 : vector<8x128xf32>
    %cst_72 = arith.constant dense<0.000000e+00> : vector<8xf32>
    %216 = vector.multi_reduction <add>, %215, %cst_72 [1] : vector<8x128xf32> to vector<8xf32>
    %217 = vector.shape_cast %216 : vector<8xf32> to vector<8x1xf32>
    %cst_73 = arith.constant 1.280000e+02 : f32
    %218 = vector.broadcast %cst_73 : f32 to vector<8x1xf32>
    %219 = arith.divf %217, %218 : vector<8x1xf32>
    %220 = vector.broadcast %212 : vector<8x1xf32> to vector<8x128xf32>
    %221 = arith.subf %128, %220 : vector<8x128xf32>
    %cst_74 = arith.constant 9.99999974E-6 : f32
    %222 = vector.broadcast %cst_74 : f32 to vector<8x1xf32>
    %223 = arith.addf %219, %222 : vector<8x1xf32>
    %224 = math.rsqrt %223 : vector<8x1xf32>
    %225 = vector.broadcast %224 : vector<8x1xf32> to vector<8x128xf32>
    %226 = arith.mulf %221, %225 : vector<8x128xf32>
    %227 = arith.negf %226 : vector<8x128xf32>
    %228 = math.exp %227 : vector<8x128xf32>
    %cst_75 = arith.constant 1.000000e+00 : f32
    %229 = vector.broadcast %cst_75 : f32 to vector<8x128xf32>
    %230 = arith.addf %229, %228 : vector<8x128xf32>
    %231 = arith.divf %229, %230 : vector<8x128xf32>
    %cst_76 = arith.constant dense<0.000000e+00> : vector<8xf32>
    %232 = vector.multi_reduction <add>, %129, %cst_76 [1] : vector<8x128xf32> to vector<8xf32>
    %233 = vector.shape_cast %232 : vector<8xf32> to vector<8x1xf32>
    %cst_77 = arith.constant 1.280000e+02 : f32
    %234 = vector.broadcast %cst_77 : f32 to vector<8x1xf32>
    %235 = arith.divf %233, %234 : vector<8x1xf32>
    %236 = vector.broadcast %235 : vector<8x1xf32> to vector<8x128xf32>
    %237 = arith.subf %129, %236 : vector<8x128xf32>
    %238 = arith.mulf %237, %237 : vector<8x128xf32>
    %cst_78 = arith.constant dense<0.000000e+00> : vector<8xf32>
    %239 = vector.multi_reduction <add>, %238, %cst_78 [1] : vector<8x128xf32> to vector<8xf32>
    %240 = vector.shape_cast %239 : vector<8xf32> to vector<8x1xf32>
    %cst_79 = arith.constant 1.280000e+02 : f32
    %241 = vector.broadcast %cst_79 : f32 to vector<8x1xf32>
    %242 = arith.divf %240, %241 : vector<8x1xf32>
    %243 = vector.broadcast %235 : vector<8x1xf32> to vector<8x128xf32>
    %244 = arith.subf %129, %243 : vector<8x128xf32>
    %cst_80 = arith.constant 9.99999974E-6 : f32
    %245 = vector.broadcast %cst_80 : f32 to vector<8x1xf32>
    %246 = arith.addf %242, %245 : vector<8x1xf32>
    %247 = math.rsqrt %246 : vector<8x1xf32>
    %248 = vector.broadcast %247 : vector<8x1xf32> to vector<8x128xf32>
    %249 = arith.mulf %244, %248 : vector<8x128xf32>
    %250 = arith.negf %249 : vector<8x128xf32>
    %251 = math.exp %250 : vector<8x128xf32>
    %cst_81 = arith.constant 1.000000e+00 : f32
    %252 = vector.broadcast %cst_81 : f32 to vector<8x128xf32>
    %253 = arith.addf %252, %251 : vector<8x128xf32>
    %254 = arith.divf %252, %253 : vector<8x128xf32>
    %cst_82 = arith.constant dense<0.000000e+00> : vector<8xf32>
    %255 = vector.multi_reduction <add>, %131, %cst_82 [1] : vector<8x128xf32> to vector<8xf32>
    %256 = vector.shape_cast %255 : vector<8xf32> to vector<8x1xf32>
    %cst_83 = arith.constant 1.280000e+02 : f32
    %257 = vector.broadcast %cst_83 : f32 to vector<8x1xf32>
    %258 = arith.divf %256, %257 : vector<8x1xf32>
    %259 = vector.broadcast %258 : vector<8x1xf32> to vector<8x128xf32>
    %260 = arith.subf %131, %259 : vector<8x128xf32>
    %261 = arith.mulf %260, %260 : vector<8x128xf32>
    %cst_84 = arith.constant dense<0.000000e+00> : vector<8xf32>
    %262 = vector.multi_reduction <add>, %261, %cst_84 [1] : vector<8x128xf32> to vector<8xf32>
    %263 = vector.shape_cast %262 : vector<8xf32> to vector<8x1xf32>
    %cst_85 = arith.constant 1.280000e+02 : f32
    %264 = vector.broadcast %cst_85 : f32 to vector<8x1xf32>
    %265 = arith.divf %263, %264 : vector<8x1xf32>
    %266 = vector.broadcast %258 : vector<8x1xf32> to vector<8x128xf32>
    %267 = arith.subf %131, %266 : vector<8x128xf32>
    %cst_86 = arith.constant 9.99999974E-6 : f32
    %268 = vector.broadcast %cst_86 : f32 to vector<8x1xf32>
    %269 = arith.addf %265, %268 : vector<8x1xf32>
    %270 = math.rsqrt %269 : vector<8x1xf32>
    %271 = vector.broadcast %270 : vector<8x1xf32> to vector<8x128xf32>
    %272 = arith.mulf %267, %271 : vector<8x128xf32>
    %273 = arith.negf %272 : vector<8x128xf32>
    %274 = math.exp %273 : vector<8x128xf32>
    %cst_87 = arith.constant 1.000000e+00 : f32
    %275 = vector.broadcast %cst_87 : f32 to vector<8x128xf32>
    %276 = arith.addf %275, %274 : vector<8x128xf32>
    %277 = arith.divf %275, %276 : vector<8x128xf32>
    %278 = math.tanh %130 : vector<8x128xf32>
    %c0_88 = arith.constant 0 : index
    %c0_89 = arith.constant 0 : index
    %279 = vector.load %arg21[%c0_88, %c0_89] : memref<8x128xf32, #tpu.memory_space<vmem>>, vector<8x128xf32>
    %280 = arith.mulf %254, %279 : vector<8x128xf32>
    %281 = arith.addf %278, %280 : vector<8x128xf32>
    %282 = arith.maximumf %149, %167 : vector<8x128xf32>
    %283 = arith.maximumf %282, %185 : vector<8x128xf32>
    %284 = arith.subf %149, %283 : vector<8x128xf32>
    %285 = math.exp %284 : vector<8x128xf32>
    %286 = arith.subf %167, %283 : vector<8x128xf32>
    %287 = math.exp %286 : vector<8x128xf32>
    %288 = arith.subf %185, %283 : vector<8x128xf32>
    %289 = math.exp %288 : vector<8x128xf32>
    %290 = arith.addf %285, %287 : vector<8x128xf32>
    %291 = arith.addf %290, %289 : vector<8x128xf32>
    %292 = tpu.reciprocal %291 {approx = true} : vector<8x128xf32> -> vector<8x128xf32>
    %293 = arith.mulf %285, %292 : vector<8x128xf32>
    %294 = arith.mulf %287, %292 : vector<8x128xf32>
    %295 = arith.mulf %289, %292 : vector<8x128xf32>
    %296 = vector.shape_cast %15 : vector<1x128xf32> to vector<1x1x128xf32>
    %297 = vector.shape_cast %296 : vector<1x1x128xf32> to vector<1x1x128xf32>
    %298 = vector.broadcast %297 : vector<1x1x128xf32> to vector<1x8x128xf32>
    %299 = vector.shape_cast %298 : vector<1x8x128xf32> to vector<8x128xf32>
    %300 = arith.mulf %103, %293 : vector<8x128xf32>
    %301 = arith.mulf %104, %294 : vector<8x128xf32>
    %302 = arith.addf %300, %301 : vector<8x128xf32>
    %303 = arith.mulf %102, %295 : vector<8x128xf32>
    %304 = arith.addf %302, %303 : vector<8x128xf32>
    %cst_90 = arith.constant 1.000000e+00 : f32
    %305 = vector.broadcast %cst_90 : f32 to vector<8x128xf32>
    %306 = arith.subf %305, %208 : vector<8x128xf32>
    %307 = arith.mulf %304, %306 : vector<8x128xf32>
    %308 = arith.mulf %299, %208 : vector<8x128xf32>
    %309 = arith.addf %307, %308 : vector<8x128xf32>
    %310 = arith.mulf %281, %231 : vector<8x128xf32>
    %cst_91 = arith.constant 1.000000e+00 : f32
    %311 = vector.broadcast %cst_91 : f32 to vector<8x128xf32>
    %312 = arith.subf %311, %231 : vector<8x128xf32>
    %313 = arith.mulf %309, %312 : vector<8x128xf32>
    %314 = arith.addf %310, %313 : vector<8x128xf32>
    %315 = math.tanh %314 : vector<8x128xf32>
    %316 = arith.mulf %277, %315 : vector<8x128xf32>
    %317 = arith.addf %316, %101 : vector<8x128xf32>
    %cst_92 = arith.constant dense<0.000000e+00> : vector<8xf32>
    %318 = vector.multi_reduction <add>, %317, %cst_92 [1] : vector<8x128xf32> to vector<8xf32>
    %319 = vector.shape_cast %318 : vector<8xf32> to vector<8x1xf32>
    %cst_93 = arith.constant 1.280000e+02 : f32
    %320 = vector.broadcast %cst_93 : f32 to vector<8x1xf32>
    %321 = arith.divf %319, %320 : vector<8x1xf32>
    %322 = vector.broadcast %321 : vector<8x1xf32> to vector<8x128xf32>
    %323 = arith.subf %317, %322 : vector<8x128xf32>
    %324 = arith.mulf %323, %323 : vector<8x128xf32>
    %cst_94 = arith.constant dense<0.000000e+00> : vector<8xf32>
    %325 = vector.multi_reduction <add>, %324, %cst_94 [1] : vector<8x128xf32> to vector<8xf32>
    %326 = vector.shape_cast %325 : vector<8xf32> to vector<8x1xf32>
    %cst_95 = arith.constant 1.280000e+02 : f32
    %327 = vector.broadcast %cst_95 : f32 to vector<8x1xf32>
    %328 = arith.divf %326, %327 : vector<8x1xf32>
    %329 = vector.broadcast %321 : vector<8x1xf32> to vector<8x128xf32>
    %330 = arith.subf %317, %329 : vector<8x128xf32>
    %cst_96 = arith.constant 9.99999974E-6 : f32
    %331 = vector.broadcast %cst_96 : f32 to vector<8x1xf32>
    %332 = arith.addf %328, %331 : vector<8x1xf32>
    %333 = math.rsqrt %332 : vector<8x1xf32>
    %334 = vector.broadcast %333 : vector<8x1xf32> to vector<8x128xf32>
    %335 = arith.mulf %330, %334 : vector<8x128xf32>
    %336 = vector.shape_cast %335 : vector<8x128xf32> to vector<1x8x128xf32>
    %337 = vector.shape_cast %314 : vector<8x128xf32> to vector<1x8x128xf32>
    %338 = vector.shape_cast %336 : vector<1x8x128xf32> to vector<1x1x8x128xf32>
    %c0_97 = arith.constant 0 : index
    %c0_98 = arith.constant 0 : index
    %c0_99 = arith.constant 0 : index
    %c0_100 = arith.constant 0 : index
    %339 = vector.load %arg17[%c0_97, %c0_98, %c0_99, %c0_100] : memref<1x1x8x128xf32, #tpu.memory_space<vmem>>, vector<1x1x8x128xf32>
    tpu.vector_store %arg17[%c0_97, %c0_98, %c0_99, %c0_100], %338 {strides = array<i32>} : memref<1x1x8x128xf32, #tpu.memory_space<vmem>>, vector<1x1x8x128xf32>,
    %340 = vector.broadcast %2 : vector<1x8x1xf32> to vector<1x8x128xf32>
    %341 = arith.mulf %336, %340 : vector<1x8x128xf32>
    %342 = vector.broadcast %2 : vector<1x8x1xf32> to vector<1x8x128xf32>
    %343 = arith.mulf %337, %342 : vector<1x8x128xf32>
    %c0_101 = arith.constant 0 : index
    %c0_102 = arith.constant 0 : index
    %c0_103 = arith.constant 0 : index
    %344 = vector.load %arg13[%c0_101, %c0_102, %c0_103] : memref<1x8x128xf32, #tpu.memory_space<vmem>>, vector<1x8x128xf32>
    tpu.vector_store %arg13[%c0_101, %c0_102, %c0_103], %341 {strides = array<i32>} : memref<1x8x128xf32, #tpu.memory_space<vmem>>, vector<1x8x128xf32>,
    %c0_104 = arith.constant 0 : index
    %c0_105 = arith.constant 0 : index
    %c0_106 = arith.constant 0 : index
    %345 = vector.load %arg14[%c0_104, %c0_105, %c0_106] : memref<1x8x128xf32, #tpu.memory_space<vmem>>, vector<1x8x128xf32>
    tpu.vector_store %arg14[%c0_104, %c0_105, %c0_106], %343 {strides = array<i32>} : memref<1x8x128xf32, #tpu.memory_space<vmem>>, vector<1x8x128xf32>,
    %cst_107 = arith.constant dense<0.000000e+00> : vector<1x128xf32>
    %346 = vector.multi_reduction <add>, %341, %cst_107 [1] : vector<1x8x128xf32> to vector<1x128xf32>
    %347 = vector.broadcast %8 : vector<1x1xf32> to vector<1x128xf32>
    %348 = arith.mulf %346, %347 : vector<1x128xf32>
    %349 = tpu.concatenate %14, %348 in 1 : vector<1x128xf32>, vector<1x128xf32> -> vector<1x256xf32>
    %350 = arith.truncf %349 : vector<1x256xf32> to vector<1x256xbf16>
    %c0_108 = arith.constant 0 : index
    %c0_109 = arith.constant 0 : index
    %351 = vector.load %arg9[%c0_108, %c0_109] : memref<256x256xbf16, #tpu.memory_space<vmem>>, vector<256x256xbf16>
    %cst_110 = arith.constant dense<0.000000e+00> : vector<1x256xf32>
    %352 = tpu.matmul %350, %351, %cst_110 {dimension_numbers = #tpu.dot_dimension_numbers<[1], [0], [0], [1], [0, 0, 1, 1], [], []>} : vector<1x256xbf16>, vector<256x256xbf16>, vector<1x256xf32> -> vector<1x256xf32>
    %c0_111 = arith.constant 0 : index
    %c0_112 = arith.constant 0 : index
    %353 = vector.load %arg10[%c0_111, %c0_112] : memref<1x256xf32, #tpu.memory_space<vmem>>, vector<1x256xf32>
    %354 = arith.addf %352, %353 : vector<1x256xf32>
    %355 = vector.extract_strided_slice %354 {offsets = [0, 0], sizes = [1, 128], strides = [1, 1]} : vector<1x256xf32> to vector<1x128xf32>
    %cst_113 = arith.constant dense<0.000000e+00> : vector<1xf32>
    %356 = vector.multi_reduction <add>, %355, %cst_113 [1] : vector<1x128xf32> to vector<1xf32>
    %357 = vector.shape_cast %356 : vector<1xf32> to vector<1x1xf32>
    %cst_114 = arith.constant 1.280000e+02 : f32
    %358 = vector.broadcast %cst_114 : f32 to vector<1x1xf32>
    %359 = arith.divf %357, %358 : vector<1x1xf32>
    %360 = vector.broadcast %359 : vector<1x1xf32> to vector<1x128xf32>
    %361 = arith.subf %355, %360 : vector<1x128xf32>
    %362 = arith.mulf %361, %361 : vector<1x128xf32>
    %cst_115 = arith.constant dense<0.000000e+00> : vector<1xf32>
    %363 = vector.multi_reduction <add>, %362, %cst_115 [1] : vector<1x128xf32> to vector<1xf32>
    %364 = vector.shape_cast %363 : vector<1xf32> to vector<1x1xf32>
    %cst_116 = arith.constant 1.280000e+02 : f32
    %365 = vector.broadcast %cst_116 : f32 to vector<1x1xf32>
    %366 = arith.divf %364, %365 : vector<1x1xf32>
    %367 = vector.broadcast %359 : vector<1x1xf32> to vector<1x128xf32>
    %368 = arith.subf %355, %367 : vector<1x128xf32>
    %cst_117 = arith.constant 9.99999974E-6 : f32
    %369 = vector.broadcast %cst_117 : f32 to vector<1x1xf32>
    %370 = arith.addf %366, %369 : vector<1x1xf32>
    %371 = math.rsqrt %370 : vector<1x1xf32>
    %372 = vector.broadcast %371 : vector<1x1xf32> to vector<1x128xf32>
    %373 = arith.mulf %368, %372 : vector<1x128xf32>
    %374 = arith.negf %373 : vector<1x128xf32>
    %375 = math.exp %374 : vector<1x128xf32>
    %cst_118 = arith.constant 1.000000e+00 : f32
    %376 = vector.broadcast %cst_118 : f32 to vector<1x128xf32>
    %377 = arith.addf %376, %375 : vector<1x128xf32>
    %378 = arith.divf %376, %377 : vector<1x128xf32>
    %379 = vector.extract_strided_slice %354 {offsets = [0, 128], sizes = [1, 128], strides = [1, 1]} : vector<1x256xf32> to vector<1x128xf32>
    %cst_119 = arith.constant dense<0.000000e+00> : vector<1xf32>
    %380 = vector.multi_reduction <add>, %379, %cst_119 [1] : vector<1x128xf32> to vector<1xf32>
    %381 = vector.shape_cast %380 : vector<1xf32> to vector<1x1xf32>
    %cst_120 = arith.constant 1.280000e+02 : f32
    %382 = vector.broadcast %cst_120 : f32 to vector<1x1xf32>
    %383 = arith.divf %381, %382 : vector<1x1xf32>
    %384 = vector.broadcast %383 : vector<1x1xf32> to vector<1x128xf32>
    %385 = arith.subf %379, %384 : vector<1x128xf32>
    %386 = arith.mulf %385, %385 : vector<1x128xf32>
    %cst_121 = arith.constant dense<0.000000e+00> : vector<1xf32>
    %387 = vector.multi_reduction <add>, %386, %cst_121 [1] : vector<1x128xf32> to vector<1xf32>
    %388 = vector.shape_cast %387 : vector<1xf32> to vector<1x1xf32>
    %cst_122 = arith.constant 1.280000e+02 : f32
    %389 = vector.broadcast %cst_122 : f32 to vector<1x1xf32>
    %390 = arith.divf %388, %389 : vector<1x1xf32>
    %391 = vector.broadcast %383 : vector<1x1xf32> to vector<1x128xf32>
    %392 = arith.subf %379, %391 : vector<1x128xf32>
    %cst_123 = arith.constant 9.99999974E-6 : f32
    %393 = vector.broadcast %cst_123 : f32 to vector<1x1xf32>
    %394 = arith.addf %390, %393 : vector<1x1xf32>
    %395 = math.rsqrt %394 : vector<1x1xf32>
    %396 = vector.broadcast %395 : vector<1x1xf32> to vector<1x128xf32>
    %397 = arith.mulf %392, %396 : vector<1x128xf32>
    %398 = arith.negf %397 : vector<1x128xf32>
    %399 = math.exp %398 : vector<1x128xf32>
    %cst_124 = arith.constant 1.000000e+00 : f32
    %400 = vector.broadcast %cst_124 : f32 to vector<1x128xf32>
    %401 = arith.addf %400, %399 : vector<1x128xf32>
    %402 = arith.divf %400, %401 : vector<1x128xf32>
    %403 = vector.shape_cast %341 : vector<1x8x128xf32> to vector<8x128xf32>
    %404 = arith.truncf %403 : vector<8x128xf32> to vector<8x128xbf16>
    %c128 = arith.constant 128 : index
    %c0_125 = arith.constant 0 : index
    %405 = vector.load %arg11[%c128, %c0_125] : memref<256x128xbf16, #tpu.memory_space<vmem>>, vector<128x128xbf16>
    %cst_126 = arith.constant dense<0.000000e+00> : vector<8x128xf32>
    %406 = tpu.matmul %404, %405, %cst_126 {dimension_numbers = #tpu.dot_dimension_numbers<[1], [0], [0], [1], [0, 0, 1, 1], [], []>} : vector<8x128xbf16>, vector<128x128xbf16>, vector<8x128xf32> -> vector<8x128xf32>
    %407 = arith.truncf %14 : vector<1x128xf32> to vector<1x128xbf16>
    %c0_127 = arith.constant 0 : index
    %c0_128 = arith.constant 0 : index
    %408 = vector.load %arg11[%c0_127, %c0_128] : memref<256x128xbf16, #tpu.memory_space<vmem>>, vector<128x128xbf16>
    %cst_129 = arith.constant dense<0.000000e+00> : vector<1x128xf32>
    %409 = tpu.matmul %407, %408, %cst_129 {dimension_numbers = #tpu.dot_dimension_numbers<[1], [0], [0], [1], [0, 0, 1, 1], [], []>} : vector<1x128xbf16>, vector<128x128xbf16>, vector<1x128xf32> -> vector<1x128xf32>
    %410 = vector.shape_cast %409 : vector<1x128xf32> to vector<1x1x128xf32>
    %411 = vector.shape_cast %410 : vector<1x1x128xf32> to vector<1x1x128xf32>
    %412 = vector.broadcast %411 : vector<1x1x128xf32> to vector<1x8x128xf32>
    %413 = vector.shape_cast %412 : vector<1x8x128xf32> to vector<8x128xf32>
    %414 = arith.addf %406, %413 : vector<8x128xf32>
    %c0_130 = arith.constant 0 : index
    %c0_131 = arith.constant 0 : index
    %415 = vector.load %arg12[%c0_130, %c0_131] : memref<1x128xf32, #tpu.memory_space<vmem>>, vector<1x128xf32>
    %416 = vector.broadcast %415 : vector<1x128xf32> to vector<8x128xf32>
    %417 = arith.addf %414, %416 : vector<8x128xf32>
    %cst_132 = arith.constant dense<0.000000e+00> : vector<8xf32>
    %418 = vector.multi_reduction <add>, %417, %cst_132 [1] : vector<8x128xf32> to vector<8xf32>
    %419 = vector.shape_cast %418 : vector<8xf32> to vector<8x1xf32>
    %cst_133 = arith.constant 1.280000e+02 : f32
    %420 = vector.broadcast %cst_133 : f32 to vector<8x1xf32>
    %421 = arith.divf %419, %420 : vector<8x1xf32>
    %422 = vector.broadcast %421 : vector<8x1xf32> to vector<8x128xf32>
    %423 = arith.subf %417, %422 : vector<8x128xf32>
    %424 = arith.mulf %423, %423 : vector<8x128xf32>
    %cst_134 = arith.constant dense<0.000000e+00> : vector<8xf32>
    %425 = vector.multi_reduction <add>, %424, %cst_134 [1] : vector<8x128xf32> to vector<8xf32>
    %426 = vector.shape_cast %425 : vector<8xf32> to vector<8x1xf32>
    %cst_135 = arith.constant 1.280000e+02 : f32
    %427 = vector.broadcast %cst_135 : f32 to vector<8x1xf32>
    %428 = arith.divf %426, %427 : vector<8x1xf32>
    %429 = vector.broadcast %421 : vector<8x1xf32> to vector<8x128xf32>
    %430 = arith.subf %417, %429 : vector<8x128xf32>
    %cst_136 = arith.constant 9.99999974E-6 : f32
    %431 = vector.broadcast %cst_136 : f32 to vector<8x1xf32>
    %432 = arith.addf %428, %431 : vector<8x1xf32>
    %433 = math.rsqrt %432 : vector<8x1xf32>
    %434 = vector.broadcast %433 : vector<8x1xf32> to vector<8x128xf32>
    %435 = arith.mulf %430, %434 : vector<8x128xf32>
    %436 = arith.negf %435 : vector<8x128xf32>
    %437 = math.exp %436 : vector<8x128xf32>
    %cst_137 = arith.constant 1.000000e+00 : f32
    %438 = vector.broadcast %cst_137 : f32 to vector<8x128xf32>
    %439 = arith.addf %438, %437 : vector<8x128xf32>
    %440 = arith.divf %438, %439 : vector<8x128xf32>
    %441 = vector.shape_cast %440 : vector<8x128xf32> to vector<1x8x128xf32>
    %442 = vector.broadcast %4 : vector<1x8x1xf32> to vector<1x8x128xf32>
    %443 = arith.addf %441, %442 : vector<1x8x128xf32>
    %cst_138 = arith.constant 5.000000e-01 : f32
    %444 = vector.broadcast %cst_138 : f32 to vector<1x8x128xf32>
    %445 = arith.mulf %443, %444 : vector<1x8x128xf32>
    %446 = vector.shape_cast %378 : vector<1x128xf32> to vector<1x1x128xf32>
    %cst_139 = arith.constant 5.000000e-01 : f32
    %447 = vector.broadcast %cst_139 : f32 to vector<1x1x128xf32>
    %448 = arith.mulf %446, %447 : vector<1x1x128xf32>
    %cst_140 = arith.constant dense<0xFF800000> : vector<1x128xf32>
    %449 = vector.multi_reduction <maximumf>, %445, %cst_140 [1] : vector<1x8x128xf32> to vector<1x128xf32>
    %450 = vector.shape_cast %449 : vector<1x128xf32> to vector<1x1x128xf32>
    %451 = arith.maximumf %450, %448 : vector<1x1x128xf32>
    %452 = vector.broadcast %451 : vector<1x1x128xf32> to vector<1x8x128xf32>
    %453 = arith.subf %445, %452 : vector<1x8x128xf32>
    %454 = math.exp %453 : vector<1x8x128xf32>
    %455 = arith.subf %448, %451 : vector<1x1x128xf32>
    %456 = math.exp %455 : vector<1x1x128xf32>
    %cst_141 = arith.constant dense<0.000000e+00> : vector<1x128xf32>
    %457 = vector.multi_reduction <add>, %454, %cst_141 [1] : vector<1x8x128xf32> to vector<1x128xf32>
    %458 = vector.shape_cast %457 : vector<1x128xf32> to vector<1x1x128xf32>
    %459 = arith.addf %458, %456 : vector<1x1x128xf32>
    %460 = tpu.reciprocal %459 {approx = true} : vector<1x1x128xf32> -> vector<1x1x128xf32>
    %461 = vector.broadcast %460 : vector<1x1x128xf32> to vector<1x8x128xf32>
    %462 = arith.mulf %454, %461 : vector<1x8x128xf32>
    %463 = arith.mulf %456, %460 : vector<1x1x128xf32>
    %464 = vector.shape_cast %463 : vector<1x1x128xf32> to vector<1x128xf32>
    %465 = arith.mulf %462, %343 : vector<1x8x128xf32>
    %cst_142 = arith.constant dense<0.000000e+00> : vector<1x128xf32>
    %466 = vector.multi_reduction <add>, %465, %cst_142 [1] : vector<1x8x128xf32> to vector<1x128xf32>
    %467 = arith.mulf %464, %15 : vector<1x128xf32>
    %468 = arith.addf %466, %467 : vector<1x128xf32>
    %469 = math.tanh %468 : vector<1x128xf32>
    %470 = arith.mulf %402, %469 : vector<1x128xf32>
    %471 = vector.shape_cast %470 : vector<1x128xf32> to vector<1x1x1x128xf32>
    %c0_143 = arith.constant 0 : index
    %c0_144 = arith.constant 0 : index
    %c0_145 = arith.constant 0 : index
    %c0_146 = arith.constant 0 : index
    %472 = vector.load %arg15[%c0_143, %c0_144, %c0_145, %c0_146] : memref<1x1x1x128xf32, #tpu.memory_space<vmem>>, vector<1x1x1x128xf32>
    tpu.vector_store %arg15[%c0_143, %c0_144, %c0_145, %c0_146], %471 {strides = array<i32>} : memref<1x1x1x128xf32, #tpu.memory_space<vmem>>, vector<1x1x1x128xf32>,
    %473 = vector.shape_cast %468 : vector<1x128xf32> to vector<1x1x1x128xf32>
    %c0_147 = arith.constant 0 : index
    %c0_148 = arith.constant 0 : index
    %c0_149 = arith.constant 0 : index
    %c0_150 = arith.constant 0 : index
    %474 = vector.load %arg16[%c0_147, %c0_148, %c0_149, %c0_150] : memref<1x1x1x128xf32, #tpu.memory_space<vmem>>, vector<1x1x1x128xf32>
    tpu.vector_store %arg16[%c0_147, %c0_148, %c0_149, %c0_150], %473 {strides = array<i32>} : memref<1x1x1x128xf32, #tpu.memory_space<vmem>>, vector<1x1x1x128xf32>,
    %c0_151 = arith.constant 0 : index
    %c0_152 = arith.constant 0 : index
    %475 = vector.load %arg18[%c0_151, %c0_152] : memref<1x128xf32, #tpu.memory_space<vmem>>, vector<1x128xf32>
    tpu.vector_store %arg18[%c0_151, %c0_152], %470 {strides = array<i32>} : memref<1x128xf32, #tpu.memory_space<vmem>>, vector<1x128xf32>,
    %c0_153 = arith.constant 0 : index
    %c0_154 = arith.constant 0 : index
    %476 = vector.load %arg19[%c0_153, %c0_154] : memref<1x128xf32, #tpu.memory_space<vmem>>, vector<1x128xf32>
    tpu.vector_store %arg19[%c0_153, %c0_154], %468 {strides = array<i32>} : memref<1x128xf32, #tpu.memory_space<vmem>>, vector<1x128xf32>,
    return
  }
  func.func @transform_0(%arg0: i32, %arg1: i32) -> (i32, i32, i32) {
    %c0_i32 = arith.constant 0 : i32
    %c0_i32_0 = arith.constant 0 : i32
    %c0_i32_1 = arith.constant 0 : i32
    return %arg0, %c0_i32, %c0_i32_0 : i32, i32, i32
  }
  func.func @transform_1(%arg0: i32, %arg1: i32) -> (i32, i32, i32) {
    %c0_i32 = arith.constant 0 : i32
    %c0_i32_0 = arith.constant 0 : i32
    %c0_i32_1 = arith.constant 0 : i32
    return %arg0, %c0_i32, %c0_i32_0 : i32, i32, i32
  }
  func.func @transform_2(%arg0: i32, %arg1: i32) -> (i32, i32) {
    %c0_i32 = arith.constant 0 : i32
    %c0_i32_0 = arith.constant 0 : i32
    %c0_i32_1 = arith.constant 0 : i32
    return %c0_i32, %c0_i32_0 : i32, i32
  }
  func.func @transform_3(%arg0: i32, %arg1: i32) -> (i32, i32) {
    %c0_i32 = arith.constant 0 : i32
    %c0_i32_0 = arith.constant 0 : i32
    %c0_i32_1 = arith.constant 0 : i32
    return %c0_i32, %c0_i32_0 : i32, i32
  }
  func.func @transform_4(%arg0: i32, %arg1: i32) -> (i32, i32) {
    %c0_i32 = arith.constant 0 : i32
    %c0_i32_0 = arith.constant 0 : i32
    %c0_i32_1 = arith.constant 0 : i32
    return %c0_i32, %c0_i32_0 : i32, i32
  }
  func.func @transform_5(%arg0: i32, %arg1: i32) -> (i32, i32) {
    %c0_i32 = arith.constant 0 : i32
    %c0_i32_0 = arith.constant 0 : i32
    %c0_i32_1 = arith.constant 0 : i32
    return %c0_i32, %c0_i32_0 : i32, i32
  }
  func.func @transform_6(%arg0: i32, %arg1: i32) -> (i32, i32) {
    %c0_i32 = arith.constant 0 : i32
    %c0_i32_0 = arith.constant 0 : i32
    %c0_i32_1 = arith.constant 0 : i32
    return %c0_i32, %c0_i32_0 : i32, i32
  }
  func.func @transform_7(%arg0: i32, %arg1: i32) -> (i32, i32) {
    %c0_i32 = arith.constant 0 : i32
    %c0_i32_0 = arith.constant 0 : i32
    %c0_i32_1 = arith.constant 0 : i32
    return %c0_i32, %c0_i32_0 : i32, i32
  }
  func.func @transform_8(%arg0: i32, %arg1: i32) -> (i32, i32) {
    %c0_i32 = arith.constant 0 : i32
    %c0_i32_0 = arith.constant 0 : i32
    %c0_i32_1 = arith.constant 0 : i32
    return %c0_i32, %c0_i32_0 : i32, i32
  }
  func.func @transform_9(%arg0: i32, %arg1: i32) -> (i32, i32) {
    %c0_i32 = arith.constant 0 : i32
    %c0_i32_0 = arith.constant 0 : i32
    %c0_i32_1 = arith.constant 0 : i32
    return %c0_i32, %c0_i32_0 : i32, i32
  }
  func.func @transform_10(%arg0: i32, %arg1: i32) -> (i32, i32) {
    %c0_i32 = arith.constant 0 : i32
    %c0_i32_0 = arith.constant 0 : i32
    %c0_i32_1 = arith.constant 0 : i32
    return %c0_i32, %c0_i32_0 : i32, i32
  }
  func.func @transform_11(%arg0: i32, %arg1: i32) -> (i32, i32, i32) {
    %c0_i32 = arith.constant 0 : i32
    %c0_i32_0 = arith.constant 0 : i32
    %c0_i32_1 = arith.constant 0 : i32
    return %arg0, %c0_i32, %c0_i32_0 : i32, i32, i32
  }
  func.func @transform_12(%arg0: i32, %arg1: i32) -> (i32, i32, i32) {
    %c0_i32 = arith.constant 0 : i32
    %c0_i32_0 = arith.constant 0 : i32
    %c0_i32_1 = arith.constant 0 : i32
    return %arg0, %c0_i32, %c0_i32_0 : i32, i32, i32
  }
  func.func @transform_13(%arg0: i32, %arg1: i32) -> (i32, i32, i32, i32) {
    %c0_i32 = arith.constant 0 : i32
    %c0_i32_0 = arith.constant 0 : i32
    %c0_i32_1 = arith.constant 0 : i32
    return %arg1, %arg0, %c0_i32, %c0_i32_0 : i32, i32, i32, i32
  }
  func.func @transform_14(%arg0: i32, %arg1: i32) -> (i32, i32, i32, i32) {
    %c0_i32 = arith.constant 0 : i32
    %c0_i32_0 = arith.constant 0 : i32
    %c0_i32_1 = arith.constant 0 : i32
    return %arg1, %arg0, %c0_i32, %c0_i32_0 : i32, i32, i32, i32
  }
  func.func @transform_15(%arg0: i32, %arg1: i32) -> (i32, i32, i32, i32) {
    %c0_i32 = arith.constant 0 : i32
    %c0_i32_0 = arith.constant 0 : i32
    %c0_i32_1 = arith.constant 0 : i32
    return %arg1, %arg0, %c0_i32, %c0_i32_0 : i32, i32, i32, i32
  }
}

</mosaic_0001>

<llo_original>
// kernel: tpu_custom_call.1
$region0: #{tpu_custom_call.1}
  #allocation0 [shape = 'u32[]', space=smem, size = 0x4, offset = 0x4, fixed_abs, tag = 'smem constant byte address 0x4 - core index']
  #allocation1 [shape = 'u32[72,128]{1,0:T(1,128)}', space=vmem, size = 0x9000, scoped, tag = 'internal scratch']
  #allocation2 [shape = 'f32[1,128]{1,0:T(1,128)}', space=vmem, size = 0x200, scoped, tag = 'scratch operand']
  #allocation3 [shape = 'f32[1,128]{1,0:T(1,128)}', space=vmem, size = 0x200, scoped, tag = 'scratch operand']
  #allocation4 [shape = 'f32[8,1024]{1,0:T(8,128)}', space=vmem, size = 0x8000, scoped, tag = 'scratch operand']
  #allocation5 [shape = 'f32[8,128]{1,0:T(8,128)}', space=vmem, size = 0x1000, scoped, tag = 'scratch operand']
  %s0 = inlined_call_operand.vmem [shape: f32[2,8,1], index: 0, kind: input, shape index: {}]
  %s1 = inlined_call_operand.vmem [shape: f32[2,8,128], index: 1, kind: input, shape index: {}]
  %s2 = inlined_call_operand.hbm [shape: bf16[512,1024], index: 2, kind: input, shape index: {}]
  %s3 = inlined_call_operand.hbm [shape: f32[1,1024], index: 3, kind: input, shape index: {}]
  %s4 = inlined_call_operand.hbm [shape: bf16[128,1024], index: 4, kind: input, shape index: {}]
  %s5 = inlined_call_operand.hbm [shape: bf16[128,128], index: 5, kind: input, shape index: {}]
  %s6 = inlined_call_operand.vmem [shape: f32[1,128], index: 6, kind: input, shape index: {}]
  %s7 = inlined_call_operand.hbm [shape: bf16[256,256], index: 7, kind: input, shape index: {}]
  %s8 = inlined_call_operand.vmem [shape: f32[1,256], index: 8, kind: input, shape index: {}]
  %s9 = inlined_call_operand.hbm [shape: bf16[256,128], index: 9, kind: input, shape index: {}]
  %s10 = inlined_call_operand.vmem [shape: f32[1,128], index: 10, kind: input, shape index: {}]
  %s11 = inlined_call_operand.hbm [shape: f32[2,8,128], index: 11, kind: output, shape index: {0}]
  %s12 = inlined_call_operand.hbm [shape: f32[2,8,128], index: 12, kind: output, shape index: {1}]
  %s13 = inlined_call_operand.hbm [shape: f32[3,2,1,128], index: 13, kind: output, shape index: {2}]
  %s14 = inlined_call_operand.hbm [shape: f32[3,2,1,128], index: 14, kind: output, shape index: {3}]
  %s15 = inlined_call_operand.hbm [shape: f32[3,2,8,128], index: 15, kind: output, shape index: {4}]
  %16 = xla_tuple %s11, %s12, %s13, %s14, %s15
  %s17 = sld [smem:[#allocation0]]
  $region137: #{tpu_custom_call.1} parent=0
    _
  %s19 = ssub.s32 1, %s17
  %s20 = scalar_select 0, %s19, %s17
  $region1: #{tpu_custom_call.1} parent=0
    #allocation6 [shape = 'u8[1048576]{0}', space=vmem, size = 0x100000, scoped, tag = 'input window, operand 2, single buffered']
    #allocation7 [shape = 's32[2]{0}', space=sflag, size = 0x8, scoped, tag = 'scoped memory for tpu_custom_call.1']
    #allocation8 [shape = 's32[2]{0}', space=sflag, size = 0x8, scoped, tag = 'scoped memory for tpu_custom_call.1']
    #allocation9 [shape = 'u8[4096]{0}', space=vmem, size = 0x1000, scoped, tag = 'input window, operand 3, single buffered']
    #allocation10 [shape = 's32[1]{0}', space=sflag, size = 0x4, scoped, tag = 'scoped memory for tpu_custom_call.1']
    #allocation11 [shape = 'u8[262144]{0}', space=vmem, size = 0x40000, scoped, tag = 'input window, operand 4, single buffered']
    #allocation12 [shape = 'u8[32768]{0}', space=vmem, size = 0x8000, scoped, tag = 'input window, operand 5, single buffered']
    #allocation13 [shape = 's32[1]{0}', space=sflag, size = 0x4, scoped, tag = 'scoped memory for tpu_custom_call.1']
    #allocation14 [shape = 'u8[131072]{0}', space=vmem, size = 0x20000, scoped, tag = 'input window, operand 7, single buffered']
    #allocation15 [shape = 'u8[65536]{0}', space=vmem, size = 0x10000, scoped, tag = 'input window, operand 9, single buffered']
    #allocation16 [shape = 's32[1]{0}', space=sflag, size = 0x4, scoped, tag = 'scoped memory for tpu_custom_call.1']
    #allocation17 [shape = 'u8[8192]{0}', space=vmem, size = 0x2000, scoped, tag = 'output window, operand 0']
    #allocation18 [shape = 'u8[8192]{0}', space=vmem, size = 0x2000, scoped, tag = 'output window, operand 1']
    #allocation19 [shape = 's32[2]{0}', space=sflag, size = 0x8, scoped, tag = 'scoped memory for tpu_custom_call.1']
    #allocation20 [shape = 'u8[1024]{0}', space=vmem, size = 0x400, scoped, tag = 'output window, operand 2']
    #allocation21 [shape = 'u8[1024]{0}', space=vmem, size = 0x400, scoped, tag = 'output window, operand 3']
    #allocation22 [shape = 's32[2]{0}', space=sflag, size = 0x8, scoped, tag = 'scoped memory for tpu_custom_call.1']
    #allocation23 [shape = 'u8[8192]{0}', space=vmem, size = 0x2000, scoped, tag = 'output window, operand 4']
    %21 = vsyncpa [#allocation7], 0
    %22 = vsyncpa [#allocation10], 0
    %23 = vsyncpa [#allocation13], 0
    %24 = vsyncpa [#allocation16], 0
    %25 = vsyncpa [#allocation8], 0
    %s26 = scalar_lea.sflag [#allocation8], 1
    %27 = vsyncpa %s26, 0
    %28 = vsyncpa [#allocation19], 0
    %s29 = scalar_lea.sflag [#allocation19], 1
    %30 = vsyncpa %s29, 0
    %31 = vsyncpa [#allocation22], 0
    %s32 = scalar_lea.sflag [#allocation22], 1
    %33 = vsyncpa %s32, 0
    loop: start=0, step=1, limit=8
    $region2: #{tpu_custom_call.1} parent=1 // loop_pre_header
      _
    $region3: #{tpu_custom_call.1} parent=1 // loop_header
      %s35 = sphi 0, %s39
      %p36 = scmp.ge.s32.totalorder %s35, 8
      %s42 = sphi 0, %s54
      %s43 = sphi 0, %s50
      %s44 = sphi 0, %s42
      %s45 = sphi 0, %s43
      %s46 = sphi 0, %s44
      %s47 = sphi 0, %s45
      %s57 = sphi 0, %s59
      %s60 = sphi 0, %s57
      %s61 = sphi 0, %s60
      %s77 = sphi 0, %s61
      %s83 = sphi 0, %s85
      %s86 = sphi 0, %s83
      %s87 = sphi 0, %s86
      %s103 = sphi 0, %s87
      %s107 = sphi 0, %s107
      %s109 = sphi 0, %s107
      %s110 = sphi 0, %s109
      %s124 = sphi 0, %s110
      %s128 = sphi 0, %s128
      %s130 = sphi 0, %s128
      %s131 = sphi 0, %s130
      %s145 = sphi 0, %s131
      %s149 = sphi 0, %s149
      %s151 = sphi 0, %s149
      %s152 = sphi 0, %s151
      %s166 = sphi 0, %s152
      %s170 = sphi 0, %s170
      %s172 = sphi 0, %s170
      %s173 = sphi 0, %s172
      %s187 = sphi 0, %s173
      %s191 = sphi 0, %s191
      %s193 = sphi 0, %s191
      %s194 = sphi 0, %s193
      %s208 = sphi 0, %s194
      %s212 = sphi 0, %s212
      %s214 = sphi 0, %s212
      %s215 = sphi 0, %s214
      %s229 = sphi 0, %s215
      %s233 = sphi 0, %s233
      %s235 = sphi 0, %s233
      %s236 = sphi 0, %s235
      %s250 = sphi 0, %s236
      %s254 = sphi 0, %s254
      %s256 = sphi 0, %s254
      %s257 = sphi 0, %s256
      %s271 = sphi 0, %s257
      %s275 = sphi 0, %s275
      %s277 = sphi 0, %s275
      %s278 = sphi 0, %s277
      %s292 = sphi 0, %s278
      %s298 = sphi 0, %s300
      %s301 = sphi 0, %s298
      %s302 = sphi 0, %s301
      %s318 = sphi 0, %s302
      %s324 = sphi 0, %s326
      %s327 = sphi 0, %s324
      %s328 = sphi 0, %s327
      %s344 = sphi 0, %s328
      %s352 = sphi 0, %s354
      %s355 = sphi 0, %s352
      %s356 = sphi 0, %s355
      %s372 = sphi 0, %s356
      %s380 = sphi 0, %s382
      %s383 = sphi 0, %s380
      %s384 = sphi 0, %s383
      %s400 = sphi 0, %s384
      %s408 = sphi 0, %s410
      %s411 = sphi 0, %s408
      %s412 = sphi 0, %s411
      %s428 = sphi 0, %s412
    $region4: #{tpu_custom_call.1} parent=1 // loop_header_branch
      %38 = sbr.rel (%p36) target = $region8
    $region5: #{tpu_custom_call.1} parent=1 // loop_body
      %s40 = ssub.s32 %s35, 1
      %s41 = ssub.s32 %s35, 2
      %s48 = sadd.s32 1, %s43
      %p49 = scmp.ge.s32.totalorder %s48, 3
      %s50 = scalar_select %p49, 0, %s48
      %s51 = sadd.s32 1, %s42
      %s52 = scalar_select %p49, %s51, %s42
      %p53 = scmp.ge.s32.totalorder %s52, 2
      %s54 = scalar_select %p53, 0, %s52
      %s55 = ssub.s32 %s42, %s54
      %p56 = scmp.eq.s32.totalorder %s55, 0
      %s58 = sadd.s32 %s57, 1
      %s59 = scalar_select %p56, %s57, %s58
      %p62 = pneg %p56
      %p63 = scmp.eq.s32.totalorder %s35, 5
      %p64 = por %p62, %p63
      %p65 = scmp.ne.s32.totalorder %s57, %s60
      %p66 = scmp.eq.s32.totalorder %s35, 0
      %p67 = por %p65, %p66
      %p68 = scmp.ne.s32.totalorder %s57, %s60
      %p69 = scmp.eq.s32.totalorder %s40, 5
      %p70 = por %p68, %p69
      %p71 = scmp.ne.s32.totalorder %s60, %s61
      %p72 = scmp.eq.s32.totalorder %s40, 0
      %p73 = por %p71, %p72
      %p74 = scmp.ne.s32.totalorder %s60, %s61
      %p75 = scmp.eq.s32.totalorder %s41, 5
      %p76 = por %p74, %p75
      %p78 = scmp.ne.s32.totalorder %s61, %s77
      %p79 = scmp.eq.s32.totalorder %s41, 0
      %p80 = por %p78, %p79
      %s81 = ssub.s32 %s42, %s54
      %p82 = scmp.eq.s32.totalorder %s81, 0
      %s84 = sadd.s32 %s83, 1
      %s85 = scalar_select %p82, %s83, %s84
      %p88 = pneg %p82
      %p89 = scmp.eq.s32.totalorder %s35, 5
      %p90 = por %p88, %p89
      %p91 = scmp.ne.s32.totalorder %s83, %s86
      %p92 = scmp.eq.s32.totalorder %s35, 0
      %p93 = por %p91, %p92
      %p94 = scmp.ne.s32.totalorder %s83, %s86
      %p95 = scmp.eq.s32.totalorder %s40, 5
      %p96 = por %p94, %p95
      %p97 = scmp.ne.s32.totalorder %s86, %s87
      %p98 = scmp.eq.s32.totalorder %s40, 0
      %p99 = por %p97, %p98
      %p100 = scmp.ne.s32.totalorder %s86, %s87
      %p101 = scmp.eq.s32.totalorder %s41, 5
      %p102 = por %p100, %p101
      %p104 = scmp.ne.s32.totalorder %s87, %s103
      %p105 = scmp.eq.s32.totalorder %s41, 0
      %p106 = por %p104, %p105
      %s108 = sadd.s32 %s107, 1
      %p111 = scmp.eq.s32.totalorder %s35, 5
      %p112 = scmp.ne.s32.totalorder %s107, %s109
      %p113 = scmp.eq.s32.totalorder %s35, 0
      %p114 = por %p112, %p113
      %p115 = scmp.ne.s32.totalorder %s107, %s109
      %p116 = scmp.eq.s32.totalorder %s40, 5
      %p117 = por %p115, %p116
      %p118 = scmp.ne.s32.totalorder %s109, %s110
      %p119 = scmp.eq.s32.totalorder %s40, 0
      %p120 = por %p118, %p119
      %p121 = scmp.ne.s32.totalorder %s109, %s110
      %p122 = scmp.eq.s32.totalorder %s41, 5
      %p123 = por %p121, %p122
      %p125 = scmp.ne.s32.totalorder %s110, %s124
      %p126 = scmp.eq.s32.totalorder %s41, 0
      %p127 = por %p125, %p126
      %s129 = sadd.s32 %s128, 1
      %p132 = scmp.eq.s32.totalorder %s35, 5
      %p133 = scmp.ne.s32.totalorder %s128, %s130
      %p134 = scmp.eq.s32.totalorder %s35, 0
      %p135 = por %p133, %p134
      %p136 = scmp.ne.s32.totalorder %s128, %s130
      %p137 = scmp.eq.s32.totalorder %s40, 5
      %p138 = por %p136, %p137
      %p139 = scmp.ne.s32.totalorder %s130, %s131
      %p140 = scmp.eq.s32.totalorder %s40, 0
      %p141 = por %p139, %p140
      %p142 = scmp.ne.s32.totalorder %s130, %s131
      %p143 = scmp.eq.s32.totalorder %s41, 5
      %p144 = por %p142, %p143
      %p146 = scmp.ne.s32.totalorder %s131, %s145
      %p147 = scmp.eq.s32.totalorder %s41, 0
      %p148 = por %p146, %p147
      %s150 = sadd.s32 %s149, 1
      %p153 = scmp.eq.s32.totalorder %s35, 5
      %p154 = scmp.ne.s32.totalorder %s149, %s151
      %p155 = scmp.eq.s32.totalorder %s35, 0
      %p156 = por %p154, %p155
      %p157 = scmp.ne.s32.totalorder %s149, %s151
      %p158 = scmp.eq.s32.totalorder %s40, 5
      %p159 = por %p157, %p158
      %p160 = scmp.ne.s32.totalorder %s151, %s152
      %p161 = scmp.eq.s32.totalorder %s40, 0
      %p162 = por %p160, %p161
      %p163 = scmp.ne.s32.totalorder %s151, %s152
      %p164 = scmp.eq.s32.totalorder %s41, 5
      %p165 = por %p163, %p164
      %p167 = scmp.ne.s32.totalorder %s152, %s166
      %p168 = scmp.eq.s32.totalorder %s41, 0
      %p169 = por %p167, %p168
      %s171 = sadd.s32 %s170, 1
      %p174 = scmp.eq.s32.totalorder %s35, 5
      %p175 = scmp.ne.s32.totalorder %s170, %s172
      %p176 = scmp.eq.s32.totalorder %s35, 0
      %p177 = por %p175, %p176
      %p178 = scmp.ne.s32.totalorder %s170, %s172
      %p179 = scmp.eq.s32.totalorder %s40, 5
      %p180 = por %p178, %p179
      %p181 = scmp.ne.s32.totalorder %s172, %s173
      %p182 = scmp.eq.s32.totalorder %s40, 0
      %p183 = por %p181, %p182
      %p184 = scmp.ne.s32.totalorder %s172, %s173
      %p185 = scmp.eq.s32.totalorder %s41, 5
      %p186 = por %p184, %p185
      %p188 = scmp.ne.s32.totalorder %s173, %s187
      %p189 = scmp.eq.s32.totalorder %s41, 0
      %p190 = por %p188, %p189
      %s192 = sadd.s32 %s191, 1
      %p195 = scmp.eq.s32.totalorder %s35, 5
      %p196 = scmp.ne.s32.totalorder %s191, %s193
      %p197 = scmp.eq.s32.totalorder %s35, 0
      %p198 = por %p196, %p197
      %p199 = scmp.ne.s32.totalorder %s191, %s193
      %p200 = scmp.eq.s32.totalorder %s40, 5
      %p201 = por %p199, %p200
      %p202 = scmp.ne.s32.totalorder %s193, %s194
      %p203 = scmp.eq.s32.totalorder %s40, 0
      %p204 = por %p202, %p203
      %p205 = scmp.ne.s32.totalorder %s193, %s194
      %p206 = scmp.eq.s32.totalorder %s41, 5
      %p207 = por %p205, %p206
      %p209 = scmp.ne.s32.totalorder %s194, %s208
      %p210 = scmp.eq.s32.totalorder %s41, 0
      %p211 = por %p209, %p210
      %s213 = sadd.s32 %s212, 1
      %p216 = scmp.eq.s32.totalorder %s35, 5
      %p217 = scmp.ne.s32.totalorder %s212, %s214
      %p218 = scmp.eq.s32.totalorder %s35, 0
      %p219 = por %p217, %p218
      %p220 = scmp.ne.s32.totalorder %s212, %s214
      %p221 = scmp.eq.s32.totalorder %s40, 5
      %p222 = por %p220, %p221
      %p223 = scmp.ne.s32.totalorder %s214, %s215
      %p224 = scmp.eq.s32.totalorder %s40, 0
      %p225 = por %p223, %p224
      %p226 = scmp.ne.s32.totalorder %s214, %s215
      %p227 = scmp.eq.s32.totalorder %s41, 5
      %p228 = por %p226, %p227
      %p230 = scmp.ne.s32.totalorder %s215, %s229
      %p231 = scmp.eq.s32.totalorder %s41, 0
      %p232 = por %p230, %p231
      %s234 = sadd.s32 %s233, 1
      %p237 = scmp.eq.s32.totalorder %s35, 5
      %p238 = scmp.ne.s32.totalorder %s233, %s235
      %p239 = scmp.eq.s32.totalorder %s35, 0
      %p240 = por %p238, %p239
      %p241 = scmp.ne.s32.totalorder %s233, %s235
      %p242 = scmp.eq.s32.totalorder %s40, 5
      %p243 = por %p241, %p242
      %p244 = scmp.ne.s32.totalorder %s235, %s236
      %p245 = scmp.eq.s32.totalorder %s40, 0
      %p246 = por %p244, %p245
      %p247 = scmp.ne.s32.totalorder %s235, %s236
      %p248 = scmp.eq.s32.totalorder %s41, 5
      %p249 = por %p247, %p248
      %p251 = scmp.ne.s32.totalorder %s236, %s250
      %p252 = scmp.eq.s32.totalorder %s41, 0
      %p253 = por %p251, %p252
      %s255 = sadd.s32 %s254, 1
      %p258 = scmp.eq.s32.totalorder %s35, 5
      %p259 = scmp.ne.s32.totalorder %s254, %s256
      %p260 = scmp.eq.s32.totalorder %s35, 0
      %p261 = por %p259, %p260
      %p262 = scmp.ne.s32.totalorder %s254, %s256
      %p263 = scmp.eq.s32.totalorder %s40, 5
      %p264 = por %p262, %p263
      %p265 = scmp.ne.s32.totalorder %s256, %s257
      %p266 = scmp.eq.s32.totalorder %s40, 0
      %p267 = por %p265, %p266
      %p268 = scmp.ne.s32.totalorder %s256, %s257
      %p269 = scmp.eq.s32.totalorder %s41, 5
      %p270 = por %p268, %p269
      %p272 = scmp.ne.s32.totalorder %s257, %s271
      %p273 = scmp.eq.s32.totalorder %s41, 0
      %p274 = por %p272, %p273
      %s276 = sadd.s32 %s275, 1
      %p279 = scmp.eq.s32.totalorder %s35, 5
      %p280 = scmp.ne.s32.totalorder %s275, %s277
      %p281 = scmp.eq.s32.totalorder %s35, 0
      %p282 = por %p280, %p281
      %p283 = scmp.ne.s32.totalorder %s275, %s277
      %p284 = scmp.eq.s32.totalorder %s40, 5
      %p285 = por %p283, %p284
      %p286 = scmp.ne.s32.totalorder %s277, %s278
      %p287 = scmp.eq.s32.totalorder %s40, 0
      %p288 = por %p286, %p287
      %p289 = scmp.ne.s32.totalorder %s277, %s278
      %p290 = scmp.eq.s32.totalorder %s41, 5
      %p291 = por %p289, %p290
      %p293 = scmp.ne.s32.totalorder %s278, %s292
      %p294 = scmp.eq.s32.totalorder %s41, 0
      %p295 = por %p293, %p294
      %s296 = ssub.s32 %s42, %s54
      %p297 = scmp.eq.s32.totalorder %s296, 0
      %s299 = sadd.s32 %s298, 1
      %s300 = scalar_select %p297, %s298, %s299
      %p303 = pneg %p297
      %p304 = scmp.eq.s32.totalorder %s35, 5
      %p305 = por %p303, %p304
      %p306 = scmp.ne.s32.totalorder %s298, %s301
      %p307 = scmp.eq.s32.totalorder %s35, 0
      %p308 = por %p306, %p307
      %p309 = scmp.ne.s32.totalorder %s298, %s301
      %p310 = scmp.eq.s32.totalorder %s40, 5
      %p311 = por %p309, %p310
      %p312 = scmp.ne.s32.totalorder %s301, %s302
      %p313 = scmp.eq.s32.totalorder %s40, 0
      %p314 = por %p312, %p313
      %p315 = scmp.ne.s32.totalorder %s301, %s302
      %p316 = scmp.eq.s32.totalorder %s41, 5
      %p317 = por %p315, %p316
      %p319 = scmp.ne.s32.totalorder %s302, %s318
      %p320 = scmp.eq.s32.totalorder %s41, 0
      %p321 = por %p319, %p320
      %s322 = ssub.s32 %s42, %s54
      %p323 = scmp.eq.s32.totalorder %s322, 0
      %s325 = sadd.s32 %s324, 1
      %s326 = scalar_select %p323, %s324, %s325
      %p329 = pneg %p323
      %p330 = scmp.eq.s32.totalorder %s35, 5
      %p331 = por %p329, %p330
      %p332 = scmp.ne.s32.totalorder %s324, %s327
      %p333 = scmp.eq.s32.totalorder %s35, 0
      %p334 = por %p332, %p333
      %p335 = scmp.ne.s32.totalorder %s324, %s327
      %p336 = scmp.eq.s32.totalorder %s40, 5
      %p337 = por %p335, %p336
      %p338 = scmp.ne.s32.totalorder %s327, %s328
      %p339 = scmp.eq.s32.totalorder %s40, 0
      %p340 = por %p338, %p339
      %p341 = scmp.ne.s32.totalorder %s327, %s328
      %p342 = scmp.eq.s32.totalorder %s41, 5
      %p343 = por %p341, %p342
      %p345 = scmp.ne.s32.totalorder %s328, %s344
      %p346 = scmp.eq.s32.totalorder %s41, 0
      %p347 = por %p345, %p346
      %s348 = ssub.s32 %s43, %s50
      %s349 = ssub.s32 %s42, %s54
      %s350 = sor.u32 %s348, %s349
      %p351 = scmp.eq.s32.totalorder %s350, 0
      %s353 = sadd.s32 %s352, 1
      %s354 = scalar_select %p351, %s352, %s353
      %p357 = pneg %p351
      %p358 = scmp.eq.s32.totalorder %s35, 5
      %p359 = por %p357, %p358
      %p360 = scmp.ne.s32.totalorder %s352, %s355
      %p361 = scmp.eq.s32.totalorder %s35, 0
      %p362 = por %p360, %p361
      %p363 = scmp.ne.s32.totalorder %s352, %s355
      %p364 = scmp.eq.s32.totalorder %s40, 5
      %p365 = por %p363, %p364
      %p366 = scmp.ne.s32.totalorder %s355, %s356
      %p367 = scmp.eq.s32.totalorder %s40, 0
      %p368 = por %p366, %p367
      %p369 = scmp.ne.s32.totalorder %s355, %s356
      %p370 = scmp.eq.s32.totalorder %s41, 5
      %p371 = por %p369, %p370
      %p373 = scmp.ne.s32.totalorder %s356, %s372
      %p374 = scmp.eq.s32.totalorder %s41, 0
      %p375 = por %p373, %p374
      %s376 = ssub.s32 %s43, %s50
      %s377 = ssub.s32 %s42, %s54
      %s378 = sor.u32 %s376, %s377
      %p379 = scmp.eq.s32.totalorder %s378, 0
      %s381 = sadd.s32 %s380, 1
      %s382 = scalar_select %p379, %s380, %s381
      %p385 = pneg %p379
      %p386 = scmp.eq.s32.totalorder %s35, 5
      %p387 = por %p385, %p386
      %p388 = scmp.ne.s32.totalorder %s380, %s383
      %p389 = scmp.eq.s32.totalorder %s35, 0
      %p390 = por %p388, %p389
      %p391 = scmp.ne.s32.totalorder %s380, %s383
      %p392 = scmp.eq.s32.totalorder %s40, 5
      %p393 = por %p391, %p392
      %p394 = scmp.ne.s32.totalorder %s383, %s384
      %p395 = scmp.eq.s32.totalorder %s40, 0
      %p396 = por %p394, %p395
      %p397 = scmp.ne.s32.totalorder %s383, %s384
      %p398 = scmp.eq.s32.totalorder %s41, 5
      %p399 = por %p397, %p398
      %p401 = scmp.ne.s32.totalorder %s384, %s400
      %p402 = scmp.eq.s32.totalorder %s41, 0
      %p403 = por %p401, %p402
      %s404 = ssub.s32 %s43, %s50
      %s405 = ssub.s32 %s42, %s54
      %s406 = sor.u32 %s404, %s405
      %p407 = scmp.eq.s32.totalorder %s406, 0
      %s409 = sadd.s32 %s408, 1
      %s410 = scalar_select %p407, %s408, %s409
      %p413 = pneg %p407
      %p414 = scmp.eq.s32.totalorder %s35, 5
      %p415 = por %p413, %p414
      %p416 = scmp.ne.s32.totalorder %s408, %s411
      %p417 = scmp.eq.s32.totalorder %s35, 0
      %p418 = por %p416, %p417
      %p419 = scmp.ne.s32.totalorder %s408, %s411
      %p420 = scmp.eq.s32.totalorder %s40, 5
      %p421 = por %p419, %p420
      %p422 = scmp.ne.s32.totalorder %s411, %s412
      %p423 = scmp.eq.s32.totalorder %s40, 0
      %p424 = por %p422, %p423
      %p425 = scmp.ne.s32.totalorder %s411, %s412
      %p426 = scmp.eq.s32.totalorder %s41, 5
      %p427 = por %p425, %p426
      %p429 = scmp.ne.s32.totalorder %s412, %s428
      %p430 = scmp.eq.s32.totalorder %s41, 0
      %p431 = por %p429, %p430
      %p432 = scmp.le.s32.totalorder 1, %s35
      %p433 = scmp.lt.s32.totalorder %s35, 7
      %p434 = pnand %p432, %p433
      %p435 = pneg %p434
      // Predicated region
      $region9: #{tpu_custom_call.1} parent=5 // pred_check
        _
      $region10: #{tpu_custom_call.1} parent=5 // pred_check_branch
        %437 = sbr.rel (%p434) target = $region12
      $region11: #{tpu_custom_call.1} parent=5 // pred_region
        %s438 = ssub.s32 %s35, 1
        // Predicated region
        $region13: #{tpu_custom_call.1} parent=11 // pred_check
          %p439 = pneg %p120
        $region14: #{tpu_custom_call.1} parent=11 // pred_check_branch
          %441 = sbr.rel (%p439) target = $region16
        $region15: #{tpu_custom_call.1} parent=11 // pred_region
          %443 = vsyncadd [#allocation7], 0
          %s444 = sshll.u32 %s2, 4
          %s445 = int_to_ptr.hbm [resolvable:$true] %s444
          %s446 = sshll.u32 [#allocation6], 4
          %s447 = int_to_ptr.vmem [resolvable:$true] %s446
          %452 = dma.hbm_to_vmem [thread:$0]  %s445, 32768, %s447, [#allocation7], 512, 512, 32
        $region16: #{tpu_custom_call.1} parent=11 // pred_fallthru
          _
        // Predicated region
        $region17: #{tpu_custom_call.1} parent=11 // pred_check
          %p453 = pneg %p141
        $region18: #{tpu_custom_call.1} parent=11 // pred_check_branch
          %455 = sbr.rel (%p453) target = $region20
        $region19: #{tpu_custom_call.1} parent=11 // pred_region
          %457 = vsyncadd [#allocation10], 0
          %s459 = sshll.u32 %s3, 4
          %s460 = int_to_ptr.hbm [resolvable:$true] %s459
          %s461 = sshll.u32 [#allocation9], 4
          %s462 = int_to_ptr.vmem [resolvable:$true] %s461
          %464 = dma.hbm_to_vmem [thread:$0]  %s460, 128, %s462, [#allocation10]
        $region20: #{tpu_custom_call.1} parent=11 // pred_fallthru
          _
        // Predicated region
        $region21: #{tpu_custom_call.1} parent=11 // pred_check
          %p465 = pneg %p162
        $region22: #{tpu_custom_call.1} parent=11 // pred_check_branch
          %467 = sbr.rel (%p465) target = $region24
        $region23: #{tpu_custom_call.1} parent=11 // pred_region
          %469 = vsyncadd [#allocation10], 0
          %s470 = sshll.u32 %s4, 4
          %s471 = int_to_ptr.hbm [resolvable:$true] %s470
          %s472 = sshll.u32 [#allocation11], 4
          %s473 = int_to_ptr.vmem [resolvable:$true] %s472
          %478 = dma.hbm_to_vmem [thread:$0]  %s471, 8192, %s473, [#allocation10], 512, 512, 32
        $region24: #{tpu_custom_call.1} parent=11 // pred_fallthru
          _
        // Predicated region
        $region25: #{tpu_custom_call.1} parent=11 // pred_check
          %p479 = pneg %p183
        $region26: #{tpu_custom_call.1} parent=11 // pred_check_branch
          %481 = sbr.rel (%p479) target = $region28
        $region27: #{tpu_custom_call.1} parent=11 // pred_region
          %483 = vsyncadd [#allocation13], 0
          %s484 = sshll.u32 %s5, 4
          %s485 = int_to_ptr.hbm [resolvable:$true] %s484
          %s486 = sshll.u32 [#allocation12], 4
          %s487 = int_to_ptr.vmem [resolvable:$true] %s486
          %492 = dma.hbm_to_vmem [thread:$0]  %s485, 1024, %s487, [#allocation13], 64, 64, 4
        $region28: #{tpu_custom_call.1} parent=11 // pred_fallthru
          _
        // Predicated region
        $region29: #{tpu_custom_call.1} parent=11 // pred_check
          %p493 = pneg %p204
        $region30: #{tpu_custom_call.1} parent=11 // pred_check_branch
          %495 = sbr.rel (%p493) target = $region32
        $region31: #{tpu_custom_call.1} parent=11 // pred_region
          _
        $region32: #{tpu_custom_call.1} parent=11 // pred_fallthru
          _
        // Predicated region
        $region33: #{tpu_custom_call.1} parent=11 // pred_check
          %p496 = pneg %p225
        $region34: #{tpu_custom_call.1} parent=11 // pred_check_branch
          %498 = sbr.rel (%p496) target = $region36
        $region35: #{tpu_custom_call.1} parent=11 // pred_region
          %500 = vsyncadd [#allocation13], 0
          %s501 = sshll.u32 %s7, 4
          %s502 = int_to_ptr.hbm [resolvable:$true] %s501
          %s503 = sshll.u32 [#allocation14], 4
          %s504 = int_to_ptr.vmem [resolvable:$true] %s503
          %509 = dma.hbm_to_vmem [thread:$0]  %s502, 4096, %s504, [#allocation13], 128, 128, 8
        $region36: #{tpu_custom_call.1} parent=11 // pred_fallthru
          _
        // Predicated region
        $region37: #{tpu_custom_call.1} parent=11 // pred_check
          %p510 = pneg %p246
        $region38: #{tpu_custom_call.1} parent=11 // pred_check_branch
          %512 = sbr.rel (%p510) target = $region40
        $region39: #{tpu_custom_call.1} parent=11 // pred_region
          _
        $region40: #{tpu_custom_call.1} parent=11 // pred_fallthru
          _
        // Predicated region
        $region41: #{tpu_custom_call.1} parent=11 // pred_check
          %p513 = pneg %p267
        $region42: #{tpu_custom_call.1} parent=11 // pred_check_branch
          %515 = sbr.rel (%p513) target = $region44
        $region43: #{tpu_custom_call.1} parent=11 // pred_region
          %517 = vsyncadd [#allocation16], 0
          %s518 = sshll.u32 %s9, 4
          %s519 = int_to_ptr.hbm [resolvable:$true] %s518
          %s520 = sshll.u32 [#allocation15], 4
          %s521 = int_to_ptr.vmem [resolvable:$true] %s520
          %526 = dma.hbm_to_vmem [thread:$0]  %s519, 2048, %s521, [#allocation16], 64, 64, 4
        $region44: #{tpu_custom_call.1} parent=11 // pred_fallthru
          _
        // Predicated region
        $region45: #{tpu_custom_call.1} parent=11 // pred_check
          %p527 = pneg %p288
        $region46: #{tpu_custom_call.1} parent=11 // pred_check_branch
          %529 = sbr.rel (%p527) target = $region48
        $region47: #{tpu_custom_call.1} parent=11 // pred_region
          _
        $region48: #{tpu_custom_call.1} parent=11 // pred_fallthru
          _
      $region12: #{tpu_custom_call.1} parent=5 // pred_fallthru
        _
      %p530 = scmp.lt.s32.totalorder %s35, 6
      // Predicated region
      $region49: #{tpu_custom_call.1} parent=5 // pred_check
        %p531 = pneg %p530
      $region50: #{tpu_custom_call.1} parent=5 // pred_check_branch
        %533 = sbr.rel (%p531) target = $region52
      $region51: #{tpu_custom_call.1} parent=5 // pred_region
        // Predicated region
        $region53: #{tpu_custom_call.1} parent=51 // pred_check
          %p534 = pneg %p67
        $region54: #{tpu_custom_call.1} parent=51 // pred_check_branch
          %536 = sbr.rel (%p534) target = $region56
        $region55: #{tpu_custom_call.1} parent=51 // pred_region
          %p537 = scmp.lt.s32.totalorder %s42, 1
          %s538 = scalar_select %p537, %s42, 1
          %s539 = smul.addr %s538, 8
          %s540 = scalar_lea.vmem %s0, %s539
        $region56: #{tpu_custom_call.1} parent=51 // pred_fallthru
          _
        // Predicated region
        $region57: #{tpu_custom_call.1} parent=51 // pred_check
          %p541 = pneg %p93
        $region58: #{tpu_custom_call.1} parent=51 // pred_check_branch
          %543 = sbr.rel (%p541) target = $region60
        $region59: #{tpu_custom_call.1} parent=51 // pred_region
          %p544 = scmp.lt.s32.totalorder %s42, 1
          %s545 = scalar_select %p544, %s42, 1
          %s546 = smul.addr %s545, 8
          %s547 = scalar_lea.vmem %s1, %s546
        $region60: #{tpu_custom_call.1} parent=51 // pred_fallthru
          _
      $region52: #{tpu_custom_call.1} parent=5 // pred_fallthru
        _
      %p548 = scmp.le.s32.totalorder 1, %s35
      %p549 = scmp.lt.s32.totalorder %s35, 7
      %p550 = pnand %p548, %p549
      %p551 = pneg %p550
      // Predicated region
      $region61: #{tpu_custom_call.1} parent=5 // pred_check
        _
      $region62: #{tpu_custom_call.1} parent=5 // pred_check_branch
        %553 = sbr.rel (%p550) target = $region64
      $region63: #{tpu_custom_call.1} parent=5 // pred_region
        %s554 = ssub.s32 %s35, 1
        // Predicated region
        $region65: #{tpu_custom_call.1} parent=63 // pred_check
          %p555 = pneg %p120
        $region66: #{tpu_custom_call.1} parent=63 // pred_check_branch
          %557 = sbr.rel (%p555) target = $region68
        $region67: #{tpu_custom_call.1} parent=63 // pred_region
          %559 = dma.done [#allocation7], 32768
        $region68: #{tpu_custom_call.1} parent=63 // pred_fallthru
          _
        // Predicated region
        $region69: #{tpu_custom_call.1} parent=63 // pred_check
          %p560 = pneg %p141
        $region70: #{tpu_custom_call.1} parent=63 // pred_check_branch
          %562 = sbr.rel (%p560) target = $region72
        $region71: #{tpu_custom_call.1} parent=63 // pred_region
          %564 = dma.done [#allocation10], 128
        $region72: #{tpu_custom_call.1} parent=63 // pred_fallthru
          _
        // Predicated region
        $region73: #{tpu_custom_call.1} parent=63 // pred_check
          %p565 = pneg %p162
        $region74: #{tpu_custom_call.1} parent=63 // pred_check_branch
          %567 = sbr.rel (%p565) target = $region76
        $region75: #{tpu_custom_call.1} parent=63 // pred_region
          %569 = dma.done [#allocation10], 8192
        $region76: #{tpu_custom_call.1} parent=63 // pred_fallthru
          _
        // Predicated region
        $region77: #{tpu_custom_call.1} parent=63 // pred_check
          %p570 = pneg %p183
        $region78: #{tpu_custom_call.1} parent=63 // pred_check_branch
          %572 = sbr.rel (%p570) target = $region80
        $region79: #{tpu_custom_call.1} parent=63 // pred_region
          %574 = dma.done [#allocation13], 1024
        $region80: #{tpu_custom_call.1} parent=63 // pred_fallthru
          _
        // Predicated region
        $region81: #{tpu_custom_call.1} parent=63 // pred_check
          %p575 = pneg %p225
        $region82: #{tpu_custom_call.1} parent=63 // pred_check_branch
          %577 = sbr.rel (%p575) target = $region84
        $region83: #{tpu_custom_call.1} parent=63 // pred_region
          %579 = dma.done [#allocation13], 4096
        $region84: #{tpu_custom_call.1} parent=63 // pred_fallthru
          _
        // Predicated region
        $region85: #{tpu_custom_call.1} parent=63 // pred_check
          %p580 = pneg %p267
        $region86: #{tpu_custom_call.1} parent=63 // pred_check_branch
          %582 = sbr.rel (%p580) target = $region88
        $region87: #{tpu_custom_call.1} parent=63 // pred_region
          %584 = dma.done [#allocation16], 2048
        $region88: #{tpu_custom_call.1} parent=63 // pred_fallthru
          _
        %p585 = scmp.lt.s32.totalorder %s44, 1
        %s586 = scalar_select %p585, %s44, 1
        %s587 = smul.addr %s586, 8
        %s588 = scalar_lea.vmem %s0, %s587
        %p589 = pneg %p73
        %p590 = pneg %p70
        %p591 = scmp.lt.s32.totalorder %s44, 1
        %s592 = scalar_select %p591, %s44, 1
        %s593 = smul.addr %s592, 8
        %s594 = scalar_lea.vmem %s1, %s593
        %p595 = pneg %p99
        %p596 = pneg %p96
        %p597 = pneg %p120
        %p598 = pneg %p117
        %p599 = pneg %p141
        %p600 = pneg %p138
        %p601 = pneg %p162
        %p602 = pneg %p159
        %p603 = pneg %p183
        %p604 = pneg %p180
        %p605 = pneg %p204
        %p606 = pneg %p201
        %p607 = pneg %p225
        %p608 = pneg %p222
        %p609 = pneg %p246
        %p610 = pneg %p243
        %p611 = pneg %p267
        %p612 = pneg %p264
        %p613 = pneg %p288
        %p614 = pneg %p285
        %p615 = pneg %p314
        %p616 = pneg %p311
        %s617 = sand.u32 %s301, 1
        %s618 = scalar_lea.sflag [#allocation8], %s617
        %s619 = sand.u32 %s301, 1
        %s620 = smul.addr %s619, 8
        %s621 = scalar_lea.vmem [#allocation17], %s620
        %p622 = pneg %p340
        %p623 = pneg %p337
        %s624 = sand.u32 %s40, 1
        %s625 = scalar_lea.sflag [#allocation19], %s624
        %s626 = sand.u32 %s327, 1
        %s627 = smul.addr %s626, 8
        %s628 = scalar_lea.vmem [#allocation18], %s627
        %p629 = pneg %p368
        %p630 = pneg %p365
        %s631 = sand.u32 %s40, 1
        %s632 = scalar_lea.sflag [#allocation19], %s631
        %s633 = sand.u32 %s355, 1
        %s634 = scalar_lea.vmem [#allocation20], %s633
        %p635 = pneg %p396
        %p636 = pneg %p393
        %s637 = sand.u32 %s40, 1
        %s638 = scalar_lea.sflag [#allocation22], %s637
        %s639 = sand.u32 %s383, 1
        %s640 = scalar_lea.vmem [#allocation21], %s639
        %p641 = pneg %p424
        %p642 = pneg %p421
        %s643 = sand.u32 %s40, 1
        %s644 = scalar_lea.sflag [#allocation22], %s643
        %s645 = sand.u32 %s411, 1
        %s646 = smul.addr %s645, 8
        %s647 = scalar_lea.vmem [#allocation23], %s646
        %p648 = scmp.lt.s32.totalorder %s44, 1
        %s649 = scalar_select %p648, %s44, 1
        %s650 = smul.addr %s649, 8
        %s651 = scalar_lea.vmem %s0, %s650
        %p652 = scmp.lt.s32.totalorder %s44, 1
        %s653 = scalar_select %p652, %s44, 1
        %s654 = smul.addr %s653, 8
        %s655 = scalar_lea.vmem %s1, %s654
        %v656 = vld [vmem:[%s651] sm:$0xff]
        %v657 = vsub.f32 1.0, %v656
        %v658 = vmul.f32 %v656, -1e+25
        %vm659 = vcmask 7168
        %v660 = vsel %vm659, %v657, 0.0
        %v661 = vrot.slane %v660, 4
        %v662 = vadd.f32 %v660, %v661
        %v663 = vrot.slane %v662, 2
        %v664 = vadd.f32 %v662, %v663
        %v665 = vrot.slane %v664, 1
        %v666 = vadd.f32 %v664, %v665
        %v667 = vmax.f32 %v666, 1.0
        %v668 = vrcp.pop %v667
        %p669 = scmp.eq.s32.totalorder %s45, 0
        // Predicated region
        $region89: #{tpu_custom_call.1} parent=63 // pred_check
          %p670 = pneg %p669
        $region90: #{tpu_custom_call.1} parent=63 // pred_check_branch
          %672 = sbr.rel (%p670) target = $region92
        $region91: #{tpu_custom_call.1} parent=63 // pred_region
          %v673 = vld [vmem:[%s655] sm:$0xff]
          %675 = vset.pattern.permute.xlu0 0
          %676 = vperm.xlu0 %675, %v657
          %v677 = vpop.permute.xlu0 %676
          %v679 = vmul.f32 %v673, %v677
          %680 = vst [vmem:[%s621] sm:$0xff] %v679
          %681 = vst [vmem:[%s628] sm:$0xff] %v679
          %v682 = vrot.slane %v679, 4
          %v683 = vadd.f32 %v679, %v682
          %v684 = vrot.slane %v683, 2
          %v685 = vadd.f32 %v683, %v684
          %v686 = vrot.slane %v685, 1
          %v687 = vadd.f32 %v685, %v686
          %689 = vset.pattern.permute.xlu0 0
          %690 = vperm.xlu0 %689, %v668
          %v691 = vpop.permute.xlu0 %690
          %v693 = vmul.f32 %v687, %v691
          %694 = vst [vmem:[#allocation2] sm:$0x1] %v693
          %695 = vst [vmem:[#allocation3] sm:$0x1] %v693
          %v696 = vpack.c.bf16 %v679, %v679
          %v697 = vld [vmem:[#allocation11] sm:$0xff]
          %v698 = vld [vmem:[#allocation11 + $0x8] sm:$0xff]
          %v699 = vld [vmem:[#allocation11 + $0x10] sm:$0xff]
          %v700 = vld [vmem:[#allocation11 + $0x18] sm:$0xff]
          %v701 = vld [vmem:[#allocation11 + $0x20] sm:$0xff]
          %v702 = vld [vmem:[#allocation11 + $0x28] sm:$0xff]
          %v703 = vld [vmem:[#allocation11 + $0x30] sm:$0xff]
          %v704 = vld [vmem:[#allocation11 + $0x38] sm:$0xff]
          %v705 = vld [vmem:[#allocation11 + $0x40] sm:$0xff]
          %v706 = vld [vmem:[#allocation11 + $0x48] sm:$0xff]
          %v707 = vld [vmem:[#allocation11 + $0x50] sm:$0xff]
          %v708 = vld [vmem:[#allocation11 + $0x58] sm:$0xff]
          %v709 = vld [vmem:[#allocation11 + $0x60] sm:$0xff]
          %v710 = vld [vmem:[#allocation11 + $0x68] sm:$0xff]
          %v711 = vld [vmem:[#allocation11 + $0x70] sm:$0xff]
          %v712 = vld [vmem:[#allocation11 + $0x78] sm:$0xff]
          %v713 = vld [vmem:[#allocation11 + $0x80] sm:$0xff]
          %v714 = vld [vmem:[#allocation11 + $0x88] sm:$0xff]
          %v715 = vld [vmem:[#allocation11 + $0x90] sm:$0xff]
          %v716 = vld [vmem:[#allocation11 + $0x98] sm:$0xff]
          %v717 = vld [vmem:[#allocation11 + $0xa0] sm:$0xff]
          %v718 = vld [vmem:[#allocation11 + $0xa8] sm:$0xff]
          %v719 = vld [vmem:[#allocation11 + $0xb0] sm:$0xff]
          %v720 = vld [vmem:[#allocation11 + $0xb8] sm:$0xff]
          %v721 = vld [vmem:[#allocation11 + $0xc0] sm:$0xff]
          %v722 = vld [vmem:[#allocation11 + $0xc8] sm:$0xff]
          %v723 = vld [vmem:[#allocation11 + $0xd0] sm:$0xff]
          %v724 = vld [vmem:[#allocation11 + $0xd8] sm:$0xff]
          %v725 = vld [vmem:[#allocation11 + $0xe0] sm:$0xff]
          %v726 = vld [vmem:[#allocation11 + $0xe8] sm:$0xff]
          %v727 = vld [vmem:[#allocation11 + $0xf0] sm:$0xff]
          %v728 = vld [vmem:[#allocation11 + $0xf8] sm:$0xff]
          %v729 = vld [vmem:[#allocation11 + $0x100] sm:$0xff]
          %v730 = vld [vmem:[#allocation11 + $0x108] sm:$0xff]
          %v731 = vld [vmem:[#allocation11 + $0x110] sm:$0xff]
          %v732 = vld [vmem:[#allocation11 + $0x118] sm:$0xff]
          %v733 = vld [vmem:[#allocation11 + $0x120] sm:$0xff]
          %v734 = vld [vmem:[#allocation11 + $0x128] sm:$0xff]
          %v735 = vld [vmem:[#allocation11 + $0x130] sm:$0xff]
          %v736 = vld [vmem:[#allocation11 + $0x138] sm:$0xff]
          %v737 = vld [vmem:[#allocation11 + $0x140] sm:$0xff]
          %v738 = vld [vmem:[#allocation11 + $0x148] sm:$0xff]
          %v739 = vld [vmem:[#allocation11 + $0x150] sm:$0xff]
          %v740 = vld [vmem:[#allocation11 + $0x158] sm:$0xff]
          %v741 = vld [vmem:[#allocation11 + $0x160] sm:$0xff]
          %v742 = vld [vmem:[#allocation11 + $0x168] sm:$0xff]
          %v743 = vld [vmem:[#allocation11 + $0x170] sm:$0xff]
          %v744 = vld [vmem:[#allocation11 + $0x178] sm:$0xff]
          %v745 = vld [vmem:[#allocation11 + $0x180] sm:$0xff]
          %v746 = vld [vmem:[#allocation11 + $0x188] sm:$0xff]
          %v747 = vld [vmem:[#allocation11 + $0x190] sm:$0xff]
          %v748 = vld [vmem:[#allocation11 + $0x198] sm:$0xff]
          %v749 = vld [vmem:[#allocation11 + $0x1a0] sm:$0xff]
          %v750 = vld [vmem:[#allocation11 + $0x1a8] sm:$0xff]
          %v751 = vld [vmem:[#allocation11 + $0x1b0] sm:$0xff]
          %v752 = vld [vmem:[#allocation11 + $0x1b8] sm:$0xff]
          %v753 = vld [vmem:[#allocation11 + $0x1c0] sm:$0xff]
          %v754 = vld [vmem:[#allocation11 + $0x1c8] sm:$0xff]
          %v755 = vld [vmem:[#allocation11 + $0x1d0] sm:$0xff]
          %v756 = vld [vmem:[#allocation11 + $0x1d8] sm:$0xff]
          %v757 = vld [vmem:[#allocation11 + $0x1e0] sm:$0xff]
          %v758 = vld [vmem:[#allocation11 + $0x1e8] sm:$0xff]
          %v759 = vld [vmem:[#allocation11 + $0x1f0] sm:$0xff]
          %v760 = vld [vmem:[#allocation11 + $0x1f8] sm:$0xff]
          %v825 = vunpack.c.l.b16 %v697
          %v826 = vunpack.c.h.b16 %v697
          %v827 = vunpack.c.l.b16 %v698
          %v828 = vunpack.c.h.b16 %v698
          %v829 = vunpack.c.l.b16 %v699
          %v830 = vunpack.c.h.b16 %v699
          %v831 = vunpack.c.l.b16 %v700
          %v832 = vunpack.c.h.b16 %v700
          %v833 = vunpack.c.l.b16 %v701
          %v834 = vunpack.c.h.b16 %v701
          %v835 = vunpack.c.l.b16 %v702
          %v836 = vunpack.c.h.b16 %v702
          %v837 = vunpack.c.l.b16 %v703
          %v838 = vunpack.c.h.b16 %v703
          %v839 = vunpack.c.l.b16 %v704
          %v840 = vunpack.c.h.b16 %v704
          %v841 = vunpack.c.l.b16 %v705
          %v842 = vunpack.c.h.b16 %v705
          %v843 = vunpack.c.l.b16 %v706
          %v844 = vunpack.c.h.b16 %v706
          %v845 = vunpack.c.l.b16 %v707
          %v846 = vunpack.c.h.b16 %v707
          %v847 = vunpack.c.l.b16 %v708
          %v848 = vunpack.c.h.b16 %v708
          %v849 = vunpack.c.l.b16 %v709
          %v850 = vunpack.c.h.b16 %v709
          %v851 = vunpack.c.l.b16 %v710
          %v852 = vunpack.c.h.b16 %v710
          %v853 = vunpack.c.l.b16 %v711
          %v854 = vunpack.c.h.b16 %v711
          %v855 = vunpack.c.l.b16 %v712
          %v856 = vunpack.c.h.b16 %v712
          %v857 = vunpack.c.l.b16 %v713
          %v858 = vunpack.c.h.b16 %v713
          %v859 = vunpack.c.l.b16 %v714
          %v860 = vunpack.c.h.b16 %v714
          %v861 = vunpack.c.l.b16 %v715
          %v862 = vunpack.c.h.b16 %v715
          %v863 = vunpack.c.l.b16 %v716
          %v864 = vunpack.c.h.b16 %v716
          %v865 = vunpack.c.l.b16 %v717
          %v866 = vunpack.c.h.b16 %v717
          %v867 = vunpack.c.l.b16 %v718
          %v868 = vunpack.c.h.b16 %v718
          %v869 = vunpack.c.l.b16 %v719
          %v870 = vunpack.c.h.b16 %v719
          %v871 = vunpack.c.l.b16 %v720
          %v872 = vunpack.c.h.b16 %v720
          %v873 = vunpack.c.l.b16 %v721
          %v874 = vunpack.c.h.b16 %v721
          %v875 = vunpack.c.l.b16 %v722
          %v876 = vunpack.c.h.b16 %v722
          %v877 = vunpack.c.l.b16 %v723
          %v878 = vunpack.c.h.b16 %v723
          %v879 = vunpack.c.l.b16 %v724
          %v880 = vunpack.c.h.b16 %v724
          %v881 = vunpack.c.l.b16 %v725
          %v882 = vunpack.c.h.b16 %v725
          %v883 = vunpack.c.l.b16 %v726
          %v884 = vunpack.c.h.b16 %v726
          %v885 = vunpack.c.l.b16 %v727
          %v886 = vunpack.c.h.b16 %v727
          %v887 = vunpack.c.l.b16 %v728
          %v888 = vunpack.c.h.b16 %v728
          %v889 = vunpack.c.l.b16 %v729
          %v890 = vunpack.c.h.b16 %v729
          %v891 = vunpack.c.l.b16 %v730
          %v892 = vunpack.c.h.b16 %v730
          %v893 = vunpack.c.l.b16 %v731
          %v894 = vunpack.c.h.b16 %v731
          %v895 = vunpack.c.l.b16 %v732
          %v896 = vunpack.c.h.b16 %v732
          %v897 = vunpack.c.l.b16 %v733
          %v898 = vunpack.c.h.b16 %v733
          %v899 = vunpack.c.l.b16 %v734
          %v900 = vunpack.c.h.b16 %v734
          %v901 = vunpack.c.l.b16 %v735
          %v902 = vunpack.c.h.b16 %v735
          %v903 = vunpack.c.l.b16 %v736
          %v904 = vunpack.c.h.b16 %v736
          %v905 = vunpack.c.l.b16 %v737
          %v906 = vunpack.c.h.b16 %v737
          %v907 = vunpack.c.l.b16 %v738
          %v908 = vunpack.c.h.b16 %v738
          %v909 = vunpack.c.l.b16 %v739
          %v910 = vunpack.c.h.b16 %v739
          %v911 = vunpack.c.l.b16 %v740
          %v912 = vunpack.c.h.b16 %v740
          %v913 = vunpack.c.l.b16 %v741
          %v914 = vunpack.c.h.b16 %v741
          %v915 = vunpack.c.l.b16 %v742
          %v916 = vunpack.c.h.b16 %v742
          %v917 = vunpack.c.l.b16 %v743
          %v918 = vunpack.c.h.b16 %v743
          %v919 = vunpack.c.l.b16 %v744
          %v920 = vunpack.c.h.b16 %v744
          %v921 = vunpack.c.l.b16 %v745
          %v922 = vunpack.c.h.b16 %v745
          %v923 = vunpack.c.l.b16 %v746
          %v924 = vunpack.c.h.b16 %v746
          %v925 = vunpack.c.l.b16 %v747
          %v926 = vunpack.c.h.b16 %v747
          %v927 = vunpack.c.l.b16 %v748
          %v928 = vunpack.c.h.b16 %v748
          %v929 = vunpack.c.l.b16 %v749
          %v930 = vunpack.c.h.b16 %v749
          %v931 = vunpack.c.l.b16 %v750
          %v932 = vunpack.c.h.b16 %v750
          %v933 = vunpack.c.l.b16 %v751
          %v934 = vunpack.c.h.b16 %v751
          %v935 = vunpack.c.l.b16 %v752
          %v936 = vunpack.c.h.b16 %v752
          %v937 = vunpack.c.l.b16 %v753
          %v938 = vunpack.c.h.b16 %v753
          %v939 = vunpack.c.l.b16 %v754
          %v940 = vunpack.c.h.b16 %v754
          %v941 = vunpack.c.l.b16 %v755
          %v942 = vunpack.c.h.b16 %v755
          %v943 = vunpack.c.l.b16 %v756
          %v944 = vunpack.c.h.b16 %v756
          %v945 = vunpack.c.l.b16 %v757
          %v946 = vunpack.c.h.b16 %v757
          %v947 = vunpack.c.l.b16 %v758
          %v948 = vunpack.c.h.b16 %v758
          %v949 = vunpack.c.l.b16 %v759
          %v950 = vunpack.c.h.b16 %v759
          %v951 = vunpack.c.l.b16 %v760
          %v952 = vunpack.c.h.b16 %v760
          %v953 = vpack.c.b16 %v833, %v825
          %v954 = vpack.c.b16 %v834, %v826
          %v955 = vpack.c.b16 %v835, %v827
          %v956 = vpack.c.b16 %v836, %v828
          %v957 = vpack.c.b16 %v837, %v829
          %v958 = vpack.c.b16 %v838, %v830
          %v959 = vpack.c.b16 %v839, %v831
          %v960 = vpack.c.b16 %v840, %v832
          %v961 = vpack.c.b16 %v849, %v841
          %v962 = vpack.c.b16 %v850, %v842
          %v963 = vpack.c.b16 %v851, %v843
          %v964 = vpack.c.b16 %v852, %v844
          %v965 = vpack.c.b16 %v853, %v845
          %v966 = vpack.c.b16 %v854, %v846
          %v967 = vpack.c.b16 %v855, %v847
          %v968 = vpack.c.b16 %v856, %v848
          %v969 = vpack.c.b16 %v865, %v857
          %v970 = vpack.c.b16 %v866, %v858
          %v971 = vpack.c.b16 %v867, %v859
          %v972 = vpack.c.b16 %v868, %v860
          %v973 = vpack.c.b16 %v869, %v861
          %v974 = vpack.c.b16 %v870, %v862
          %v975 = vpack.c.b16 %v871, %v863
          %v976 = vpack.c.b16 %v872, %v864
          %v977 = vpack.c.b16 %v881, %v873
          %v978 = vpack.c.b16 %v882, %v874
          %v979 = vpack.c.b16 %v883, %v875
          %v980 = vpack.c.b16 %v884, %v876
          %v981 = vpack.c.b16 %v885, %v877
          %v982 = vpack.c.b16 %v886, %v878
          %v983 = vpack.c.b16 %v887, %v879
          %v984 = vpack.c.b16 %v888, %v880
          %v985 = vpack.c.b16 %v897, %v889
          %v986 = vpack.c.b16 %v898, %v890
          %v987 = vpack.c.b16 %v899, %v891
          %v988 = vpack.c.b16 %v900, %v892
          %v989 = vpack.c.b16 %v901, %v893
          %v990 = vpack.c.b16 %v902, %v894
          %v991 = vpack.c.b16 %v903, %v895
          %v992 = vpack.c.b16 %v904, %v896
          %v993 = vpack.c.b16 %v913, %v905
          %v994 = vpack.c.b16 %v914, %v906
          %v995 = vpack.c.b16 %v915, %v907
          %v996 = vpack.c.b16 %v916, %v908
          %v997 = vpack.c.b16 %v917, %v909
          %v998 = vpack.c.b16 %v918, %v910
          %v999 = vpack.c.b16 %v919, %v911
          %v1000 = vpack.c.b16 %v920, %v912
          %v1001 = vpack.c.b16 %v929, %v921
          %v1002 = vpack.c.b16 %v930, %v922
          %v1003 = vpack.c.b16 %v931, %v923
          %v1004 = vpack.c.b16 %v932, %v924
          %v1005 = vpack.c.b16 %v933, %v925
          %v1006 = vpack.c.b16 %v934, %v926
          %v1007 = vpack.c.b16 %v935, %v927
          %v1008 = vpack.c.b16 %v936, %v928
          %v1009 = vpack.c.b16 %v945, %v937
          %v1010 = vpack.c.b16 %v946, %v938
          %v1011 = vpack.c.b16 %v947, %v939
          %v1012 = vpack.c.b16 %v948, %v940
          %v1013 = vpack.c.b16 %v949, %v941
          %v1014 = vpack.c.b16 %v950, %v942
          %v1015 = vpack.c.b16 %v951, %v943
          %v1016 = vpack.c.b16 %v952, %v944
          %1081 = vmatpush.bf16.msra.mxu0 %v1009
          %1082 = vmatpush.bf16.msra.mxu0 %v1001
          %1083 = vmatpush.bf16.msra.mxu0 %v993
          %1084 = vmatpush.bf16.msra.mxu0 %v985
          %1085 = vmatpush.bf16.msra.mxu0 %v977
          %1086 = vmatpush.bf16.msra.mxu0 %v969
          %1087 = vmatpush.bf16.msra.mxu0 %v961
          %1088 = vmatpush.bf16.msra.mxu0 %v953
          %1089 = vmatmul.bf16.gmra.mxu0 %v696
          %v1090 = vpop.f32.mrf.mxu0
          %v1091 = vadd.f32 0.0, %v1090
          %v1092 = vpop.f32.mrf.mxu0
          %1093 = vdwg.mxu0
          %1094 = vmatpush.bf16.msra.mxu0 %v1010
          %1095 = vmatpush.bf16.msra.mxu0 %v1002
          %1096 = vmatpush.bf16.msra.mxu0 %v994
          %1097 = vmatpush.bf16.msra.mxu0 %v986
          %1098 = vmatpush.bf16.msra.mxu0 %v978
          %1099 = vmatpush.bf16.msra.mxu0 %v970
          %1100 = vmatpush.bf16.msra.mxu0 %v962
          %1101 = vmatpush.bf16.msra.mxu0 %v954
          %1102 = vmatmul.bf16.gmra.mxu0 %v696
          %v1103 = vpop.f32.mrf.mxu0
          %v1104 = vadd.f32 0.0, %v1103
          %v1105 = vpop.f32.mrf.mxu0
          %1106 = vdwg.mxu0
          %1107 = vmatpush.bf16.msra.mxu0 %v1011
          %1108 = vmatpush.bf16.msra.mxu0 %v1003
          %1109 = vmatpush.bf16.msra.mxu0 %v995
          %1110 = vmatpush.bf16.msra.mxu0 %v987
          %1111 = vmatpush.bf16.msra.mxu0 %v979
          %1112 = vmatpush.bf16.msra.mxu0 %v971
          %1113 = vmatpush.bf16.msra.mxu0 %v963
          %1114 = vmatpush.bf16.msra.mxu0 %v955
          %1115 = vmatmul.bf16.gmra.mxu0 %v696
          %v1116 = vpop.f32.mrf.mxu0
          %v1117 = vadd.f32 0.0, %v1116
          %v1118 = vpop.f32.mrf.mxu0
          %1119 = vdwg.mxu0
          %1120 = vmatpush.bf16.msra.mxu0 %v1012
          %1121 = vmatpush.bf16.msra.mxu0 %v1004
          %1122 = vmatpush.bf16.msra.mxu0 %v996
          %1123 = vmatpush.bf16.msra.mxu0 %v988
          %1124 = vmatpush.bf16.msra.mxu0 %v980
          %1125 = vmatpush.bf16.msra.mxu0 %v972
          %1126 = vmatpush.bf16.msra.mxu0 %v964
          %1127 = vmatpush.bf16.msra.mxu0 %v956
          %1128 = vmatmul.bf16.gmra.mxu0 %v696
          %v1129 = vpop.f32.mrf.mxu0
          %v1130 = vadd.f32 0.0, %v1129
          %v1131 = vpop.f32.mrf.mxu0
          %1132 = vdwg.mxu0
          %1133 = vmatpush.bf16.msra.mxu0 %v1013
          %1134 = vmatpush.bf16.msra.mxu0 %v1005
          %1135 = vmatpush.bf16.msra.mxu0 %v997
          %1136 = vmatpush.bf16.msra.mxu0 %v989
          %1137 = vmatpush.bf16.msra.mxu0 %v981
          %1138 = vmatpush.bf16.msra.mxu0 %v973
          %1139 = vmatpush.bf16.msra.mxu0 %v965
          %1140 = vmatpush.bf16.msra.mxu0 %v957
          %1141 = vmatmul.bf16.gmra.mxu0 %v696
          %v1142 = vpop.f32.mrf.mxu0
          %v1143 = vadd.f32 0.0, %v1142
          %v1144 = vpop.f32.mrf.mxu0
          %1145 = vdwg.mxu0
          %1146 = vmatpush.bf16.msra.mxu0 %v1014
          %1147 = vmatpush.bf16.msra.mxu0 %v1006
          %1148 = vmatpush.bf16.msra.mxu0 %v998
          %1149 = vmatpush.bf16.msra.mxu0 %v990
          %1150 = vmatpush.bf16.msra.mxu0 %v982
          %1151 = vmatpush.bf16.msra.mxu0 %v974
          %1152 = vmatpush.bf16.msra.mxu0 %v966
          %1153 = vmatpush.bf16.msra.mxu0 %v958
          %1154 = vmatmul.bf16.gmra.mxu0 %v696
          %v1155 = vpop.f32.mrf.mxu0
          %v1156 = vadd.f32 0.0, %v1155
          %v1157 = vpop.f32.mrf.mxu0
          %1158 = vdwg.mxu0
          %1159 = vmatpush.bf16.msra.mxu0 %v1015
          %1160 = vmatpush.bf16.msra.mxu0 %v1007
          %1161 = vmatpush.bf16.msra.mxu0 %v999
          %1162 = vmatpush.bf16.msra.mxu0 %v991
          %1163 = vmatpush.bf16.msra.mxu0 %v983
          %1164 = vmatpush.bf16.msra.mxu0 %v975
          %1165 = vmatpush.bf16.msra.mxu0 %v967
          %1166 = vmatpush.bf16.msra.mxu0 %v959
          %1167 = vmatmul.bf16.gmra.mxu0 %v696
          %v1168 = vpop.f32.mrf.mxu0
          %v1169 = vadd.f32 0.0, %v1168
          %v1170 = vpop.f32.mrf.mxu0
          %1171 = vdwg.mxu0
          %1172 = vmatpush.bf16.msra.mxu0 %v1016
          %1173 = vmatpush.bf16.msra.mxu0 %v1008
          %1174 = vmatpush.bf16.msra.mxu0 %v1000
          %1175 = vmatpush.bf16.msra.mxu0 %v992
          %1176 = vmatpush.bf16.msra.mxu0 %v984
          %1177 = vmatpush.bf16.msra.mxu0 %v976
          %1178 = vmatpush.bf16.msra.mxu0 %v968
          %1179 = vmatpush.bf16.msra.mxu0 %v960
          %1180 = vmatmul.bf16.gmra.mxu0 %v696
          %v1181 = vpop.f32.mrf.mxu0
          %v1182 = vadd.f32 0.0, %v1181
          %v1183 = vpop.f32.mrf.mxu0
          %1184 = vdwg.mxu0
          %1185 = vst [vmem:[#allocation4] sm:$0xff] %v1091
          %1186 = vst [vmem:[#allocation4 + $0x8] sm:$0xff] %v1104
          %1187 = vst [vmem:[#allocation4 + $0x10] sm:$0xff] %v1117
          %1188 = vst [vmem:[#allocation4 + $0x18] sm:$0xff] %v1130
          %1189 = vst [vmem:[#allocation4 + $0x20] sm:$0xff] %v1143
          %1190 = vst [vmem:[#allocation4 + $0x28] sm:$0xff] %v1156
          %1191 = vst [vmem:[#allocation4 + $0x30] sm:$0xff] %v1169
          %1192 = vst [vmem:[#allocation4 + $0x38] sm:$0xff] %v1182
          %v1193 = vld [vmem:[#allocation12] sm:$0xf]
          %v1194 = vld [vmem:[#allocation12 + $0x4] sm:$0xf]
          %v1195 = vld [vmem:[#allocation12 + $0x8] sm:$0xf]
          %v1196 = vld [vmem:[#allocation12 + $0xc] sm:$0xf]
          %v1197 = vld [vmem:[#allocation12 + $0x10] sm:$0xf]
          %v1198 = vld [vmem:[#allocation12 + $0x14] sm:$0xf]
          %v1199 = vld [vmem:[#allocation12 + $0x18] sm:$0xf]
          %v1200 = vld [vmem:[#allocation12 + $0x1c] sm:$0xf]
          %v1201 = vld [vmem:[#allocation12 + $0x20] sm:$0xf]
          %v1202 = vld [vmem:[#allocation12 + $0x24] sm:$0xf]
          %v1203 = vld [vmem:[#allocation12 + $0x28] sm:$0xf]
          %v1204 = vld [vmem:[#allocation12 + $0x2c] sm:$0xf]
          %v1205 = vld [vmem:[#allocation12 + $0x30] sm:$0xf]
          %v1206 = vld [vmem:[#allocation12 + $0x34] sm:$0xf]
          %v1207 = vld [vmem:[#allocation12 + $0x38] sm:$0xf]
          %v1208 = vld [vmem:[#allocation12 + $0x3c] sm:$0xf]
          %v1209 = vld [vmem:[%s6] sm:$0x1]
          %v1211 = vperm.slane %v1209, 0
          %v1229 = vunpack.c.l.b16 %v1193
          %v1230 = vunpack.c.l.b16 %v1194
          %v1231 = vunpack.c.l.b16 %v1195
          %v1232 = vunpack.c.l.b16 %v1196
          %v1233 = vunpack.c.l.b16 %v1197
          %v1234 = vunpack.c.l.b16 %v1198
          %v1235 = vunpack.c.l.b16 %v1199
          %v1236 = vunpack.c.l.b16 %v1200
          %v1237 = vunpack.c.l.b16 %v1201
          %v1238 = vunpack.c.l.b16 %v1202
          %v1239 = vunpack.c.l.b16 %v1203
          %v1240 = vunpack.c.l.b16 %v1204
          %v1241 = vunpack.c.l.b16 %v1205
          %v1242 = vunpack.c.l.b16 %v1206
          %v1243 = vunpack.c.l.b16 %v1207
          %v1244 = vunpack.c.l.b16 %v1208
          %v1245 = vpack.c.b16 %v1230, %v1229
          %v1246 = vpack.c.b16 %v1232, %v1231
          %v1247 = vpack.c.b16 %v1234, %v1233
          %v1248 = vpack.c.b16 %v1236, %v1235
          %v1249 = vpack.c.b16 %v1238, %v1237
          %v1250 = vpack.c.b16 %v1240, %v1239
          %v1251 = vpack.c.b16 %v1242, %v1241
          %v1252 = vpack.c.b16 %v1244, %v1243
          %1261 = vmatpush.bf16.msra.mxu0 %v1252
          %1262 = vmatpush.bf16.msra.mxu0 %v1251
          %1263 = vmatpush.bf16.msra.mxu0 %v1250
          %1264 = vmatpush.bf16.msra.mxu0 %v1249
          %1265 = vmatpush.bf16.msra.mxu0 %v1248
          %1266 = vmatpush.bf16.msra.mxu0 %v1247
          %1267 = vmatpush.bf16.msra.mxu0 %v1246
          %1268 = vmatpush.bf16.msra.mxu0 %v1245
          %1269 = vmatmul.bf16.gmra.mxu0 %v696
          %v1270 = vpop.f32.mrf.mxu0
          %v1271 = vadd.f32 %v1211, %v1270
          %v1272 = vpop.f32.mrf.mxu0
          %1273 = vdwg.mxu0
          %v1274 = vtanh.pop %v1271
          %1275 = vst [vmem:[#allocation5] sm:$0xff] %v1274
        $region92: #{tpu_custom_call.1} parent=63 // pred_fallthru
          _
        %v1276 = vld [vmem:[%s621] sm:$0xff]
        %v1277 = vld [vmem:[%s628] sm:$0xff]
        %v1278 = vld [vmem:[#allocation2] sm:$0x1]
        %v1279 = vld [vmem:[#allocation3] sm:$0x1]
        %v1280 = vlaneseq
        %v1281 = vshrl.u32 %v1280, 7
        %v1282 = vrot.slane %v1281, 7
        %v1283 = vrot.slane %v1276, 7
        %v1284 = vrot.slane %v1277, 7
        %v1285 = vsub.s32 %v1281, %v1282
        %vm1286 = vcmp.eq.s32.totalorder %v1285, 1
        %v1287 = vsub.s32 %v1282, %v1281
        %vm1288 = vcmp.eq.s32.totalorder %v1287, 1
        %v1289 = vsel %vm1286, %v1283, 0.0
        %v1290 = vadd.f32 %v1289, 0.0
        %v1291 = vsel %vm1288, %v1283, 0.0
        %v1292 = vadd.f32 %v1291, 0.0
        %v1293 = vsel %vm1286, %v1284, 0.0
        %v1294 = vadd.f32 %v1293, 0.0
        %v1295 = vsel %vm1288, %v1284, 0.0
        %v1296 = vadd.f32 %v1295, 0.0
        %v1297 = vrot.slane %v1281, 1
        %v1298 = vrot.slane %v1276, 1
        %v1299 = vrot.slane %v1277, 1
        %v1300 = vsub.s32 %v1281, %v1297
        %vm1301 = vcmp.eq.s32.totalorder %v1300, 1
        %v1302 = vsub.s32 %v1297, %v1281
        %vm1303 = vcmp.eq.s32.totalorder %v1302, 1
        %v1304 = vsel %vm1301, %v1298, 0.0
        %v1305 = vadd.f32 %v1290, %v1304
        %v1306 = vsel %vm1303, %v1298, 0.0
        %v1307 = vadd.f32 %v1292, %v1306
        %v1308 = vsel %vm1301, %v1299, 0.0
        %v1309 = vadd.f32 %v1294, %v1308
        %v1310 = vsel %vm1303, %v1299, 0.0
        %v1311 = vadd.f32 %v1296, %v1310
        %v1312 = vrot.slane %v1281, 6
        %v1313 = vrot.slane %v1276, 6
        %v1314 = vrot.slane %v1277, 6
        %v1315 = vsub.s32 %v1281, %v1312
        %vm1316 = vcmp.eq.s32.totalorder %v1315, 2
        %v1317 = vsub.s32 %v1312, %v1281
        %vm1318 = vcmp.eq.s32.totalorder %v1317, 2
        %v1319 = vsel %vm1316, %v1313, 0.0
        %v1320 = vadd.f32 %v1305, %v1319
        %v1321 = vsel %vm1318, %v1313, 0.0
        %v1322 = vadd.f32 %v1307, %v1321
        %v1323 = vsel %vm1316, %v1314, 0.0
        %v1324 = vadd.f32 %v1309, %v1323
        %v1325 = vsel %vm1318, %v1314, 0.0
        %v1326 = vadd.f32 %v1311, %v1325
        %v1327 = vrot.slane %v1281, 2
        %v1328 = vrot.slane %v1276, 2
        %v1329 = vrot.slane %v1277, 2
        %v1330 = vsub.s32 %v1281, %v1327
        %vm1331 = vcmp.eq.s32.totalorder %v1330, 2
        %v1332 = vsub.s32 %v1327, %v1281
        %vm1333 = vcmp.eq.s32.totalorder %v1332, 2
        %v1334 = vsel %vm1331, %v1328, 0.0
        %v1335 = vadd.f32 %v1320, %v1334
        %v1336 = vsel %vm1333, %v1328, 0.0
        %v1337 = vadd.f32 %v1322, %v1336
        %v1338 = vsel %vm1331, %v1329, 0.0
        %v1339 = vadd.f32 %v1324, %v1338
        %v1340 = vsel %vm1333, %v1329, 0.0
        %v1341 = vadd.f32 %v1326, %v1340
        %1343 = vset.pattern.permute.xlu0 0
        %1344 = vperm.xlu0 %1343, %v657
        %v1345 = vpop.permute.xlu0 %1344
        %v1347 = vmul.f32 %v1335, %v1345
        %v1348 = vmul.f32 %v1337, %v1345
        %v1349 = vmul.f32 %v1339, %v1345
        %v1350 = vmul.f32 %v1341, %v1345
        %v1351 = vpack.c.bf16 %v1276, %v1276
        %v1352 = vpack.c.bf16 %v1347, %v1347
        %v1353 = vpack.c.bf16 %v1348, %v1348
        %v1354 = vld [vmem:[#allocation6] sm:$0xff]
        %v1355 = vld [vmem:[#allocation6 + $0x8] sm:$0xff]
        %v1356 = vld [vmem:[#allocation6 + $0x10] sm:$0xff]
        %v1357 = vld [vmem:[#allocation6 + $0x18] sm:$0xff]
        %v1358 = vld [vmem:[#allocation6 + $0x20] sm:$0xff]
        %v1359 = vld [vmem:[#allocation6 + $0x28] sm:$0xff]
        %v1360 = vld [vmem:[#allocation6 + $0x30] sm:$0xff]
        %v1361 = vld [vmem:[#allocation6 + $0x38] sm:$0xff]
        %v1362 = vld [vmem:[#allocation6 + $0x40] sm:$0xff]
        %v1363 = vld [vmem:[#allocation6 + $0x48] sm:$0xff]
        %v1364 = vld [vmem:[#allocation6 + $0x50] sm:$0xff]
        %v1365 = vld [vmem:[#allocation6 + $0x58] sm:$0xff]
        %v1366 = vld [vmem:[#allocation6 + $0x60] sm:$0xff]
        %v1367 = vld [vmem:[#allocation6 + $0x68] sm:$0xff]
        %v1368 = vld [vmem:[#allocation6 + $0x70] sm:$0xff]
        %v1369 = vld [vmem:[#allocation6 + $0x78] sm:$0xff]
        %v1370 = vld [vmem:[#allocation6 + $0x80] sm:$0xff]
        %v1371 = vld [vmem:[#allocation6 + $0x88] sm:$0xff]
        %v1372 = vld [vmem:[#allocation6 + $0x90] sm:$0xff]
        %v1373 = vld [vmem:[#allocation6 + $0x98] sm:$0xff]
        %v1374 = vld [vmem:[#allocation6 + $0xa0] sm:$0xff]
        %v1375 = vld [vmem:[#allocation6 + $0xa8] sm:$0xff]
        %v1376 = vld [vmem:[#allocation6 + $0xb0] sm:$0xff]
        %v1377 = vld [vmem:[#allocation6 + $0xb8] sm:$0xff]
        %v1378 = vld [vmem:[#allocation6 + $0xc0] sm:$0xff]
        %v1379 = vld [vmem:[#allocation6 + $0xc8] sm:$0xff]
        %v1380 = vld [vmem:[#allocation6 + $0xd0] sm:$0xff]
        %v1381 = vld [vmem:[#allocation6 + $0xd8] sm:$0xff]
        %v1382 = vld [vmem:[#allocation6 + $0xe0] sm:$0xff]
        %v1383 = vld [vmem:[#allocation6 + $0xe8] sm:$0xff]
        %v1384 = vld [vmem:[#allocation6 + $0xf0] sm:$0xff]
        %v1385 = vld [vmem:[#allocation6 + $0xf8] sm:$0xff]
        %v1386 = vld [vmem:[#allocation6 + $0x100] sm:$0xff]
        %v1387 = vld [vmem:[#allocation6 + $0x108] sm:$0xff]
        %v1388 = vld [vmem:[#allocation6 + $0x110] sm:$0xff]
        %v1389 = vld [vmem:[#allocation6 + $0x118] sm:$0xff]
        %v1390 = vld [vmem:[#allocation6 + $0x120] sm:$0xff]
        %v1391 = vld [vmem:[#allocation6 + $0x128] sm:$0xff]
        %v1392 = vld [vmem:[#allocation6 + $0x130] sm:$0xff]
        %v1393 = vld [vmem:[#allocation6 + $0x138] sm:$0xff]
        %v1394 = vld [vmem:[#allocation6 + $0x140] sm:$0xff]
        %v1395 = vld [vmem:[#allocation6 + $0x148] sm:$0xff]
        %v1396 = vld [vmem:[#allocation6 + $0x150] sm:$0xff]
        %v1397 = vld [vmem:[#allocation6 + $0x158] sm:$0xff]
        %v1398 = vld [vmem:[#allocation6 + $0x160] sm:$0xff]
        %v1399 = vld [vmem:[#allocation6 + $0x168] sm:$0xff]
        %v1400 = vld [vmem:[#allocation6 + $0x170] sm:$0xff]
        %v1401 = vld [vmem:[#allocation6 + $0x178] sm:$0xff]
        %v1402 = vld [vmem:[#allocation6 + $0x180] sm:$0xff]
        %v1403 = vld [vmem:[#allocation6 + $0x188] sm:$0xff]
        %v1404 = vld [vmem:[#allocation6 + $0x190] sm:$0xff]
        %v1405 = vld [vmem:[#allocation6 + $0x198] sm:$0xff]
        %v1406 = vld [vmem:[#allocation6 + $0x1a0] sm:$0xff]
        %v1407 = vld [vmem:[#allocation6 + $0x1a8] sm:$0xff]
        %v1408 = vld [vmem:[#allocation6 + $0x1b0] sm:$0xff]
        %v1409 = vld [vmem:[#allocation6 + $0x1b8] sm:$0xff]
        %v1410 = vld [vmem:[#allocation6 + $0x1c0] sm:$0xff]
        %v1411 = vld [vmem:[#allocation6 + $0x1c8] sm:$0xff]
        %v1412 = vld [vmem:[#allocation6 + $0x1d0] sm:$0xff]
        %v1413 = vld [vmem:[#allocation6 + $0x1d8] sm:$0xff]
        %v1414 = vld [vmem:[#allocation6 + $0x1e0] sm:$0xff]
        %v1415 = vld [vmem:[#allocation6 + $0x1e8] sm:$0xff]
        %v1416 = vld [vmem:[#allocation6 + $0x1f0] sm:$0xff]
        %v1417 = vld [vmem:[#allocation6 + $0x1f8] sm:$0xff]
        %v1418 = vld [vmem:[#allocation6 + $0x200] sm:$0xff]
        %v1419 = vld [vmem:[#allocation6 + $0x208] sm:$0xff]
        %v1420 = vld [vmem:[#allocation6 + $0x210] sm:$0xff]
        %v1421 = vld [vmem:[#allocation6 + $0x218] sm:$0xff]
        %v1422 = vld [vmem:[#allocation6 + $0x220] sm:$0xff]
        %v1423 = vld [vmem:[#allocation6 + $0x228] sm:$0xff]
        %v1424 = vld [vmem:[#allocation6 + $0x230] sm:$0xff]
        %v1425 = vld [vmem:[#allocation6 + $0x238] sm:$0xff]
        %v1426 = vld [vmem:[#allocation6 + $0x240] sm:$0xff]
        %v1427 = vld [vmem:[#allocation6 + $0x248] sm:$0xff]
        %v1428 = vld [vmem:[#allocation6 + $0x250] sm:$0xff]
        %v1429 = vld [vmem:[#allocation6 + $0x258] sm:$0xff]
        %v1430 = vld [vmem:[#allocation6 + $0x260] sm:$0xff]
        %v1431 = vld [vmem:[#allocation6 + $0x268] sm:$0xff]
        %v1432 = vld [vmem:[#allocation6 + $0x270] sm:$0xff]
        %v1433 = vld [vmem:[#allocation6 + $0x278] sm:$0xff]
        %v1434 = vld [vmem:[#allocation6 + $0x280] sm:$0xff]
        %v1435 = vld [vmem:[#allocation6 + $0x288] sm:$0xff]
        %v1436 = vld [vmem:[#allocation6 + $0x290] sm:$0xff]
        %v1437 = vld [vmem:[#allocation6 + $0x298] sm:$0xff]
        %v1438 = vld [vmem:[#allocation6 + $0x2a0] sm:$0xff]
        %v1439 = vld [vmem:[#allocation6 + $0x2a8] sm:$0xff]
        %v1440 = vld [vmem:[#allocation6 + $0x2b0] sm:$0xff]
        %v1441 = vld [vmem:[#allocation6 + $0x2b8] sm:$0xff]
        %v1442 = vld [vmem:[#allocation6 + $0x2c0] sm:$0xff]
        %v1443 = vld [vmem:[#allocation6 + $0x2c8] sm:$0xff]
        %v1444 = vld [vmem:[#allocation6 + $0x2d0] sm:$0xff]
        %v1445 = vld [vmem:[#allocation6 + $0x2d8] sm:$0xff]
        %v1446 = vld [vmem:[#allocation6 + $0x2e0] sm:$0xff]
        %v1447 = vld [vmem:[#allocation6 + $0x2e8] sm:$0xff]
        %v1448 = vld [vmem:[#allocation6 + $0x2f0] sm:$0xff]
        %v1449 = vld [vmem:[#allocation6 + $0x2f8] sm:$0xff]
        %v1450 = vld [vmem:[#allocation6 + $0x300] sm:$0xff]
        %v1451 = vld [vmem:[#allocation6 + $0x308] sm:$0xff]
        %v1452 = vld [vmem:[#allocation6 + $0x310] sm:$0xff]
        %v1453 = vld [vmem:[#allocation6 + $0x318] sm:$0xff]
        %v1454 = vld [vmem:[#allocation6 + $0x320] sm:$0xff]
        %v1455 = vld [vmem:[#allocation6 + $0x328] sm:$0xff]
        %v1456 = vld [vmem:[#allocation6 + $0x330] sm:$0xff]
        %v1457 = vld [vmem:[#allocation6 + $0x338] sm:$0xff]
        %v1458 = vld [vmem:[#allocation6 + $0x340] sm:$0xff]
        %v1459 = vld [vmem:[#allocation6 + $0x348] sm:$0xff]
        %v1460 = vld [vmem:[#allocation6 + $0x350] sm:$0xff]
        %v1461 = vld [vmem:[#allocation6 + $0x358] sm:$0xff]
        %v1462 = vld [vmem:[#allocation6 + $0x360] sm:$0xff]
        %v1463 = vld [vmem:[#allocation6 + $0x368] sm:$0xff]
        %v1464 = vld [vmem:[#allocation6 + $0x370] sm:$0xff]
        %v1465 = vld [vmem:[#allocation6 + $0x378] sm:$0xff]
        %v1466 = vld [vmem:[#allocation6 + $0x380] sm:$0xff]
        %v1467 = vld [vmem:[#allocation6 + $0x388] sm:$0xff]
        %v1468 = vld [vmem:[#allocation6 + $0x390] sm:$0xff]
        %v1469 = vld [vmem:[#allocation6 + $0x398] sm:$0xff]
        %v1470 = vld [vmem:[#allocation6 + $0x3a0] sm:$0xff]
        %v1471 = vld [vmem:[#allocation6 + $0x3a8] sm:$0xff]
        %v1472 = vld [vmem:[#allocation6 + $0x3b0] sm:$0xff]
        %v1473 = vld [vmem:[#allocation6 + $0x3b8] sm:$0xff]
        %v1474 = vld [vmem:[#allocation6 + $0x3c0] sm:$0xff]
        %v1475 = vld [vmem:[#allocation6 + $0x3c8] sm:$0xff]
        %v1476 = vld [vmem:[#allocation6 + $0x3d0] sm:$0xff]
        %v1477 = vld [vmem:[#allocation6 + $0x3d8] sm:$0xff]
        %v1478 = vld [vmem:[#allocation6 + $0x3e0] sm:$0xff]
        %v1479 = vld [vmem:[#allocation6 + $0x3e8] sm:$0xff]
        %v1480 = vld [vmem:[#allocation6 + $0x3f0] sm:$0xff]
        %v1481 = vld [vmem:[#allocation6 + $0x3f8] sm:$0xff]
        %v1482 = vld [vmem:[#allocation6 + $0x400] sm:$0xff]
        %v1483 = vld [vmem:[#allocation6 + $0x408] sm:$0xff]
        %v1484 = vld [vmem:[#allocation6 + $0x410] sm:$0xff]
        %v1485 = vld [vmem:[#allocation6 + $0x418] sm:$0xff]
        %v1486 = vld [vmem:[#allocation6 + $0x420] sm:$0xff]
        %v1487 = vld [vmem:[#allocation6 + $0x428] sm:$0xff]
        %v1488 = vld [vmem:[#allocation6 + $0x430] sm:$0xff]
        %v1489 = vld [vmem:[#allocation6 + $0x438] sm:$0xff]
        %v1490 = vld [vmem:[#allocation6 + $0x440] sm:$0xff]
        %v1491 = vld [vmem:[#allocation6 + $0x448] sm:$0xff]
        %v1492 = vld [vmem:[#allocation6 + $0x450] sm:$0xff]
        %v1493 = vld [vmem:[#allocation6 + $0x458] sm:$0xff]
        %v1494 = vld [vmem:[#allocation6 + $0x460] sm:$0xff]
        %v1495 = vld [vmem:[#allocation6 + $0x468] sm:$0xff]
        %v1496 = vld [vmem:[#allocation6 + $0x470] sm:$0xff]
        %v1497 = vld [vmem:[#allocation6 + $0x478] sm:$0xff]
        %v1498 = vld [vmem:[#allocation6 + $0x480] sm:$0xff]
        %v1499 = vld [vmem:[#allocation6 + $0x488] sm:$0xff]
        %v1500 = vld [vmem:[#allocation6 + $0x490] sm:$0xff]
        %v1501 = vld [vmem:[#allocation6 + $0x498] sm:$0xff]
        %v1502 = vld [vmem:[#allocation6 + $0x4a0] sm:$0xff]
        %v1503 = vld [vmem:[#allocation6 + $0x4a8] sm:$0xff]
        %v1504 = vld [vmem:[#allocation6 + $0x4b0] sm:$0xff]
        %v1505 = vld [vmem:[#allocation6 + $0x4b8] sm:$0xff]
        %v1506 = vld [vmem:[#allocation6 + $0x4c0] sm:$0xff]
        %v1507 = vld [vmem:[#allocation6 + $0x4c8] sm:$0xff]
        %v1508 = vld [vmem:[#allocation6 + $0x4d0] sm:$0xff]
        %v1509 = vld [vmem:[#allocation6 + $0x4d8] sm:$0xff]
        %v1510 = vld [vmem:[#allocation6 + $0x4e0] sm:$0xff]
        %v1511 = vld [vmem:[#allocation6 + $0x4e8] sm:$0xff]
        %v1512 = vld [vmem:[#allocation6 + $0x4f0] sm:$0xff]
        %v1513 = vld [vmem:[#allocation6 + $0x4f8] sm:$0xff]
        %v1514 = vld [vmem:[#allocation6 + $0x500] sm:$0xff]
        %v1515 = vld [vmem:[#allocation6 + $0x508] sm:$0xff]
        %v1516 = vld [vmem:[#allocation6 + $0x510] sm:$0xff]
        %v1517 = vld [vmem:[#allocation6 + $0x518] sm:$0xff]
        %v1518 = vld [vmem:[#allocation6 + $0x520] sm:$0xff]
        %v1519 = vld [vmem:[#allocation6 + $0x528] sm:$0xff]
        %v1520 = vld [vmem:[#allocation6 + $0x530] sm:$0xff]
        %v1521 = vld [vmem:[#allocation6 + $0x538] sm:$0xff]
        %v1522 = vld [vmem:[#allocation6 + $0x540] sm:$0xff]
        %v1523 = vld [vmem:[#allocation6 + $0x548] sm:$0xff]
        %v1524 = vld [vmem:[#allocation6 + $0x550] sm:$0xff]
        %v1525 = vld [vmem:[#allocation6 + $0x558] sm:$0xff]
        %v1526 = vld [vmem:[#allocation6 + $0x560] sm:$0xff]
        %v1527 = vld [vmem:[#allocation6 + $0x568] sm:$0xff]
        %v1528 = vld [vmem:[#allocation6 + $0x570] sm:$0xff]
        %v1529 = vld [vmem:[#allocation6 + $0x578] sm:$0xff]
        %v1530 = vld [vmem:[#allocation6 + $0x580] sm:$0xff]
        %v1531 = vld [vmem:[#allocation6 + $0x588] sm:$0xff]
        %v1532 = vld [vmem:[#allocation6 + $0x590] sm:$0xff]
        %v1533 = vld [vmem:[#allocation6 + $0x598] sm:$0xff]
        %v1534 = vld [vmem:[#allocation6 + $0x5a0] sm:$0xff]
        %v1535 = vld [vmem:[#allocation6 + $0x5a8] sm:$0xff]
        %v1536 = vld [vmem:[#allocation6 + $0x5b0] sm:$0xff]
        %v1537 = vld [vmem:[#allocation6 + $0x5b8] sm:$0xff]
        %v1538 = vld [vmem:[#allocation6 + $0x5c0] sm:$0xff]
        %v1539 = vld [vmem:[#allocation6 + $0x5c8] sm:$0xff]
        %v1540 = vld [vmem:[#allocation6 + $0x5d0] sm:$0xff]
        %v1541 = vld [vmem:[#allocation6 + $0x5d8] sm:$0xff]
        %v1542 = vld [vmem:[#allocation6 + $0x5e0] sm:$0xff]
        %v1543 = vld [vmem:[#allocation6 + $0x5e8] sm:$0xff]
        %v1544 = vld [vmem:[#allocation6 + $0x5f0] sm:$0xff]
        %v1545 = vld [vmem:[#allocation6 + $0x5f8] sm:$0xff]
        %v1546 = vpack.c.bf16 %v1278, %v1278
        %v1547 = vld [vmem:[#allocation6 + $0x600] sm:$0xff]
        %v1548 = vld [vmem:[#allocation6 + $0x608] sm:$0xff]
        %v1549 = vld [vmem:[#allocation6 + $0x610] sm:$0xff]
        %v1550 = vld [vmem:[#allocation6 + $0x618] sm:$0xff]
        %v1551 = vld [vmem:[#allocation6 + $0x620] sm:$0xff]
        %v1552 = vld [vmem:[#allocation6 + $0x628] sm:$0xff]
        %v1553 = vld [vmem:[#allocation6 + $0x630] sm:$0xff]
        %v1554 = vld [vmem:[#allocation6 + $0x638] sm:$0xff]
        %v1555 = vld [vmem:[#allocation6 + $0x640] sm:$0xff]
        %v1556 = vld [vmem:[#allocation6 + $0x648] sm:$0xff]
        %v1557 = vld [vmem:[#allocation6 + $0x650] sm:$0xff]
        %v1558 = vld [vmem:[#allocation6 + $0x658] sm:$0xff]
        %v1559 = vld [vmem:[#allocation6 + $0x660] sm:$0xff]
        %v1560 = vld [vmem:[#allocation6 + $0x668] sm:$0xff]
        %v1561 = vld [vmem:[#allocation6 + $0x670] sm:$0xff]
        %v1562 = vld [vmem:[#allocation6 + $0x678] sm:$0xff]
        %v1563 = vld [vmem:[#allocation6 + $0x680] sm:$0xff]
        %v1564 = vld [vmem:[#allocation6 + $0x688] sm:$0xff]
        %v1565 = vld [vmem:[#allocation6 + $0x690] sm:$0xff]
        %v1566 = vld [vmem:[#allocation6 + $0x698] sm:$0xff]
        %v1567 = vld [vmem:[#allocation6 + $0x6a0] sm:$0xff]
        %v1568 = vld [vmem:[#allocation6 + $0x6a8] sm:$0xff]
        %v1569 = vld [vmem:[#allocation6 + $0x6b0] sm:$0xff]
        %v1570 = vld [vmem:[#allocation6 + $0x6b8] sm:$0xff]
        %v1571 = vld [vmem:[#allocation6 + $0x6c0] sm:$0xff]
        %v1572 = vld [vmem:[#allocation6 + $0x6c8] sm:$0xff]
        %v1573 = vld [vmem:[#allocation6 + $0x6d0] sm:$0xff]
        %v1574 = vld [vmem:[#allocation6 + $0x6d8] sm:$0xff]
        %v1575 = vld [vmem:[#allocation6 + $0x6e0] sm:$0xff]
        %v1576 = vld [vmem:[#allocation6 + $0x6e8] sm:$0xff]
        %v1577 = vld [vmem:[#allocation6 + $0x6f0] sm:$0xff]
        %v1578 = vld [vmem:[#allocation6 + $0x6f8] sm:$0xff]
        %v1579 = vld [vmem:[#allocation6 + $0x700] sm:$0xff]
        %v1580 = vld [vmem:[#allocation6 + $0x708] sm:$0xff]
        %v1581 = vld [vmem:[#allocation6 + $0x710] sm:$0xff]
        %v1582 = vld [vmem:[#allocation6 + $0x718] sm:$0xff]
        %v1583 = vld [vmem:[#allocation6 + $0x720] sm:$0xff]
        %v1584 = vld [vmem:[#allocation6 + $0x728] sm:$0xff]
        %v1585 = vld [vmem:[#allocation6 + $0x730] sm:$0xff]
        %v1586 = vld [vmem:[#allocation6 + $0x738] sm:$0xff]
        %v1587 = vld [vmem:[#allocation6 + $0x740] sm:$0xff]
        %v1588 = vld [vmem:[#allocation6 + $0x748] sm:$0xff]
        %v1589 = vld [vmem:[#allocation6 + $0x750] sm:$0xff]
        %v1590 = vld [vmem:[#allocation6 + $0x758] sm:$0xff]
        %v1591 = vld [vmem:[#allocation6 + $0x760] sm:$0xff]
        %v1592 = vld [vmem:[#allocation6 + $0x768] sm:$0xff]
        %v1593 = vld [vmem:[#allocation6 + $0x770] sm:$0xff]
        %v1594 = vld [vmem:[#allocation6 + $0x778] sm:$0xff]
        %v1595 = vld [vmem:[#allocation6 + $0x780] sm:$0xff]
        %v1596 = vld [vmem:[#allocation6 + $0x788] sm:$0xff]
        %v1597 = vld [vmem:[#allocation6 + $0x790] sm:$0xff]
        %v1598 = vld [vmem:[#allocation6 + $0x798] sm:$0xff]
        %v1599 = vld [vmem:[#allocation6 + $0x7a0] sm:$0xff]
        %v1600 = vld [vmem:[#allocation6 + $0x7a8] sm:$0xff]
        %v1601 = vld [vmem:[#allocation6 + $0x7b0] sm:$0xff]
        %v1602 = vld [vmem:[#allocation6 + $0x7b8] sm:$0xff]
        %v1603 = vld [vmem:[#allocation6 + $0x7c0] sm:$0xff]
        %v1604 = vld [vmem:[#allocation6 + $0x7c8] sm:$0xff]
        %v1605 = vld [vmem:[#allocation6 + $0x7d0] sm:$0xff]
        %v1606 = vld [vmem:[#allocation6 + $0x7d8] sm:$0xff]
        %v1607 = vld [vmem:[#allocation6 + $0x7e0] sm:$0xff]
        %v1608 = vld [vmem:[#allocation6 + $0x7e8] sm:$0xff]
        %v1609 = vld [vmem:[#allocation6 + $0x7f0] sm:$0xff]
        %v1610 = vld [vmem:[#allocation6 + $0x7f8] sm:$0xff]
        %v1675 = vunpack.c.l.b16 %v1547
        %v1676 = vunpack.c.h.b16 %v1547
        %v1677 = vunpack.c.l.b16 %v1548
        %v1678 = vunpack.c.h.b16 %v1548
        %v1679 = vunpack.c.l.b16 %v1549
        %v1680 = vunpack.c.h.b16 %v1549
        %v1681 = vunpack.c.l.b16 %v1550
        %v1682 = vunpack.c.h.b16 %v1550
        %v1683 = vunpack.c.l.b16 %v1551
        %v1684 = vunpack.c.h.b16 %v1551
        %v1685 = vunpack.c.l.b16 %v1552
        %v1686 = vunpack.c.h.b16 %v1552
        %v1687 = vunpack.c.l.b16 %v1553
        %v1688 = vunpack.c.h.b16 %v1553
        %v1689 = vunpack.c.l.b16 %v1554
        %v1690 = vunpack.c.h.b16 %v1554
        %v1691 = vunpack.c.l.b16 %v1555
        %v1692 = vunpack.c.h.b16 %v1555
        %v1693 = vunpack.c.l.b16 %v1556
        %v1694 = vunpack.c.h.b16 %v1556
        %v1695 = vunpack.c.l.b16 %v1557
        %v1696 = vunpack.c.h.b16 %v1557
        %v1697 = vunpack.c.l.b16 %v1558
        %v1698 = vunpack.c.h.b16 %v1558
        %v1699 = vunpack.c.l.b16 %v1559
        %v1700 = vunpack.c.h.b16 %v1559
        %v1701 = vunpack.c.l.b16 %v1560
        %v1702 = vunpack.c.h.b16 %v1560
        %v1703 = vunpack.c.l.b16 %v1561
        %v1704 = vunpack.c.h.b16 %v1561
        %v1705 = vunpack.c.l.b16 %v1562
        %v1706 = vunpack.c.h.b16 %v1562
        %v1707 = vunpack.c.l.b16 %v1563
        %v1708 = vunpack.c.h.b16 %v1563
        %v1709 = vunpack.c.l.b16 %v1564
        %v1710 = vunpack.c.h.b16 %v1564
        %v1711 = vunpack.c.l.b16 %v1565
        %v1712 = vunpack.c.h.b16 %v1565
        %v1713 = vunpack.c.l.b16 %v1566
        %v1714 = vunpack.c.h.b16 %v1566
        %v1715 = vunpack.c.l.b16 %v1567
        %v1716 = vunpack.c.h.b16 %v1567
        %v1717 = vunpack.c.l.b16 %v1568
        %v1718 = vunpack.c.h.b16 %v1568
        %v1719 = vunpack.c.l.b16 %v1569
        %v1720 = vunpack.c.h.b16 %v1569
        %v1721 = vunpack.c.l.b16 %v1570
        %v1722 = vunpack.c.h.b16 %v1570
        %v1723 = vunpack.c.l.b16 %v1571
        %v1724 = vunpack.c.h.b16 %v1571
        %v1725 = vunpack.c.l.b16 %v1572
        %v1726 = vunpack.c.h.b16 %v1572
        %v1727 = vunpack.c.l.b16 %v1573
        %v1728 = vunpack.c.h.b16 %v1573
        %v1729 = vunpack.c.l.b16 %v1574
        %v1730 = vunpack.c.h.b16 %v1574
        %v1731 = vunpack.c.l.b16 %v1575
        %v1732 = vunpack.c.h.b16 %v1575
        %v1733 = vunpack.c.l.b16 %v1576
        %v1734 = vunpack.c.h.b16 %v1576
        %v1735 = vunpack.c.l.b16 %v1577
        %v1736 = vunpack.c.h.b16 %v1577
        %v1737 = vunpack.c.l.b16 %v1578
        %v1738 = vunpack.c.h.b16 %v1578
        %v1739 = vunpack.c.l.b16 %v1579
        %v1740 = vunpack.c.h.b16 %v1579
        %v1741 = vunpack.c.l.b16 %v1580
        %v1742 = vunpack.c.h.b16 %v1580
        %v1743 = vunpack.c.l.b16 %v1581
        %v1744 = vunpack.c.h.b16 %v1581
        %v1745 = vunpack.c.l.b16 %v1582
        %v1746 = vunpack.c.h.b16 %v1582
        %v1747 = vunpack.c.l.b16 %v1583
        %v1748 = vunpack.c.h.b16 %v1583
        %v1749 = vunpack.c.l.b16 %v1584
        %v1750 = vunpack.c.h.b16 %v1584
        %v1751 = vunpack.c.l.b16 %v1585
        %v1752 = vunpack.c.h.b16 %v1585
        %v1753 = vunpack.c.l.b16 %v1586
        %v1754 = vunpack.c.h.b16 %v1586
        %v1755 = vunpack.c.l.b16 %v1587
        %v1756 = vunpack.c.h.b16 %v1587
        %v1757 = vunpack.c.l.b16 %v1588
        %v1758 = vunpack.c.h.b16 %v1588
        %v1759 = vunpack.c.l.b16 %v1589
        %v1760 = vunpack.c.h.b16 %v1589
        %v1761 = vunpack.c.l.b16 %v1590
        %v1762 = vunpack.c.h.b16 %v1590
        %v1763 = vunpack.c.l.b16 %v1591
        %v1764 = vunpack.c.h.b16 %v1591
        %v1765 = vunpack.c.l.b16 %v1592
        %v1766 = vunpack.c.h.b16 %v1592
        %v1767 = vunpack.c.l.b16 %v1593
        %v1768 = vunpack.c.h.b16 %v1593
        %v1769 = vunpack.c.l.b16 %v1594
        %v1770 = vunpack.c.h.b16 %v1594
        %v1771 = vunpack.c.l.b16 %v1595
        %v1772 = vunpack.c.h.b16 %v1595
        %v1773 = vunpack.c.l.b16 %v1596
        %v1774 = vunpack.c.h.b16 %v1596
        %v1775 = vunpack.c.l.b16 %v1597
        %v1776 = vunpack.c.h.b16 %v1597
        %v1777 = vunpack.c.l.b16 %v1598
        %v1778 = vunpack.c.h.b16 %v1598
        %v1779 = vunpack.c.l.b16 %v1599
        %v1780 = vunpack.c.h.b16 %v1599
        %v1781 = vunpack.c.l.b16 %v1600
        %v1782 = vunpack.c.h.b16 %v1600
        %v1783 = vunpack.c.l.b16 %v1601
        %v1784 = vunpack.c.h.b16 %v1601
        %v1785 = vunpack.c.l.b16 %v1602
        %v1786 = vunpack.c.h.b16 %v1602
        %v1787 = vunpack.c.l.b16 %v1603
        %v1788 = vunpack.c.h.b16 %v1603
        %v1789 = vunpack.c.l.b16 %v1604
        %v1790 = vunpack.c.h.b16 %v1604
        %v1791 = vunpack.c.l.b16 %v1605
        %v1792 = vunpack.c.h.b16 %v1605
        %v1793 = vunpack.c.l.b16 %v1606
        %v1794 = vunpack.c.h.b16 %v1606
        %v1795 = vunpack.c.l.b16 %v1607
        %v1796 = vunpack.c.h.b16 %v1607
        %v1797 = vunpack.c.l.b16 %v1608
        %v1798 = vunpack.c.h.b16 %v1608
        %v1799 = vunpack.c.l.b16 %v1609
        %v1800 = vunpack.c.h.b16 %v1609
        %v1801 = vunpack.c.l.b16 %v1610
        %v1802 = vunpack.c.h.b16 %v1610
        %v1803 = vpack.c.b16 %v1683, %v1675
        %v1804 = vpack.c.b16 %v1684, %v1676
        %v1805 = vpack.c.b16 %v1685, %v1677
        %v1806 = vpack.c.b16 %v1686, %v1678
        %v1807 = vpack.c.b16 %v1687, %v1679
        %v1808 = vpack.c.b16 %v1688, %v1680
        %v1809 = vpack.c.b16 %v1689, %v1681
        %v1810 = vpack.c.b16 %v1690, %v1682
        %v1811 = vpack.c.b16 %v1699, %v1691
        %v1812 = vpack.c.b16 %v1700, %v1692
        %v1813 = vpack.c.b16 %v1701, %v1693
        %v1814 = vpack.c.b16 %v1702, %v1694
        %v1815 = vpack.c.b16 %v1703, %v1695
        %v1816 = vpack.c.b16 %v1704, %v1696
        %v1817 = vpack.c.b16 %v1705, %v1697
        %v1818 = vpack.c.b16 %v1706, %v1698
        %v1819 = vpack.c.b16 %v1715, %v1707
        %v1820 = vpack.c.b16 %v1716, %v1708
        %v1821 = vpack.c.b16 %v1717, %v1709
        %v1822 = vpack.c.b16 %v1718, %v1710
        %v1823 = vpack.c.b16 %v1719, %v1711
        %v1824 = vpack.c.b16 %v1720, %v1712
        %v1825 = vpack.c.b16 %v1721, %v1713
        %v1826 = vpack.c.b16 %v1722, %v1714
        %v1827 = vpack.c.b16 %v1731, %v1723
        %v1828 = vpack.c.b16 %v1732, %v1724
        %v1829 = vpack.c.b16 %v1733, %v1725
        %v1830 = vpack.c.b16 %v1734, %v1726
        %v1831 = vpack.c.b16 %v1735, %v1727
        %v1832 = vpack.c.b16 %v1736, %v1728
        %v1833 = vpack.c.b16 %v1737, %v1729
        %v1834 = vpack.c.b16 %v1738, %v1730
        %v1835 = vpack.c.b16 %v1747, %v1739
        %v1836 = vpack.c.b16 %v1748, %v1740
        %v1837 = vpack.c.b16 %v1749, %v1741
        %v1838 = vpack.c.b16 %v1750, %v1742
        %v1839 = vpack.c.b16 %v1751, %v1743
        %v1840 = vpack.c.b16 %v1752, %v1744
        %v1841 = vpack.c.b16 %v1753, %v1745
        %v1842 = vpack.c.b16 %v1754, %v1746
        %v1843 = vpack.c.b16 %v1763, %v1755
        %v1844 = vpack.c.b16 %v1764, %v1756
        %v1845 = vpack.c.b16 %v1765, %v1757
        %v1846 = vpack.c.b16 %v1766, %v1758
        %v1847 = vpack.c.b16 %v1767, %v1759
        %v1848 = vpack.c.b16 %v1768, %v1760
        %v1849 = vpack.c.b16 %v1769, %v1761
        %v1850 = vpack.c.b16 %v1770, %v1762
        %v1851 = vpack.c.b16 %v1779, %v1771
        %v1852 = vpack.c.b16 %v1780, %v1772
        %v1853 = vpack.c.b16 %v1781, %v1773
        %v1854 = vpack.c.b16 %v1782, %v1774
        %v1855 = vpack.c.b16 %v1783, %v1775
        %v1856 = vpack.c.b16 %v1784, %v1776
        %v1857 = vpack.c.b16 %v1785, %v1777
        %v1858 = vpack.c.b16 %v1786, %v1778
        %v1859 = vpack.c.b16 %v1795, %v1787
        %v1860 = vpack.c.b16 %v1796, %v1788
        %v1861 = vpack.c.b16 %v1797, %v1789
        %v1862 = vpack.c.b16 %v1798, %v1790
        %v1863 = vpack.c.b16 %v1799, %v1791
        %v1864 = vpack.c.b16 %v1800, %v1792
        %v1865 = vpack.c.b16 %v1801, %v1793
        %v1866 = vpack.c.b16 %v1802, %v1794
        %1931 = vmatpush.bf16.msra.mxu0 %v1859
        %1932 = vmatpush.bf16.msra.mxu0 %v1851
        %1933 = vmatpush.bf16.msra.mxu0 %v1843
        %1934 = vmatpush.bf16.msra.mxu0 %v1835
        %1935 = vmatpush.bf16.msra.mxu0 %v1827
        %1936 = vmatpush.bf16.msra.mxu0 %v1819
        %1937 = vmatpush.bf16.msra.mxu0 %v1811
        %1938 = vmatpush.bf16.msra.mxu0 %v1803
        %1939 = vmatmul.bf16.gmra.mxu0 %v1546
        %v1940 = vpop.f32.mrf.mxu0
        %v1941 = vadd.f32 0.0, %v1940
        %v1942 = vpop.f32.mrf.mxu0
        %1943 = vdwg.mxu0
        %1944 = vmatpush.bf16.msra.mxu0 %v1860
        %1945 = vmatpush.bf16.msra.mxu0 %v1852
        %1946 = vmatpush.bf16.msra.mxu0 %v1844
        %1947 = vmatpush.bf16.msra.mxu0 %v1836
        %1948 = vmatpush.bf16.msra.mxu0 %v1828
        %1949 = vmatpush.bf16.msra.mxu0 %v1820
        %1950 = vmatpush.bf16.msra.mxu0 %v1812
        %1951 = vmatpush.bf16.msra.mxu0 %v1804
        %1952 = vmatmul.bf16.gmra.mxu0 %v1546
        %v1953 = vpop.f32.mrf.mxu0
        %v1954 = vadd.f32 0.0, %v1953
        %v1955 = vpop.f32.mrf.mxu0
        %1956 = vdwg.mxu0
        %1957 = vmatpush.bf16.msra.mxu0 %v1861
        %1958 = vmatpush.bf16.msra.mxu0 %v1853
        %1959 = vmatpush.bf16.msra.mxu0 %v1845
        %1960 = vmatpush.bf16.msra.mxu0 %v1837
        %1961 = vmatpush.bf16.msra.mxu0 %v1829
        %1962 = vmatpush.bf16.msra.mxu0 %v1821
        %1963 = vmatpush.bf16.msra.mxu0 %v1813
        %1964 = vmatpush.bf16.msra.mxu0 %v1805
        %1965 = vmatmul.bf16.gmra.mxu0 %v1546
        %v1966 = vpop.f32.mrf.mxu0
        %v1967 = vadd.f32 0.0, %v1966
        %v1968 = vpop.f32.mrf.mxu0
        %1969 = vdwg.mxu0
        %1970 = vmatpush.bf16.msra.mxu0 %v1862
        %1971 = vmatpush.bf16.msra.mxu0 %v1854
        %1972 = vmatpush.bf16.msra.mxu0 %v1846
        %1973 = vmatpush.bf16.msra.mxu0 %v1838
        %1974 = vmatpush.bf16.msra.mxu0 %v1830
        %1975 = vmatpush.bf16.msra.mxu0 %v1822
        %1976 = vmatpush.bf16.msra.mxu0 %v1814
        %1977 = vmatpush.bf16.msra.mxu0 %v1806
        %1978 = vmatmul.bf16.gmra.mxu0 %v1546
        %v1979 = vpop.f32.mrf.mxu0
        %v1980 = vadd.f32 0.0, %v1979
        %v1981 = vpop.f32.mrf.mxu0
        %1982 = vdwg.mxu0
        %1983 = vmatpush.bf16.msra.mxu0 %v1863
        %1984 = vmatpush.bf16.msra.mxu0 %v1855
        %1985 = vmatpush.bf16.msra.mxu0 %v1847
        %1986 = vmatpush.bf16.msra.mxu0 %v1839
        %1987 = vmatpush.bf16.msra.mxu0 %v1831
        %1988 = vmatpush.bf16.msra.mxu0 %v1823
        %1989 = vmatpush.bf16.msra.mxu0 %v1815
        %1990 = vmatpush.bf16.msra.mxu0 %v1807
        %1991 = vmatmul.bf16.gmra.mxu0 %v1546
        %v1992 = vpop.f32.mrf.mxu0
        %v1993 = vadd.f32 0.0, %v1992
        %v1994 = vpop.f32.mrf.mxu0
        %1995 = vdwg.mxu0
        %1996 = vmatpush.bf16.msra.mxu0 %v1864
        %1997 = vmatpush.bf16.msra.mxu0 %v1856
        %1998 = vmatpush.bf16.msra.mxu0 %v1848
        %1999 = vmatpush.bf16.msra.mxu0 %v1840
        %2000 = vmatpush.bf16.msra.mxu0 %v1832
        %2001 = vmatpush.bf16.msra.mxu0 %v1824
        %2002 = vmatpush.bf16.msra.mxu0 %v1816
        %2003 = vmatpush.bf16.msra.mxu0 %v1808
        %2004 = vmatmul.bf16.gmra.mxu0 %v1546
        %v2005 = vpop.f32.mrf.mxu0
        %v2006 = vadd.f32 0.0, %v2005
        %v2007 = vpop.f32.mrf.mxu0
        %2008 = vdwg.mxu0
        %2009 = vmatpush.bf16.msra.mxu0 %v1865
        %2010 = vmatpush.bf16.msra.mxu0 %v1857
        %2011 = vmatpush.bf16.msra.mxu0 %v1849
        %2012 = vmatpush.bf16.msra.mxu0 %v1841
        %2013 = vmatpush.bf16.msra.mxu0 %v1833
        %2014 = vmatpush.bf16.msra.mxu0 %v1825
        %2015 = vmatpush.bf16.msra.mxu0 %v1817
        %2016 = vmatpush.bf16.msra.mxu0 %v1809
        %2017 = vmatmul.bf16.gmra.mxu0 %v1546
        %v2018 = vpop.f32.mrf.mxu0
        %v2019 = vadd.f32 0.0, %v2018
        %v2020 = vpop.f32.mrf.mxu0
        %2021 = vdwg.mxu0
        %2022 = vmatpush.bf16.msra.mxu0 %v1866
        %2023 = vmatpush.bf16.msra.mxu0 %v1858
        %2024 = vmatpush.bf16.msra.mxu0 %v1850
        %2025 = vmatpush.bf16.msra.mxu0 %v1842
        %2026 = vmatpush.bf16.msra.mxu0 %v1834
        %2027 = vmatpush.bf16.msra.mxu0 %v1826
        %2028 = vmatpush.bf16.msra.mxu0 %v1818
        %2029 = vmatpush.bf16.msra.mxu0 %v1810
        %2030 = vmatmul.bf16.gmra.mxu0 %v1546
        %v2031 = vpop.f32.mrf.mxu0
        %v2032 = vadd.f32 0.0, %v2031
        %v2033 = vpop.f32.mrf.mxu0
        %2034 = vdwg.mxu0
        %v2035 = vperm.slane %v1941, 0
        %v2036 = vperm.slane %v1954, 0
        %v2037 = vperm.slane %v1967, 0
        %v2038 = vperm.slane %v1980, 0
        %v2039 = vperm.slane %v1993, 0
        %v2040 = vperm.slane %v2006, 0
        %v2041 = vperm.slane %v2019, 0
        %v2042 = vperm.slane %v2032, 0
        %v2235 = vunpack.c.l.b16 %v1354
        %v2236 = vunpack.c.h.b16 %v1354
        %v2237 = vunpack.c.l.b16 %v1355
        %v2238 = vunpack.c.h.b16 %v1355
        %v2239 = vunpack.c.l.b16 %v1356
        %v2240 = vunpack.c.h.b16 %v1356
        %v2241 = vunpack.c.l.b16 %v1357
        %v2242 = vunpack.c.h.b16 %v1357
        %v2243 = vunpack.c.l.b16 %v1358
        %v2244 = vunpack.c.h.b16 %v1358
        %v2245 = vunpack.c.l.b16 %v1359
        %v2246 = vunpack.c.h.b16 %v1359
        %v2247 = vunpack.c.l.b16 %v1360
        %v2248 = vunpack.c.h.b16 %v1360
        %v2249 = vunpack.c.l.b16 %v1361
        %v2250 = vunpack.c.h.b16 %v1361
        %v2251 = vunpack.c.l.b16 %v1362
        %v2252 = vunpack.c.h.b16 %v1362
        %v2253 = vunpack.c.l.b16 %v1363
        %v2254 = vunpack.c.h.b16 %v1363
        %v2255 = vunpack.c.l.b16 %v1364
        %v2256 = vunpack.c.h.b16 %v1364
        %v2257 = vunpack.c.l.b16 %v1365
        %v2258 = vunpack.c.h.b16 %v1365
        %v2259 = vunpack.c.l.b16 %v1366
        %v2260 = vunpack.c.h.b16 %v1366
        %v2261 = vunpack.c.l.b16 %v1367
        %v2262 = vunpack.c.h.b16 %v1367
        %v2263 = vunpack.c.l.b16 %v1368
        %v2264 = vunpack.c.h.b16 %v1368
        %v2265 = vunpack.c.l.b16 %v1369
        %v2266 = vunpack.c.h.b16 %v1369
        %v2267 = vunpack.c.l.b16 %v1370
        %v2268 = vunpack.c.h.b16 %v1370
        %v2269 = vunpack.c.l.b16 %v1371
        %v2270 = vunpack.c.h.b16 %v1371
        %v2271 = vunpack.c.l.b16 %v1372
        %v2272 = vunpack.c.h.b16 %v1372
        %v2273 = vunpack.c.l.b16 %v1373
        %v2274 = vunpack.c.h.b16 %v1373
        %v2275 = vunpack.c.l.b16 %v1374
        %v2276 = vunpack.c.h.b16 %v1374
        %v2277 = vunpack.c.l.b16 %v1375
        %v2278 = vunpack.c.h.b16 %v1375
        %v2279 = vunpack.c.l.b16 %v1376
        %v2280 = vunpack.c.h.b16 %v1376
        %v2281 = vunpack.c.l.b16 %v1377
        %v2282 = vunpack.c.h.b16 %v1377
        %v2283 = vunpack.c.l.b16 %v1378
        %v2284 = vunpack.c.h.b16 %v1378
        %v2285 = vunpack.c.l.b16 %v1379
        %v2286 = vunpack.c.h.b16 %v1379
        %v2287 = vunpack.c.l.b16 %v1380
        %v2288 = vunpack.c.h.b16 %v1380
        %v2289 = vunpack.c.l.b16 %v1381
        %v2290 = vunpack.c.h.b16 %v1381
        %v2291 = vunpack.c.l.b16 %v1382
        %v2292 = vunpack.c.h.b16 %v1382
        %v2293 = vunpack.c.l.b16 %v1383
        %v2294 = vunpack.c.h.b16 %v1383
        %v2295 = vunpack.c.l.b16 %v1384
        %v2296 = vunpack.c.h.b16 %v1384
        %v2297 = vunpack.c.l.b16 %v1385
        %v2298 = vunpack.c.h.b16 %v1385
        %v2299 = vunpack.c.l.b16 %v1386
        %v2300 = vunpack.c.h.b16 %v1386
        %v2301 = vunpack.c.l.b16 %v1387
        %v2302 = vunpack.c.h.b16 %v1387
        %v2303 = vunpack.c.l.b16 %v1388
        %v2304 = vunpack.c.h.b16 %v1388
        %v2305 = vunpack.c.l.b16 %v1389
        %v2306 = vunpack.c.h.b16 %v1389
        %v2307 = vunpack.c.l.b16 %v1390
        %v2308 = vunpack.c.h.b16 %v1390
        %v2309 = vunpack.c.l.b16 %v1391
        %v2310 = vunpack.c.h.b16 %v1391
        %v2311 = vunpack.c.l.b16 %v1392
        %v2312 = vunpack.c.h.b16 %v1392
        %v2313 = vunpack.c.l.b16 %v1393
        %v2314 = vunpack.c.h.b16 %v1393
        %v2315 = vunpack.c.l.b16 %v1394
        %v2316 = vunpack.c.h.b16 %v1394
        %v2317 = vunpack.c.l.b16 %v1395
        %v2318 = vunpack.c.h.b16 %v1395
        %v2319 = vunpack.c.l.b16 %v1396
        %v2320 = vunpack.c.h.b16 %v1396
        %v2321 = vunpack.c.l.b16 %v1397
        %v2322 = vunpack.c.h.b16 %v1397
        %v2323 = vunpack.c.l.b16 %v1398
        %v2324 = vunpack.c.h.b16 %v1398
        %v2325 = vunpack.c.l.b16 %v1399
        %v2326 = vunpack.c.h.b16 %v1399
        %v2327 = vunpack.c.l.b16 %v1400
        %v2328 = vunpack.c.h.b16 %v1400
        %v2329 = vunpack.c.l.b16 %v1401
        %v2330 = vunpack.c.h.b16 %v1401
        %v2331 = vunpack.c.l.b16 %v1402
        %v2332 = vunpack.c.h.b16 %v1402
        %v2333 = vunpack.c.l.b16 %v1403
        %v2334 = vunpack.c.h.b16 %v1403
        %v2335 = vunpack.c.l.b16 %v1404
        %v2336 = vunpack.c.h.b16 %v1404
        %v2337 = vunpack.c.l.b16 %v1405
        %v2338 = vunpack.c.h.b16 %v1405
        %v2339 = vunpack.c.l.b16 %v1406
        %v2340 = vunpack.c.h.b16 %v1406
        %v2341 = vunpack.c.l.b16 %v1407
        %v2342 = vunpack.c.h.b16 %v1407
        %v2343 = vunpack.c.l.b16 %v1408
        %v2344 = vunpack.c.h.b16 %v1408
        %v2345 = vunpack.c.l.b16 %v1409
        %v2346 = vunpack.c.h.b16 %v1409
        %v2347 = vunpack.c.l.b16 %v1410
        %v2348 = vunpack.c.h.b16 %v1410
        %v2349 = vunpack.c.l.b16 %v1411
        %v2350 = vunpack.c.h.b16 %v1411
        %v2351 = vunpack.c.l.b16 %v1412
        %v2352 = vunpack.c.h.b16 %v1412
        %v2353 = vunpack.c.l.b16 %v1413
        %v2354 = vunpack.c.h.b16 %v1413
        %v2355 = vunpack.c.l.b16 %v1414
        %v2356 = vunpack.c.h.b16 %v1414
        %v2357 = vunpack.c.l.b16 %v1415
        %v2358 = vunpack.c.h.b16 %v1415
        %v2359 = vunpack.c.l.b16 %v1416
        %v2360 = vunpack.c.h.b16 %v1416
        %v2361 = vunpack.c.l.b16 %v1417
        %v2362 = vunpack.c.h.b16 %v1417
        %v2363 = vunpack.c.l.b16 %v1418
        %v2364 = vunpack.c.h.b16 %v1418
        %v2365 = vunpack.c.l.b16 %v1419
        %v2366 = vunpack.c.h.b16 %v1419
        %v2367 = vunpack.c.l.b16 %v1420
        %v2368 = vunpack.c.h.b16 %v1420
        %v2369 = vunpack.c.l.b16 %v1421
        %v2370 = vunpack.c.h.b16 %v1421
        %v2371 = vunpack.c.l.b16 %v1422
        %v2372 = vunpack.c.h.b16 %v1422
        %v2373 = vunpack.c.l.b16 %v1423
        %v2374 = vunpack.c.h.b16 %v1423
        %v2375 = vunpack.c.l.b16 %v1424
        %v2376 = vunpack.c.h.b16 %v1424
        %v2377 = vunpack.c.l.b16 %v1425
        %v2378 = vunpack.c.h.b16 %v1425
        %v2379 = vunpack.c.l.b16 %v1426
        %v2380 = vunpack.c.h.b16 %v1426
        %v2381 = vunpack.c.l.b16 %v1427
        %v2382 = vunpack.c.h.b16 %v1427
        %v2383 = vunpack.c.l.b16 %v1428
        %v2384 = vunpack.c.h.b16 %v1428
        %v2385 = vunpack.c.l.b16 %v1429
        %v2386 = vunpack.c.h.b16 %v1429
        %v2387 = vunpack.c.l.b16 %v1430
        %v2388 = vunpack.c.h.b16 %v1430
        %v2389 = vunpack.c.l.b16 %v1431
        %v2390 = vunpack.c.h.b16 %v1431
        %v2391 = vunpack.c.l.b16 %v1432
        %v2392 = vunpack.c.h.b16 %v1432
        %v2393 = vunpack.c.l.b16 %v1433
        %v2394 = vunpack.c.h.b16 %v1433
        %v2395 = vunpack.c.l.b16 %v1434
        %v2396 = vunpack.c.h.b16 %v1434
        %v2397 = vunpack.c.l.b16 %v1435
        %v2398 = vunpack.c.h.b16 %v1435
        %v2399 = vunpack.c.l.b16 %v1436
        %v2400 = vunpack.c.h.b16 %v1436
        %v2401 = vunpack.c.l.b16 %v1437
        %v2402 = vunpack.c.h.b16 %v1437
        %v2403 = vunpack.c.l.b16 %v1438
        %v2404 = vunpack.c.h.b16 %v1438
        %v2405 = vunpack.c.l.b16 %v1439
        %v2406 = vunpack.c.h.b16 %v1439
        %v2407 = vunpack.c.l.b16 %v1440
        %v2408 = vunpack.c.h.b16 %v1440
        %v2409 = vunpack.c.l.b16 %v1441
        %v2410 = vunpack.c.h.b16 %v1441
        %v2411 = vunpack.c.l.b16 %v1442
        %v2412 = vunpack.c.h.b16 %v1442
        %v2413 = vunpack.c.l.b16 %v1443
        %v2414 = vunpack.c.h.b16 %v1443
        %v2415 = vunpack.c.l.b16 %v1444
        %v2416 = vunpack.c.h.b16 %v1444
        %v2417 = vunpack.c.l.b16 %v1445
        %v2418 = vunpack.c.h.b16 %v1445
        %v2419 = vunpack.c.l.b16 %v1446
        %v2420 = vunpack.c.h.b16 %v1446
        %v2421 = vunpack.c.l.b16 %v1447
        %v2422 = vunpack.c.h.b16 %v1447
        %v2423 = vunpack.c.l.b16 %v1448
        %v2424 = vunpack.c.h.b16 %v1448
        %v2425 = vunpack.c.l.b16 %v1449
        %v2426 = vunpack.c.h.b16 %v1449
        %v2427 = vunpack.c.l.b16 %v1450
        %v2428 = vunpack.c.h.b16 %v1450
        %v2429 = vunpack.c.l.b16 %v1451
        %v2430 = vunpack.c.h.b16 %v1451
        %v2431 = vunpack.c.l.b16 %v1452
        %v2432 = vunpack.c.h.b16 %v1452
        %v2433 = vunpack.c.l.b16 %v1453
        %v2434 = vunpack.c.h.b16 %v1453
        %v2435 = vunpack.c.l.b16 %v1454
        %v2436 = vunpack.c.h.b16 %v1454
        %v2437 = vunpack.c.l.b16 %v1455
        %v2438 = vunpack.c.h.b16 %v1455
        %v2439 = vunpack.c.l.b16 %v1456
        %v2440 = vunpack.c.h.b16 %v1456
        %v2441 = vunpack.c.l.b16 %v1457
        %v2442 = vunpack.c.h.b16 %v1457
        %v2443 = vunpack.c.l.b16 %v1458
        %v2444 = vunpack.c.h.b16 %v1458
        %v2445 = vunpack.c.l.b16 %v1459
        %v2446 = vunpack.c.h.b16 %v1459
        %v2447 = vunpack.c.l.b16 %v1460
        %v2448 = vunpack.c.h.b16 %v1460
        %v2449 = vunpack.c.l.b16 %v1461
        %v2450 = vunpack.c.h.b16 %v1461
        %v2451 = vunpack.c.l.b16 %v1462
        %v2452 = vunpack.c.h.b16 %v1462
        %v2453 = vunpack.c.l.b16 %v1463
        %v2454 = vunpack.c.h.b16 %v1463
        %v2455 = vunpack.c.l.b16 %v1464
        %v2456 = vunpack.c.h.b16 %v1464
        %v2457 = vunpack.c.l.b16 %v1465
        %v2458 = vunpack.c.h.b16 %v1465
        %v2459 = vunpack.c.l.b16 %v1466
        %v2460 = vunpack.c.h.b16 %v1466
        %v2461 = vunpack.c.l.b16 %v1467
        %v2462 = vunpack.c.h.b16 %v1467
        %v2463 = vunpack.c.l.b16 %v1468
        %v2464 = vunpack.c.h.b16 %v1468
        %v2465 = vunpack.c.l.b16 %v1469
        %v2466 = vunpack.c.h.b16 %v1469
        %v2467 = vunpack.c.l.b16 %v1470
        %v2468 = vunpack.c.h.b16 %v1470
        %v2469 = vunpack.c.l.b16 %v1471
        %v2470 = vunpack.c.h.b16 %v1471
        %v2471 = vunpack.c.l.b16 %v1472
        %v2472 = vunpack.c.h.b16 %v1472
        %v2473 = vunpack.c.l.b16 %v1473
        %v2474 = vunpack.c.h.b16 %v1473
        %v2475 = vunpack.c.l.b16 %v1474
        %v2476 = vunpack.c.h.b16 %v1474
        %v2477 = vunpack.c.l.b16 %v1475
        %v2478 = vunpack.c.h.b16 %v1475
        %v2479 = vunpack.c.l.b16 %v1476
        %v2480 = vunpack.c.h.b16 %v1476
        %v2481 = vunpack.c.l.b16 %v1477
        %v2482 = vunpack.c.h.b16 %v1477
        %v2483 = vunpack.c.l.b16 %v1478
        %v2484 = vunpack.c.h.b16 %v1478
        %v2485 = vunpack.c.l.b16 %v1479
        %v2486 = vunpack.c.h.b16 %v1479
        %v2487 = vunpack.c.l.b16 %v1480
        %v2488 = vunpack.c.h.b16 %v1480
        %v2489 = vunpack.c.l.b16 %v1481
        %v2490 = vunpack.c.h.b16 %v1481
        %v2491 = vunpack.c.l.b16 %v1482
        %v2492 = vunpack.c.h.b16 %v1482
        %v2493 = vunpack.c.l.b16 %v1483
        %v2494 = vunpack.c.h.b16 %v1483
        %v2495 = vunpack.c.l.b16 %v1484
        %v2496 = vunpack.c.h.b16 %v1484
        %v2497 = vunpack.c.l.b16 %v1485
        %v2498 = vunpack.c.h.b16 %v1485
        %v2499 = vunpack.c.l.b16 %v1486
        %v2500 = vunpack.c.h.b16 %v1486
        %v2501 = vunpack.c.l.b16 %v1487
        %v2502 = vunpack.c.h.b16 %v1487
        %v2503 = vunpack.c.l.b16 %v1488
        %v2504 = vunpack.c.h.b16 %v1488
        %v2505 = vunpack.c.l.b16 %v1489
        %v2506 = vunpack.c.h.b16 %v1489
        %v2507 = vunpack.c.l.b16 %v1490
        %v2508 = vunpack.c.h.b16 %v1490
        %v2509 = vunpack.c.l.b16 %v1491
        %v2510 = vunpack.c.h.b16 %v1491
        %v2511 = vunpack.c.l.b16 %v1492
        %v2512 = vunpack.c.h.b16 %v1492
        %v2513 = vunpack.c.l.b16 %v1493
        %v2514 = vunpack.c.h.b16 %v1493
        %v2515 = vunpack.c.l.b16 %v1494
        %v2516 = vunpack.c.h.b16 %v1494
        %v2517 = vunpack.c.l.b16 %v1495
        %v2518 = vunpack.c.h.b16 %v1495
        %v2519 = vunpack.c.l.b16 %v1496
        %v2520 = vunpack.c.h.b16 %v1496
        %v2521 = vunpack.c.l.b16 %v1497
        %v2522 = vunpack.c.h.b16 %v1497
        %v2523 = vunpack.c.l.b16 %v1498
        %v2524 = vunpack.c.h.b16 %v1498
        %v2525 = vunpack.c.l.b16 %v1499
        %v2526 = vunpack.c.h.b16 %v1499
        %v2527 = vunpack.c.l.b16 %v1500
        %v2528 = vunpack.c.h.b16 %v1500
        %v2529 = vunpack.c.l.b16 %v1501
        %v2530 = vunpack.c.h.b16 %v1501
        %v2531 = vunpack.c.l.b16 %v1502
        %v2532 = vunpack.c.h.b16 %v1502
        %v2533 = vunpack.c.l.b16 %v1503
        %v2534 = vunpack.c.h.b16 %v1503
        %v2535 = vunpack.c.l.b16 %v1504
        %v2536 = vunpack.c.h.b16 %v1504
        %v2537 = vunpack.c.l.b16 %v1505
        %v2538 = vunpack.c.h.b16 %v1505
        %v2539 = vunpack.c.l.b16 %v1506
        %v2540 = vunpack.c.h.b16 %v1506
        %v2541 = vunpack.c.l.b16 %v1507
        %v2542 = vunpack.c.h.b16 %v1507
        %v2543 = vunpack.c.l.b16 %v1508
        %v2544 = vunpack.c.h.b16 %v1508
        %v2545 = vunpack.c.l.b16 %v1509
        %v2546 = vunpack.c.h.b16 %v1509
        %v2547 = vunpack.c.l.b16 %v1510
        %v2548 = vunpack.c.h.b16 %v1510
        %v2549 = vunpack.c.l.b16 %v1511
        %v2550 = vunpack.c.h.b16 %v1511
        %v2551 = vunpack.c.l.b16 %v1512
        %v2552 = vunpack.c.h.b16 %v1512
        %v2553 = vunpack.c.l.b16 %v1513
        %v2554 = vunpack.c.h.b16 %v1513
        %v2555 = vunpack.c.l.b16 %v1514
        %v2556 = vunpack.c.h.b16 %v1514
        %v2557 = vunpack.c.l.b16 %v1515
        %v2558 = vunpack.c.h.b16 %v1515
        %v2559 = vunpack.c.l.b16 %v1516
        %v2560 = vunpack.c.h.b16 %v1516
        %v2561 = vunpack.c.l.b16 %v1517
        %v2562 = vunpack.c.h.b16 %v1517
        %v2563 = vunpack.c.l.b16 %v1518
        %v2564 = vunpack.c.h.b16 %v1518
        %v2565 = vunpack.c.l.b16 %v1519
        %v2566 = vunpack.c.h.b16 %v1519
        %v2567 = vunpack.c.l.b16 %v1520
        %v2568 = vunpack.c.h.b16 %v1520
        %v2569 = vunpack.c.l.b16 %v1521
        %v2570 = vunpack.c.h.b16 %v1521
        %v2571 = vunpack.c.l.b16 %v1522
        %v2572 = vunpack.c.h.b16 %v1522
        %v2573 = vunpack.c.l.b16 %v1523
        %v2574 = vunpack.c.h.b16 %v1523
        %v2575 = vunpack.c.l.b16 %v1524
        %v2576 = vunpack.c.h.b16 %v1524
        %v2577 = vunpack.c.l.b16 %v1525
        %v2578 = vunpack.c.h.b16 %v1525
        %v2579 = vunpack.c.l.b16 %v1526
        %v2580 = vunpack.c.h.b16 %v1526
        %v2581 = vunpack.c.l.b16 %v1527
        %v2582 = vunpack.c.h.b16 %v1527
        %v2583 = vunpack.c.l.b16 %v1528
        %v2584 = vunpack.c.h.b16 %v1528
        %v2585 = vunpack.c.l.b16 %v1529
        %v2586 = vunpack.c.h.b16 %v1529
        %v2587 = vunpack.c.l.b16 %v1530
        %v2588 = vunpack.c.h.b16 %v1530
        %v2589 = vunpack.c.l.b16 %v1531
        %v2590 = vunpack.c.h.b16 %v1531
        %v2591 = vunpack.c.l.b16 %v1532
        %v2592 = vunpack.c.h.b16 %v1532
        %v2593 = vunpack.c.l.b16 %v1533
        %v2594 = vunpack.c.h.b16 %v1533
        %v2595 = vunpack.c.l.b16 %v1534
        %v2596 = vunpack.c.h.b16 %v1534
        %v2597 = vunpack.c.l.b16 %v1535
        %v2598 = vunpack.c.h.b16 %v1535
        %v2599 = vunpack.c.l.b16 %v1536
        %v2600 = vunpack.c.h.b16 %v1536
        %v2601 = vunpack.c.l.b16 %v1537
        %v2602 = vunpack.c.h.b16 %v1537
        %v2603 = vunpack.c.l.b16 %v1538
        %v2604 = vunpack.c.h.b16 %v1538
        %v2605 = vunpack.c.l.b16 %v1539
        %v2606 = vunpack.c.h.b16 %v1539
        %v2607 = vunpack.c.l.b16 %v1540
        %v2608 = vunpack.c.h.b16 %v1540
        %v2609 = vunpack.c.l.b16 %v1541
        %v2610 = vunpack.c.h.b16 %v1541
        %v2611 = vunpack.c.l.b16 %v1542
        %v2612 = vunpack.c.h.b16 %v1542
        %v2613 = vunpack.c.l.b16 %v1543
        %v2614 = vunpack.c.h.b16 %v1543
        %v2615 = vunpack.c.l.b16 %v1544
        %v2616 = vunpack.c.h.b16 %v1544
        %v2617 = vunpack.c.l.b16 %v1545
        %v2618 = vunpack.c.h.b16 %v1545
        %v2619 = vpack.c.b16 %v2243, %v2235
        %v2620 = vpack.c.b16 %v2244, %v2236
        %v2621 = vpack.c.b16 %v2245, %v2237
        %v2622 = vpack.c.b16 %v2246, %v2238
        %v2623 = vpack.c.b16 %v2247, %v2239
        %v2624 = vpack.c.b16 %v2248, %v2240
        %v2625 = vpack.c.b16 %v2249, %v2241
        %v2626 = vpack.c.b16 %v2250, %v2242
        %v2627 = vpack.c.b16 %v2259, %v2251
        %v2628 = vpack.c.b16 %v2260, %v2252
        %v2629 = vpack.c.b16 %v2261, %v2253
        %v2630 = vpack.c.b16 %v2262, %v2254
        %v2631 = vpack.c.b16 %v2263, %v2255
        %v2632 = vpack.c.b16 %v2264, %v2256
        %v2633 = vpack.c.b16 %v2265, %v2257
        %v2634 = vpack.c.b16 %v2266, %v2258
        %v2635 = vpack.c.b16 %v2275, %v2267
        %v2636 = vpack.c.b16 %v2276, %v2268
        %v2637 = vpack.c.b16 %v2277, %v2269
        %v2638 = vpack.c.b16 %v2278, %v2270
        %v2639 = vpack.c.b16 %v2279, %v2271
        %v2640 = vpack.c.b16 %v2280, %v2272
        %v2641 = vpack.c.b16 %v2281, %v2273
        %v2642 = vpack.c.b16 %v2282, %v2274
        %v2643 = vpack.c.b16 %v2291, %v2283
        %v2644 = vpack.c.b16 %v2292, %v2284
        %v2645 = vpack.c.b16 %v2293, %v2285
        %v2646 = vpack.c.b16 %v2294, %v2286
        %v2647 = vpack.c.b16 %v2295, %v2287
        %v2648 = vpack.c.b16 %v2296, %v2288
        %v2649 = vpack.c.b16 %v2297, %v2289
        %v2650 = vpack.c.b16 %v2298, %v2290
        %v2651 = vpack.c.b16 %v2307, %v2299
        %v2652 = vpack.c.b16 %v2308, %v2300
        %v2653 = vpack.c.b16 %v2309, %v2301
        %v2654 = vpack.c.b16 %v2310, %v2302
        %v2655 = vpack.c.b16 %v2311, %v2303
        %v2656 = vpack.c.b16 %v2312, %v2304
        %v2657 = vpack.c.b16 %v2313, %v2305
        %v2658 = vpack.c.b16 %v2314, %v2306
        %v2659 = vpack.c.b16 %v2323, %v2315
        %v2660 = vpack.c.b16 %v2324, %v2316
        %v2661 = vpack.c.b16 %v2325, %v2317
        %v2662 = vpack.c.b16 %v2326, %v2318
        %v2663 = vpack.c.b16 %v2327, %v2319
        %v2664 = vpack.c.b16 %v2328, %v2320
        %v2665 = vpack.c.b16 %v2329, %v2321
        %v2666 = vpack.c.b16 %v2330, %v2322
        %v2667 = vpack.c.b16 %v2339, %v2331
        %v2668 = vpack.c.b16 %v2340, %v2332
        %v2669 = vpack.c.b16 %v2341, %v2333
        %v2670 = vpack.c.b16 %v2342, %v2334
        %v2671 = vpack.c.b16 %v2343, %v2335
        %v2672 = vpack.c.b16 %v2344, %v2336
        %v2673 = vpack.c.b16 %v2345, %v2337
        %v2674 = vpack.c.b16 %v2346, %v2338
        %v2675 = vpack.c.b16 %v2355, %v2347
        %v2676 = vpack.c.b16 %v2356, %v2348
        %v2677 = vpack.c.b16 %v2357, %v2349
        %v2678 = vpack.c.b16 %v2358, %v2350
        %v2679 = vpack.c.b16 %v2359, %v2351
        %v2680 = vpack.c.b16 %v2360, %v2352
        %v2681 = vpack.c.b16 %v2361, %v2353
        %v2682 = vpack.c.b16 %v2362, %v2354
        %v2683 = vpack.c.b16 %v2371, %v2363
        %v2684 = vpack.c.b16 %v2372, %v2364
        %v2685 = vpack.c.b16 %v2373, %v2365
        %v2686 = vpack.c.b16 %v2374, %v2366
        %v2687 = vpack.c.b16 %v2375, %v2367
        %v2688 = vpack.c.b16 %v2376, %v2368
        %v2689 = vpack.c.b16 %v2377, %v2369
        %v2690 = vpack.c.b16 %v2378, %v2370
        %v2691 = vpack.c.b16 %v2387, %v2379
        %v2692 = vpack.c.b16 %v2388, %v2380
        %v2693 = vpack.c.b16 %v2389, %v2381
        %v2694 = vpack.c.b16 %v2390, %v2382
        %v2695 = vpack.c.b16 %v2391, %v2383
        %v2696 = vpack.c.b16 %v2392, %v2384
        %v2697 = vpack.c.b16 %v2393, %v2385
        %v2698 = vpack.c.b16 %v2394, %v2386
        %v2699 = vpack.c.b16 %v2403, %v2395
        %v2700 = vpack.c.b16 %v2404, %v2396
        %v2701 = vpack.c.b16 %v2405, %v2397
        %v2702 = vpack.c.b16 %v2406, %v2398
        %v2703 = vpack.c.b16 %v2407, %v2399
        %v2704 = vpack.c.b16 %v2408, %v2400
        %v2705 = vpack.c.b16 %v2409, %v2401
        %v2706 = vpack.c.b16 %v2410, %v2402
        %v2707 = vpack.c.b16 %v2419, %v2411
        %v2708 = vpack.c.b16 %v2420, %v2412
        %v2709 = vpack.c.b16 %v2421, %v2413
        %v2710 = vpack.c.b16 %v2422, %v2414
        %v2711 = vpack.c.b16 %v2423, %v2415
        %v2712 = vpack.c.b16 %v2424, %v2416
        %v2713 = vpack.c.b16 %v2425, %v2417
        %v2714 = vpack.c.b16 %v2426, %v2418
        %v2715 = vpack.c.b16 %v2435, %v2427
        %v2716 = vpack.c.b16 %v2436, %v2428
        %v2717 = vpack.c.b16 %v2437, %v2429
        %v2718 = vpack.c.b16 %v2438, %v2430
        %v2719 = vpack.c.b16 %v2439, %v2431
        %v2720 = vpack.c.b16 %v2440, %v2432
        %v2721 = vpack.c.b16 %v2441, %v2433
        %v2722 = vpack.c.b16 %v2442, %v2434
        %v2723 = vpack.c.b16 %v2451, %v2443
        %v2724 = vpack.c.b16 %v2452, %v2444
        %v2725 = vpack.c.b16 %v2453, %v2445
        %v2726 = vpack.c.b16 %v2454, %v2446
        %v2727 = vpack.c.b16 %v2455, %v2447
        %v2728 = vpack.c.b16 %v2456, %v2448
        %v2729 = vpack.c.b16 %v2457, %v2449
        %v2730 = vpack.c.b16 %v2458, %v2450
        %v2731 = vpack.c.b16 %v2467, %v2459
        %v2732 = vpack.c.b16 %v2468, %v2460
        %v2733 = vpack.c.b16 %v2469, %v2461
        %v2734 = vpack.c.b16 %v2470, %v2462
        %v2735 = vpack.c.b16 %v2471, %v2463
        %v2736 = vpack.c.b16 %v2472, %v2464
        %v2737 = vpack.c.b16 %v2473, %v2465
        %v2738 = vpack.c.b16 %v2474, %v2466
        %v2739 = vpack.c.b16 %v2483, %v2475
        %v2740 = vpack.c.b16 %v2484, %v2476
        %v2741 = vpack.c.b16 %v2485, %v2477
        %v2742 = vpack.c.b16 %v2486, %v2478
        %v2743 = vpack.c.b16 %v2487, %v2479
        %v2744 = vpack.c.b16 %v2488, %v2480
        %v2745 = vpack.c.b16 %v2489, %v2481
        %v2746 = vpack.c.b16 %v2490, %v2482
        %v2747 = vpack.c.b16 %v2499, %v2491
        %v2748 = vpack.c.b16 %v2500, %v2492
        %v2749 = vpack.c.b16 %v2501, %v2493
        %v2750 = vpack.c.b16 %v2502, %v2494
        %v2751 = vpack.c.b16 %v2503, %v2495
        %v2752 = vpack.c.b16 %v2504, %v2496
        %v2753 = vpack.c.b16 %v2505, %v2497
        %v2754 = vpack.c.b16 %v2506, %v2498
        %v2755 = vpack.c.b16 %v2515, %v2507
        %v2756 = vpack.c.b16 %v2516, %v2508
        %v2757 = vpack.c.b16 %v2517, %v2509
        %v2758 = vpack.c.b16 %v2518, %v2510
        %v2759 = vpack.c.b16 %v2519, %v2511
        %v2760 = vpack.c.b16 %v2520, %v2512
        %v2761 = vpack.c.b16 %v2521, %v2513
        %v2762 = vpack.c.b16 %v2522, %v2514
        %v2763 = vpack.c.b16 %v2531, %v2523
        %v2764 = vpack.c.b16 %v2532, %v2524
        %v2765 = vpack.c.b16 %v2533, %v2525
        %v2766 = vpack.c.b16 %v2534, %v2526
        %v2767 = vpack.c.b16 %v2535, %v2527
        %v2768 = vpack.c.b16 %v2536, %v2528
        %v2769 = vpack.c.b16 %v2537, %v2529
        %v2770 = vpack.c.b16 %v2538, %v2530
        %v2771 = vpack.c.b16 %v2547, %v2539
        %v2772 = vpack.c.b16 %v2548, %v2540
        %v2773 = vpack.c.b16 %v2549, %v2541
        %v2774 = vpack.c.b16 %v2550, %v2542
        %v2775 = vpack.c.b16 %v2551, %v2543
        %v2776 = vpack.c.b16 %v2552, %v2544
        %v2777 = vpack.c.b16 %v2553, %v2545
        %v2778 = vpack.c.b16 %v2554, %v2546
        %v2779 = vpack.c.b16 %v2563, %v2555
        %v2780 = vpack.c.b16 %v2564, %v2556
        %v2781 = vpack.c.b16 %v2565, %v2557
        %v2782 = vpack.c.b16 %v2566, %v2558
        %v2783 = vpack.c.b16 %v2567, %v2559
        %v2784 = vpack.c.b16 %v2568, %v2560
        %v2785 = vpack.c.b16 %v2569, %v2561
        %v2786 = vpack.c.b16 %v2570, %v2562
        %v2787 = vpack.c.b16 %v2579, %v2571
        %v2788 = vpack.c.b16 %v2580, %v2572
        %v2789 = vpack.c.b16 %v2581, %v2573
        %v2790 = vpack.c.b16 %v2582, %v2574
        %v2791 = vpack.c.b16 %v2583, %v2575
        %v2792 = vpack.c.b16 %v2584, %v2576
        %v2793 = vpack.c.b16 %v2585, %v2577
        %v2794 = vpack.c.b16 %v2586, %v2578
        %v2795 = vpack.c.b16 %v2595, %v2587
        %v2796 = vpack.c.b16 %v2596, %v2588
        %v2797 = vpack.c.b16 %v2597, %v2589
        %v2798 = vpack.c.b16 %v2598, %v2590
        %v2799 = vpack.c.b16 %v2599, %v2591
        %v2800 = vpack.c.b16 %v2600, %v2592
        %v2801 = vpack.c.b16 %v2601, %v2593
        %v2802 = vpack.c.b16 %v2602, %v2594
        %v2803 = vpack.c.b16 %v2611, %v2603
        %v2804 = vpack.c.b16 %v2612, %v2604
        %v2805 = vpack.c.b16 %v2613, %v2605
        %v2806 = vpack.c.b16 %v2614, %v2606
        %v2807 = vpack.c.b16 %v2615, %v2607
        %v2808 = vpack.c.b16 %v2616, %v2608
        %v2809 = vpack.c.b16 %v2617, %v2609
        %v2810 = vpack.c.b16 %v2618, %v2610
        %3003 = vmatpush.bf16.msra.mxu0 %v2675
        %3004 = vmatpush.bf16.msra.mxu0 %v2667
        %3005 = vmatpush.bf16.msra.mxu0 %v2659
        %3006 = vmatpush.bf16.msra.mxu0 %v2651
        %3007 = vmatpush.bf16.msra.mxu0 %v2643
        %3008 = vmatpush.bf16.msra.mxu0 %v2635
        %3009 = vmatpush.bf16.msra.mxu0 %v2627
        %3010 = vmatpush.bf16.msra.mxu0 %v2619
        %3011 = vmatmul.bf16.gmra.mxu0 %v1351
        %v3012 = vpop.f32.mrf.mxu0
        %v3013 = vadd.f32 %v2035, %v3012
        %v3014 = vpop.f32.mrf.mxu0
        %3015 = vdwg.mxu0
        %3016 = vmatpush.bf16.msra.mxu0 %v2739
        %3017 = vmatpush.bf16.msra.mxu0 %v2731
        %3018 = vmatpush.bf16.msra.mxu0 %v2723
        %3019 = vmatpush.bf16.msra.mxu0 %v2715
        %3020 = vmatpush.bf16.msra.mxu0 %v2707
        %3021 = vmatpush.bf16.msra.mxu0 %v2699
        %3022 = vmatpush.bf16.msra.mxu0 %v2691
        %3023 = vmatpush.bf16.msra.mxu0 %v2683
        %3024 = vmatmul.bf16.gmra.mxu0 %v1352
        %v3025 = vpop.f32.mrf.mxu0
        %v3026 = vadd.f32 %v3013, %v3025
        %v3027 = vpop.f32.mrf.mxu0
        %3028 = vdwg.mxu0
        %3029 = vmatpush.bf16.msra.mxu0 %v2803
        %3030 = vmatpush.bf16.msra.mxu0 %v2795
        %3031 = vmatpush.bf16.msra.mxu0 %v2787
        %3032 = vmatpush.bf16.msra.mxu0 %v2779
        %3033 = vmatpush.bf16.msra.mxu0 %v2771
        %3034 = vmatpush.bf16.msra.mxu0 %v2763
        %3035 = vmatpush.bf16.msra.mxu0 %v2755
        %3036 = vmatpush.bf16.msra.mxu0 %v2747
        %3037 = vmatmul.bf16.gmra.mxu0 %v1353
        %v3038 = vpop.f32.mrf.mxu0
        %v3039 = vadd.f32 %v3026, %v3038
        %v3040 = vpop.f32.mrf.mxu0
        %3041 = vdwg.mxu0
        %3042 = vmatpush.bf16.msra.mxu0 %v2676
        %3043 = vmatpush.bf16.msra.mxu0 %v2668
        %3044 = vmatpush.bf16.msra.mxu0 %v2660
        %3045 = vmatpush.bf16.msra.mxu0 %v2652
        %3046 = vmatpush.bf16.msra.mxu0 %v2644
        %3047 = vmatpush.bf16.msra.mxu0 %v2636
        %3048 = vmatpush.bf16.msra.mxu0 %v2628
        %3049 = vmatpush.bf16.msra.mxu0 %v2620
        %3050 = vmatmul.bf16.gmra.mxu0 %v1351
        %v3051 = vpop.f32.mrf.mxu0
        %v3052 = vadd.f32 %v2036, %v3051
        %v3053 = vpop.f32.mrf.mxu0
        %3054 = vdwg.mxu0
        %3055 = vmatpush.bf16.msra.mxu0 %v2740
        %3056 = vmatpush.bf16.msra.mxu0 %v2732
        %3057 = vmatpush.bf16.msra.mxu0 %v2724
        %3058 = vmatpush.bf16.msra.mxu0 %v2716
        %3059 = vmatpush.bf16.msra.mxu0 %v2708
        %3060 = vmatpush.bf16.msra.mxu0 %v2700
        %3061 = vmatpush.bf16.msra.mxu0 %v2692
        %3062 = vmatpush.bf16.msra.mxu0 %v2684
        %3063 = vmatmul.bf16.gmra.mxu0 %v1352
        %v3064 = vpop.f32.mrf.mxu0
        %v3065 = vadd.f32 %v3052, %v3064
        %v3066 = vpop.f32.mrf.mxu0
        %3067 = vdwg.mxu0
        %3068 = vmatpush.bf16.msra.mxu0 %v2804
        %3069 = vmatpush.bf16.msra.mxu0 %v2796
        %3070 = vmatpush.bf16.msra.mxu0 %v2788
        %3071 = vmatpush.bf16.msra.mxu0 %v2780
        %3072 = vmatpush.bf16.msra.mxu0 %v2772
        %3073 = vmatpush.bf16.msra.mxu0 %v2764
        %3074 = vmatpush.bf16.msra.mxu0 %v2756
        %3075 = vmatpush.bf16.msra.mxu0 %v2748
        %3076 = vmatmul.bf16.gmra.mxu0 %v1353
        %v3077 = vpop.f32.mrf.mxu0
        %v3078 = vadd.f32 %v3065, %v3077
        %v3079 = vpop.f32.mrf.mxu0
        %3080 = vdwg.mxu0
        %3081 = vmatpush.bf16.msra.mxu0 %v2677
        %3082 = vmatpush.bf16.msra.mxu0 %v2669
        %3083 = vmatpush.bf16.msra.mxu0 %v2661
        %3084 = vmatpush.bf16.msra.mxu0 %v2653
        %3085 = vmatpush.bf16.msra.mxu0 %v2645
        %3086 = vmatpush.bf16.msra.mxu0 %v2637
        %3087 = vmatpush.bf16.msra.mxu0 %v2629
        %3088 = vmatpush.bf16.msra.mxu0 %v2621
        %3089 = vmatmul.bf16.gmra.mxu0 %v1351
        %v3090 = vpop.f32.mrf.mxu0
        %v3091 = vadd.f32 %v2037, %v3090
        %v3092 = vpop.f32.mrf.mxu0
        %3093 = vdwg.mxu0
        %3094 = vmatpush.bf16.msra.mxu0 %v2741
        %3095 = vmatpush.bf16.msra.mxu0 %v2733
        %3096 = vmatpush.bf16.msra.mxu0 %v2725
        %3097 = vmatpush.bf16.msra.mxu0 %v2717
        %3098 = vmatpush.bf16.msra.mxu0 %v2709
        %3099 = vmatpush.bf16.msra.mxu0 %v2701
        %3100 = vmatpush.bf16.msra.mxu0 %v2693
        %3101 = vmatpush.bf16.msra.mxu0 %v2685
        %3102 = vmatmul.bf16.gmra.mxu0 %v1352
        %v3103 = vpop.f32.mrf.mxu0
        %v3104 = vadd.f32 %v3091, %v3103
        %v3105 = vpop.f32.mrf.mxu0
        %3106 = vdwg.mxu0
        %3107 = vmatpush.bf16.msra.mxu0 %v2805
        %3108 = vmatpush.bf16.msra.mxu0 %v2797
        %3109 = vmatpush.bf16.msra.mxu0 %v2789
        %3110 = vmatpush.bf16.msra.mxu0 %v2781
        %3111 = vmatpush.bf16.msra.mxu0 %v2773
        %3112 = vmatpush.bf16.msra.mxu0 %v2765
        %3113 = vmatpush.bf16.msra.mxu0 %v2757
        %3114 = vmatpush.bf16.msra.mxu0 %v2749
        %3115 = vmatmul.bf16.gmra.mxu0 %v1353
        %v3116 = vpop.f32.mrf.mxu0
        %v3117 = vadd.f32 %v3104, %v3116
        %v3118 = vpop.f32.mrf.mxu0
        %3119 = vdwg.mxu0
        %3120 = vmatpush.bf16.msra.mxu0 %v2678
        %3121 = vmatpush.bf16.msra.mxu0 %v2670
        %3122 = vmatpush.bf16.msra.mxu0 %v2662
        %3123 = vmatpush.bf16.msra.mxu0 %v2654
        %3124 = vmatpush.bf16.msra.mxu0 %v2646
        %3125 = vmatpush.bf16.msra.mxu0 %v2638
        %3126 = vmatpush.bf16.msra.mxu0 %v2630
        %3127 = vmatpush.bf16.msra.mxu0 %v2622
        %3128 = vmatmul.bf16.gmra.mxu0 %v1351
        %v3129 = vpop.f32.mrf.mxu0
        %v3130 = vadd.f32 %v2038, %v3129
        %v3131 = vpop.f32.mrf.mxu0
        %3132 = vdwg.mxu0
        %3133 = vmatpush.bf16.msra.mxu0 %v2742
        %3134 = vmatpush.bf16.msra.mxu0 %v2734
        %3135 = vmatpush.bf16.msra.mxu0 %v2726
        %3136 = vmatpush.bf16.msra.mxu0 %v2718
        %3137 = vmatpush.bf16.msra.mxu0 %v2710
        %3138 = vmatpush.bf16.msra.mxu0 %v2702
        %3139 = vmatpush.bf16.msra.mxu0 %v2694
        %3140 = vmatpush.bf16.msra.mxu0 %v2686
        %3141 = vmatmul.bf16.gmra.mxu0 %v1352
        %v3142 = vpop.f32.mrf.mxu0
        %v3143 = vadd.f32 %v3130, %v3142
        %v3144 = vpop.f32.mrf.mxu0
        %3145 = vdwg.mxu0
        %3146 = vmatpush.bf16.msra.mxu0 %v2806
        %3147 = vmatpush.bf16.msra.mxu0 %v2798
        %3148 = vmatpush.bf16.msra.mxu0 %v2790
        %3149 = vmatpush.bf16.msra.mxu0 %v2782
        %3150 = vmatpush.bf16.msra.mxu0 %v2774
        %3151 = vmatpush.bf16.msra.mxu0 %v2766
        %3152 = vmatpush.bf16.msra.mxu0 %v2758
        %3153 = vmatpush.bf16.msra.mxu0 %v2750
        %3154 = vmatmul.bf16.gmra.mxu0 %v1353
        %v3155 = vpop.f32.mrf.mxu0
        %v3156 = vadd.f32 %v3143, %v3155
        %v3157 = vpop.f32.mrf.mxu0
        %3158 = vdwg.mxu0
        %3159 = vmatpush.bf16.msra.mxu0 %v2679
        %3160 = vmatpush.bf16.msra.mxu0 %v2671
        %3161 = vmatpush.bf16.msra.mxu0 %v2663
        %3162 = vmatpush.bf16.msra.mxu0 %v2655
        %3163 = vmatpush.bf16.msra.mxu0 %v2647
        %3164 = vmatpush.bf16.msra.mxu0 %v2639
        %3165 = vmatpush.bf16.msra.mxu0 %v2631
        %3166 = vmatpush.bf16.msra.mxu0 %v2623
        %3167 = vmatmul.bf16.gmra.mxu0 %v1351
        %v3168 = vpop.f32.mrf.mxu0
        %v3169 = vadd.f32 %v2039, %v3168
        %v3170 = vpop.f32.mrf.mxu0
        %3171 = vdwg.mxu0
        %3172 = vmatpush.bf16.msra.mxu0 %v2743
        %3173 = vmatpush.bf16.msra.mxu0 %v2735
        %3174 = vmatpush.bf16.msra.mxu0 %v2727
        %3175 = vmatpush.bf16.msra.mxu0 %v2719
        %3176 = vmatpush.bf16.msra.mxu0 %v2711
        %3177 = vmatpush.bf16.msra.mxu0 %v2703
        %3178 = vmatpush.bf16.msra.mxu0 %v2695
        %3179 = vmatpush.bf16.msra.mxu0 %v2687
        %3180 = vmatmul.bf16.gmra.mxu0 %v1352
        %v3181 = vpop.f32.mrf.mxu0
        %v3182 = vadd.f32 %v3169, %v3181
        %v3183 = vpop.f32.mrf.mxu0
        %3184 = vdwg.mxu0
        %3185 = vmatpush.bf16.msra.mxu0 %v2807
        %3186 = vmatpush.bf16.msra.mxu0 %v2799
        %3187 = vmatpush.bf16.msra.mxu0 %v2791
        %3188 = vmatpush.bf16.msra.mxu0 %v2783
        %3189 = vmatpush.bf16.msra.mxu0 %v2775
        %3190 = vmatpush.bf16.msra.mxu0 %v2767
        %3191 = vmatpush.bf16.msra.mxu0 %v2759
        %3192 = vmatpush.bf16.msra.mxu0 %v2751
        %3193 = vmatmul.bf16.gmra.mxu0 %v1353
        %v3194 = vpop.f32.mrf.mxu0
        %v3195 = vadd.f32 %v3182, %v3194
        %v3196 = vpop.f32.mrf.mxu0
        %3197 = vdwg.mxu0
        %3198 = vmatpush.bf16.msra.mxu0 %v2680
        %3199 = vmatpush.bf16.msra.mxu0 %v2672
        %3200 = vmatpush.bf16.msra.mxu0 %v2664
        %3201 = vmatpush.bf16.msra.mxu0 %v2656
        %3202 = vmatpush.bf16.msra.mxu0 %v2648
        %3203 = vmatpush.bf16.msra.mxu0 %v2640
        %3204 = vmatpush.bf16.msra.mxu0 %v2632
        %3205 = vmatpush.bf16.msra.mxu0 %v2624
        %3206 = vmatmul.bf16.gmra.mxu0 %v1351
        %v3207 = vpop.f32.mrf.mxu0
        %v3208 = vadd.f32 %v2040, %v3207
        %v3209 = vpop.f32.mrf.mxu0
        %3210 = vdwg.mxu0
        %3211 = vmatpush.bf16.msra.mxu0 %v2744
        %3212 = vmatpush.bf16.msra.mxu0 %v2736
        %3213 = vmatpush.bf16.msra.mxu0 %v2728
        %3214 = vmatpush.bf16.msra.mxu0 %v2720
        %3215 = vmatpush.bf16.msra.mxu0 %v2712
        %3216 = vmatpush.bf16.msra.mxu0 %v2704
        %3217 = vmatpush.bf16.msra.mxu0 %v2696
        %3218 = vmatpush.bf16.msra.mxu0 %v2688
        %3219 = vmatmul.bf16.gmra.mxu0 %v1352
        %v3220 = vpop.f32.mrf.mxu0
        %v3221 = vadd.f32 %v3208, %v3220
        %v3222 = vpop.f32.mrf.mxu0
        %3223 = vdwg.mxu0
        %3224 = vmatpush.bf16.msra.mxu0 %v2808
        %3225 = vmatpush.bf16.msra.mxu0 %v2800
        %3226 = vmatpush.bf16.msra.mxu0 %v2792
        %3227 = vmatpush.bf16.msra.mxu0 %v2784
        %3228 = vmatpush.bf16.msra.mxu0 %v2776
        %3229 = vmatpush.bf16.msra.mxu0 %v2768
        %3230 = vmatpush.bf16.msra.mxu0 %v2760
        %3231 = vmatpush.bf16.msra.mxu0 %v2752
        %3232 = vmatmul.bf16.gmra.mxu0 %v1353
        %v3233 = vpop.f32.mrf.mxu0
        %v3234 = vadd.f32 %v3221, %v3233
        %v3235 = vpop.f32.mrf.mxu0
        %3236 = vdwg.mxu0
        %3237 = vmatpush.bf16.msra.mxu0 %v2681
        %3238 = vmatpush.bf16.msra.mxu0 %v2673
        %3239 = vmatpush.bf16.msra.mxu0 %v2665
        %3240 = vmatpush.bf16.msra.mxu0 %v2657
        %3241 = vmatpush.bf16.msra.mxu0 %v2649
        %3242 = vmatpush.bf16.msra.mxu0 %v2641
        %3243 = vmatpush.bf16.msra.mxu0 %v2633
        %3244 = vmatpush.bf16.msra.mxu0 %v2625
        %3245 = vmatmul.bf16.gmra.mxu0 %v1351
        %v3246 = vpop.f32.mrf.mxu0
        %v3247 = vadd.f32 %v2041, %v3246
        %v3248 = vpop.f32.mrf.mxu0
        %3249 = vdwg.mxu0
        %3250 = vmatpush.bf16.msra.mxu0 %v2745
        %3251 = vmatpush.bf16.msra.mxu0 %v2737
        %3252 = vmatpush.bf16.msra.mxu0 %v2729
        %3253 = vmatpush.bf16.msra.mxu0 %v2721
        %3254 = vmatpush.bf16.msra.mxu0 %v2713
        %3255 = vmatpush.bf16.msra.mxu0 %v2705
        %3256 = vmatpush.bf16.msra.mxu0 %v2697
        %3257 = vmatpush.bf16.msra.mxu0 %v2689
        %3258 = vmatmul.bf16.gmra.mxu0 %v1352
        %v3259 = vpop.f32.mrf.mxu0
        %v3260 = vadd.f32 %v3247, %v3259
        %v3261 = vpop.f32.mrf.mxu0
        %3262 = vdwg.mxu0
        %3263 = vmatpush.bf16.msra.mxu0 %v2809
        %3264 = vmatpush.bf16.msra.mxu0 %v2801
        %3265 = vmatpush.bf16.msra.mxu0 %v2793
        %3266 = vmatpush.bf16.msra.mxu0 %v2785
        %3267 = vmatpush.bf16.msra.mxu0 %v2777
        %3268 = vmatpush.bf16.msra.mxu0 %v2769
        %3269 = vmatpush.bf16.msra.mxu0 %v2761
        %3270 = vmatpush.bf16.msra.mxu0 %v2753
        %3271 = vmatmul.bf16.gmra.mxu0 %v1353
        %v3272 = vpop.f32.mrf.mxu0
        %v3273 = vadd.f32 %v3260, %v3272
        %v3274 = vpop.f32.mrf.mxu0
        %3275 = vdwg.mxu0
        %3276 = vmatpush.bf16.msra.mxu0 %v2682
        %3277 = vmatpush.bf16.msra.mxu0 %v2674
        %3278 = vmatpush.bf16.msra.mxu0 %v2666
        %3279 = vmatpush.bf16.msra.mxu0 %v2658
        %3280 = vmatpush.bf16.msra.mxu0 %v2650
        %3281 = vmatpush.bf16.msra.mxu0 %v2642
        %3282 = vmatpush.bf16.msra.mxu0 %v2634
        %3283 = vmatpush.bf16.msra.mxu0 %v2626
        %3284 = vmatmul.bf16.gmra.mxu0 %v1351
        %v3285 = vpop.f32.mrf.mxu0
        %v3286 = vadd.f32 %v2042, %v3285
        %v3287 = vpop.f32.mrf.mxu0
        %3288 = vdwg.mxu0
        %3289 = vmatpush.bf16.msra.mxu0 %v2746
        %3290 = vmatpush.bf16.msra.mxu0 %v2738
        %3291 = vmatpush.bf16.msra.mxu0 %v2730
        %3292 = vmatpush.bf16.msra.mxu0 %v2722
        %3293 = vmatpush.bf16.msra.mxu0 %v2714
        %3294 = vmatpush.bf16.msra.mxu0 %v2706
        %3295 = vmatpush.bf16.msra.mxu0 %v2698
        %3296 = vmatpush.bf16.msra.mxu0 %v2690
        %3297 = vmatmul.bf16.gmra.mxu0 %v1352
        %v3298 = vpop.f32.mrf.mxu0
        %v3299 = vadd.f32 %v3286, %v3298
        %v3300 = vpop.f32.mrf.mxu0
        %3301 = vdwg.mxu0
        %3302 = vmatpush.bf16.msra.mxu0 %v2810
        %3303 = vmatpush.bf16.msra.mxu0 %v2802
        %3304 = vmatpush.bf16.msra.mxu0 %v2794
        %3305 = vmatpush.bf16.msra.mxu0 %v2786
        %3306 = vmatpush.bf16.msra.mxu0 %v2778
        %3307 = vmatpush.bf16.msra.mxu0 %v2770
        %3308 = vmatpush.bf16.msra.mxu0 %v2762
        %3309 = vmatpush.bf16.msra.mxu0 %v2754
        %3310 = vmatmul.bf16.gmra.mxu0 %v1353
        %v3311 = vpop.f32.mrf.mxu0
        %v3312 = vadd.f32 %v3299, %v3311
        %v3313 = vpop.f32.mrf.mxu0
        %3314 = vdwg.mxu0
        %v3315 = vld [vmem:[#allocation9] sm:$0xff]
        %v3317 = vperm.slane %v3315, 0
        %v3318 = vperm.slane %v3315, 1
        %v3319 = vperm.slane %v3315, 2
        %v3320 = vperm.slane %v3315, 3
        %v3321 = vperm.slane %v3315, 4
        %v3322 = vperm.slane %v3315, 5
        %v3323 = vperm.slane %v3315, 6
        %v3324 = vperm.slane %v3315, 7
        %v3333 = vadd.f32 %v3039, %v3317
        %v3334 = vadd.f32 %v3078, %v3318
        %v3335 = vadd.f32 %v3117, %v3319
        %v3336 = vadd.f32 %v3156, %v3320
        %v3337 = vadd.f32 %v3195, %v3321
        %v3338 = vadd.f32 %v3234, %v3322
        %v3339 = vadd.f32 %v3273, %v3323
        %v3340 = vadd.f32 %v3312, %v3324
        %v3341 = vld [vmem:[#allocation4] sm:$0xff]
        %v3342 = vld [vmem:[#allocation4 + $0x8] sm:$0xff]
        %v3343 = vld [vmem:[#allocation4 + $0x10] sm:$0xff]
        %v3344 = vld [vmem:[#allocation4 + $0x18] sm:$0xff]
        %v3345 = vld [vmem:[#allocation4 + $0x20] sm:$0xff]
        %v3346 = vld [vmem:[#allocation4 + $0x28] sm:$0xff]
        %v3347 = vld [vmem:[#allocation4 + $0x30] sm:$0xff]
        %v3348 = vld [vmem:[#allocation4 + $0x38] sm:$0xff]
        %v3349 = vadd.f32 %v3333, %v3341
        %v3350 = vadd.f32 %v3334, %v3342
        %v3351 = vadd.f32 %v3335, %v3343
        %v3352 = vadd.f32 %v3336, %v3344
        %v3353 = vadd.f32 %v3337, %v3345
        %v3354 = vadd.f32 %v3338, %v3346
        %v3355 = vadd.f32 %v3339, %v3347
        %v3356 = vadd.f32 %v3340, %v3348
        %3357 = vadd.xlane.f32.xlu0 %v3349
        %v3358 = vpop.xlane.xlu0 %3357
        %v3359 = vrcp.pop 128.0
        %v3360 = vmul.f32 128.0, %v3359
        %v3361 = vsub.f32 1.0, %v3360
        %v3362 = vmul.f32 %v3359, %v3361
        %v3363 = vadd.f32 %v3359, %v3362
        %vm3364 = vweird.f32 %v3359
        %v3365 = vsel %vm3364, %v3359, %v3363
        %v3366 = vmul.f32 %v3358, %v3365
        %v3367 = vsub.f32 %v3349, %v3366
        %v3368 = vmul.f32 %v3367, %v3367
        %3369 = vadd.xlane.f32.xlu0 %v3368
        %v3370 = vpop.xlane.xlu0 %3369
        %v3371 = vmul.f32 %v3370, %v3365
        %v3372 = vadd.f32 %v3371, 1e-05
        %v3373 = vrsqrt.pop %v3372
        %v3374 = vmul.f32 %v3373, %v3372
        %v3375 = vmul.f32 %v3374, %v3373
        %v3376 = vmul.f32 0.5, %v3375
        %v3377 = vsub.f32 1.5, %v3376
        %v3378 = vmul.f32 %v3373, %v3377
        %vm3379 = vweird.f32 %v3372
        %vm3380 = vweird.f32 %v3373
        %vm3381 = vmor %vm3379, %vm3380
        %v3382 = vsel %vm3381, %v3373, %v3378
        %v3383 = vmul.f32 %v3367, %v3382
        %3384 = vadd.xlane.f32.xlu0 %v3350
        %v3385 = vpop.xlane.xlu0 %3384
        %v3386 = vmul.f32 %v3385, %v3365
        %v3387 = vsub.f32 %v3350, %v3386
        %v3388 = vmul.f32 %v3387, %v3387
        %3389 = vadd.xlane.f32.xlu0 %v3388
        %v3390 = vpop.xlane.xlu0 %3389
        %v3391 = vmul.f32 %v3390, %v3365
        %v3392 = vadd.f32 %v3391, 1e-05
        %v3393 = vrsqrt.pop %v3392
        %v3394 = vmul.f32 %v3393, %v3392
        %v3395 = vmul.f32 %v3394, %v3393
        %v3396 = vmul.f32 0.5, %v3395
        %v3397 = vsub.f32 1.5, %v3396
        %v3398 = vmul.f32 %v3393, %v3397
        %vm3399 = vweird.f32 %v3392
        %vm3400 = vweird.f32 %v3393
        %vm3401 = vmor %vm3399, %vm3400
        %v3402 = vsel %vm3401, %v3393, %v3398
        %v3403 = vmul.f32 %v3387, %v3402
        %3404 = vadd.xlane.f32.xlu0 %v3351
        %v3405 = vpop.xlane.xlu0 %3404
        %v3406 = vmul.f32 %v3405, %v3365
        %v3407 = vsub.f32 %v3351, %v3406
        %v3408 = vmul.f32 %v3407, %v3407
        %3409 = vadd.xlane.f32.xlu0 %v3408
        %v3410 = vpop.xlane.xlu0 %3409
        %v3411 = vmul.f32 %v3410, %v3365
        %v3412 = vadd.f32 %v3411, 1e-05
        %v3413 = vrsqrt.pop %v3412
        %v3414 = vmul.f32 %v3413, %v3412
        %v3415 = vmul.f32 %v3414, %v3413
        %v3416 = vmul.f32 0.5, %v3415
        %v3417 = vsub.f32 1.5, %v3416
        %v3418 = vmul.f32 %v3413, %v3417
        %vm3419 = vweird.f32 %v3412
        %vm3420 = vweird.f32 %v3413
        %vm3421 = vmor %vm3419, %vm3420
        %v3422 = vsel %vm3421, %v3413, %v3418
        %v3423 = vmul.f32 %v3407, %v3422
        %3424 = vadd.xlane.f32.xlu0 %v3352
        %v3425 = vpop.xlane.xlu0 %3424
        %v3426 = vmul.f32 %v3425, %v3365
        %v3427 = vsub.f32 %v3352, %v3426
        %v3428 = vmul.f32 %v3427, %v3427
        %3429 = vadd.xlane.f32.xlu0 %v3428
        %v3430 = vpop.xlane.xlu0 %3429
        %v3431 = vmul.f32 %v3430, %v3365
        %v3432 = vadd.f32 %v3431, 1e-05
        %v3433 = vrsqrt.pop %v3432
        %v3434 = vmul.f32 %v3433, %v3432
        %v3435 = vmul.f32 %v3434, %v3433
        %v3436 = vmul.f32 0.5, %v3435
        %v3437 = vsub.f32 1.5, %v3436
        %v3438 = vmul.f32 %v3433, %v3437
        %vm3439 = vweird.f32 %v3432
        %vm3440 = vweird.f32 %v3433
        %vm3441 = vmor %vm3439, %vm3440
        %v3442 = vsel %vm3441, %v3433, %v3438
        %v3443 = vmul.f32 %v3427, %v3442
        %v3444 = vxor.u32 %v3443, 2147483648
        %v3445 = vmul.f32 %v3444, 1.442695
        %v3446 = vpow.pop %v3445
        %v3447 = vadd.f32 %v3446, 1.0
        %v3448 = vrcp.pop %v3447
        %v3449 = vmul.f32 %v3447, %v3448
        %v3450 = vsub.f32 1.0, %v3449
        %v3451 = vmul.f32 %v3448, %v3450
        %v3452 = vadd.f32 %v3448, %v3451
        %vm3453 = vweird.f32 %v3447
        %vm3454 = vweird.f32 %v3448
        %vm3455 = vmor %vm3453, %vm3454
        %v3456 = vsel %vm3455, %v3448, %v3452
        %v3457 = vand.u32 2147483647, %v3447
        %vm3458 = vcmp.eq.f32.partialorder %v3457, 8.507059e+37
        %v3459 = vand.u32 %v3447, 2147483648
        %v3460 = vor.u32 1.1754944e-38, %v3459
        %v3461 = vsel %vm3458, %v3460, %v3456
        %v3462 = vmul.f32 1.0, %v3461
        %3463 = vadd.xlane.f32.xlu0 %v3353
        %v3464 = vpop.xlane.xlu0 %3463
        %v3465 = vmul.f32 %v3464, %v3365
        %v3466 = vsub.f32 %v3353, %v3465
        %v3467 = vmul.f32 %v3466, %v3466
        %3468 = vadd.xlane.f32.xlu0 %v3467
        %v3469 = vpop.xlane.xlu0 %3468
        %v3470 = vmul.f32 %v3469, %v3365
        %v3471 = vadd.f32 %v3470, 1e-05
        %v3472 = vrsqrt.pop %v3471
        %v3473 = vmul.f32 %v3472, %v3471
        %v3474 = vmul.f32 %v3473, %v3472
        %v3475 = vmul.f32 0.5, %v3474
        %v3476 = vsub.f32 1.5, %v3475
        %v3477 = vmul.f32 %v3472, %v3476
        %vm3478 = vweird.f32 %v3471
        %vm3479 = vweird.f32 %v3472
        %vm3480 = vmor %vm3478, %vm3479
        %v3481 = vsel %vm3480, %v3472, %v3477
        %v3482 = vmul.f32 %v3466, %v3481
        %v3483 = vxor.u32 %v3482, 2147483648
        %v3484 = vmul.f32 %v3483, 1.442695
        %v3485 = vpow.pop %v3484
        %v3486 = vadd.f32 %v3485, 1.0
        %v3487 = vrcp.pop %v3486
        %v3488 = vmul.f32 %v3486, %v3487
        %v3489 = vsub.f32 1.0, %v3488
        %v3490 = vmul.f32 %v3487, %v3489
        %v3491 = vadd.f32 %v3487, %v3490
        %vm3492 = vweird.f32 %v3486
        %vm3493 = vweird.f32 %v3487
        %vm3494 = vmor %vm3492, %vm3493
        %v3495 = vsel %vm3494, %v3487, %v3491
        %v3496 = vand.u32 2147483647, %v3486
        %vm3497 = vcmp.eq.f32.partialorder %v3496, 8.507059e+37
        %v3498 = vand.u32 %v3486, 2147483648
        %v3499 = vor.u32 1.1754944e-38, %v3498
        %v3500 = vsel %vm3497, %v3499, %v3495
        %v3501 = vmul.f32 1.0, %v3500
        %3502 = vadd.xlane.f32.xlu0 %v3354
        %v3503 = vpop.xlane.xlu0 %3502
        %v3504 = vmul.f32 %v3503, %v3365
        %v3505 = vsub.f32 %v3354, %v3504
        %v3506 = vmul.f32 %v3505, %v3505
        %3507 = vadd.xlane.f32.xlu0 %v3506
        %v3508 = vpop.xlane.xlu0 %3507
        %v3509 = vmul.f32 %v3508, %v3365
        %v3510 = vadd.f32 %v3509, 1e-05
        %v3511 = vrsqrt.pop %v3510
        %v3512 = vmul.f32 %v3511, %v3510
        %v3513 = vmul.f32 %v3512, %v3511
        %v3514 = vmul.f32 0.5, %v3513
        %v3515 = vsub.f32 1.5, %v3514
        %v3516 = vmul.f32 %v3511, %v3515
        %vm3517 = vweird.f32 %v3510
        %vm3518 = vweird.f32 %v3511
        %vm3519 = vmor %vm3517, %vm3518
        %v3520 = vsel %vm3519, %v3511, %v3516
        %v3521 = vmul.f32 %v3505, %v3520
        %v3522 = vxor.u32 %v3521, 2147483648
        %v3523 = vmul.f32 %v3522, 1.442695
        %v3524 = vpow.pop %v3523
        %v3525 = vadd.f32 %v3524, 1.0
        %v3526 = vrcp.pop %v3525
        %v3527 = vmul.f32 %v3525, %v3526
        %v3528 = vsub.f32 1.0, %v3527
        %v3529 = vmul.f32 %v3526, %v3528
        %v3530 = vadd.f32 %v3526, %v3529
        %vm3531 = vweird.f32 %v3525
        %vm3532 = vweird.f32 %v3526
        %vm3533 = vmor %vm3531, %vm3532
        %v3534 = vsel %vm3533, %v3526, %v3530
        %v3535 = vand.u32 2147483647, %v3525
        %vm3536 = vcmp.eq.f32.partialorder %v3535, 8.507059e+37
        %v3537 = vand.u32 %v3525, 2147483648
        %v3538 = vor.u32 1.1754944e-38, %v3537
        %v3539 = vsel %vm3536, %v3538, %v3534
        %v3540 = vmul.f32 1.0, %v3539
        %3541 = vadd.xlane.f32.xlu0 %v3356
        %v3542 = vpop.xlane.xlu0 %3541
        %v3543 = vmul.f32 %v3542, %v3365
        %v3544 = vsub.f32 %v3356, %v3543
        %v3545 = vmul.f32 %v3544, %v3544
        %3546 = vadd.xlane.f32.xlu0 %v3545
        %v3547 = vpop.xlane.xlu0 %3546
        %v3548 = vmul.f32 %v3547, %v3365
        %v3549 = vadd.f32 %v3548, 1e-05
        %v3550 = vrsqrt.pop %v3549
        %v3551 = vmul.f32 %v3550, %v3549
        %v3552 = vmul.f32 %v3551, %v3550
        %v3553 = vmul.f32 0.5, %v3552
        %v3554 = vsub.f32 1.5, %v3553
        %v3555 = vmul.f32 %v3550, %v3554
        %vm3556 = vweird.f32 %v3549
        %vm3557 = vweird.f32 %v3550
        %vm3558 = vmor %vm3556, %vm3557
        %v3559 = vsel %vm3558, %v3550, %v3555
        %v3560 = vmul.f32 %v3544, %v3559
        %v3561 = vxor.u32 %v3560, 2147483648
        %v3562 = vmul.f32 %v3561, 1.442695
        %v3563 = vpow.pop %v3562
        %v3564 = vadd.f32 %v3563, 1.0
        %v3565 = vrcp.pop %v3564
        %v3566 = vmul.f32 %v3564, %v3565
        %v3567 = vsub.f32 1.0, %v3566
        %v3568 = vmul.f32 %v3565, %v3567
        %v3569 = vadd.f32 %v3565, %v3568
        %vm3570 = vweird.f32 %v3564
        %vm3571 = vweird.f32 %v3565
        %vm3572 = vmor %vm3570, %vm3571
        %v3573 = vsel %vm3572, %v3565, %v3569
        %v3574 = vand.u32 2147483647, %v3564
        %vm3575 = vcmp.eq.f32.partialorder %v3574, 8.507059e+37
        %v3576 = vand.u32 %v3564, 2147483648
        %v3577 = vor.u32 1.1754944e-38, %v3576
        %v3578 = vsel %vm3575, %v3577, %v3573
        %v3579 = vmul.f32 1.0, %v3578
        %v3580 = vtanh.pop %v3355
        %v3581 = vld [vmem:[#allocation5] sm:$0xff]
        %v3582 = vmul.f32 %v3540, %v3581
        %v3583 = vadd.f32 %v3580, %v3582
        %v3584 = vmax.f32 %v3383, %v3403
        %v3585 = vmax.f32 %v3584, %v3423
        %v3586 = vsub.f32 %v3383, %v3585
        %v3587 = vmul.f32 %v3586, 1.442695
        %v3588 = vpow.pop %v3587
        %v3589 = vsub.f32 %v3403, %v3585
        %v3590 = vmul.f32 %v3589, 1.442695
        %v3591 = vpow.pop %v3590
        %v3592 = vsub.f32 %v3423, %v3585
        %v3593 = vmul.f32 %v3592, 1.442695
        %v3594 = vpow.pop %v3593
        %v3595 = vadd.f32 %v3588, %v3591
        %v3596 = vadd.f32 %v3595, %v3594
        %v3597 = vrcp.pop %v3596
        %v3598 = vmul.f32 %v3588, %v3597
        %v3599 = vmul.f32 %v3591, %v3597
        %v3600 = vmul.f32 %v3594, %v3597
        %v3602 = vperm.slane %v1279, 0
        %v3604 = vmul.f32 %v1349, %v3598
        %v3605 = vmul.f32 %v1350, %v3599
        %v3606 = vadd.f32 %v3604, %v3605
        %v3607 = vmul.f32 %v1277, %v3600
        %v3608 = vadd.f32 %v3606, %v3607
        %v3609 = vsub.f32 1.0, %v3462
        %v3610 = vmul.f32 %v3608, %v3609
        %v3611 = vmul.f32 %v3602, %v3462
        %v3612 = vadd.f32 %v3610, %v3611
        %v3613 = vmul.f32 %v3583, %v3501
        %v3614 = vsub.f32 1.0, %v3501
        %v3615 = vmul.f32 %v3612, %v3614
        %v3616 = vadd.f32 %v3613, %v3615
        %v3617 = vtanh.pop %v3616
        %v3618 = vmul.f32 %v3579, %v3617
        %v3619 = vadd.f32 %v3618, %v1276
        %3620 = vadd.xlane.f32.xlu0 %v3619
        %v3621 = vpop.xlane.xlu0 %3620
        %v3622 = vmul.f32 %v3621, %v3365
        %v3623 = vsub.f32 %v3619, %v3622
        %v3624 = vmul.f32 %v3623, %v3623
        %3625 = vadd.xlane.f32.xlu0 %v3624
        %v3626 = vpop.xlane.xlu0 %3625
        %v3627 = vmul.f32 %v3626, %v3365
        %v3628 = vadd.f32 %v3627, 1e-05
        %v3629 = vrsqrt.pop %v3628
        %v3630 = vmul.f32 %v3629, %v3628
        %v3631 = vmul.f32 %v3630, %v3629
        %v3632 = vmul.f32 0.5, %v3631
        %v3633 = vsub.f32 1.5, %v3632
        %v3634 = vmul.f32 %v3629, %v3633
        %vm3635 = vweird.f32 %v3628
        %vm3636 = vweird.f32 %v3629
        %vm3637 = vmor %vm3635, %vm3636
        %v3638 = vsel %vm3637, %v3629, %v3634
        %v3639 = vmul.f32 %v3623, %v3638
        %3640 = vst [vmem:[%s647] sm:$0xff] %v3639
        %v3641 = vmul.f32 %v3639, %v1345
        %v3642 = vmul.f32 %v3616, %v1345
        %3643 = vst [vmem:[%s621] sm:$0xff] %v3641
        %3644 = vst [vmem:[%s628] sm:$0xff] %v3642
        %v3645 = vrot.slane %v3641, 4
        %v3646 = vadd.f32 %v3641, %v3645
        %v3647 = vrot.slane %v3646, 2
        %v3648 = vadd.f32 %v3646, %v3647
        %v3649 = vrot.slane %v3648, 1
        %v3650 = vadd.f32 %v3648, %v3649
        %3652 = vset.pattern.permute.xlu0 0
        %3653 = vperm.xlu0 %3652, %v668
        %v3654 = vpop.permute.xlu0 %3653
        %v3656 = vmul.f32 %v3650, %v3654
        %v3657 = vpack.c.bf16 %v3656, %v3656
        %v3658 = vld [vmem:[#allocation14] sm:$0xff]
        %v3659 = vld [vmem:[#allocation14 + $0x8] sm:$0xff]
        %v3660 = vld [vmem:[#allocation14 + $0x10] sm:$0xff]
        %v3661 = vld [vmem:[#allocation14 + $0x18] sm:$0xff]
        %v3662 = vld [vmem:[#allocation14 + $0x20] sm:$0xff]
        %v3663 = vld [vmem:[#allocation14 + $0x28] sm:$0xff]
        %v3664 = vld [vmem:[#allocation14 + $0x30] sm:$0xff]
        %v3665 = vld [vmem:[#allocation14 + $0x38] sm:$0xff]
        %v3666 = vld [vmem:[#allocation14 + $0x40] sm:$0xff]
        %v3667 = vld [vmem:[#allocation14 + $0x48] sm:$0xff]
        %v3668 = vld [vmem:[#allocation14 + $0x50] sm:$0xff]
        %v3669 = vld [vmem:[#allocation14 + $0x58] sm:$0xff]
        %v3670 = vld [vmem:[#allocation14 + $0x60] sm:$0xff]
        %v3671 = vld [vmem:[#allocation14 + $0x68] sm:$0xff]
        %v3672 = vld [vmem:[#allocation14 + $0x70] sm:$0xff]
        %v3673 = vld [vmem:[#allocation14 + $0x78] sm:$0xff]
        %v3674 = vld [vmem:[#allocation14 + $0x80] sm:$0xff]
        %v3675 = vld [vmem:[#allocation14 + $0x88] sm:$0xff]
        %v3676 = vld [vmem:[#allocation14 + $0x90] sm:$0xff]
        %v3677 = vld [vmem:[#allocation14 + $0x98] sm:$0xff]
        %v3678 = vld [vmem:[#allocation14 + $0xa0] sm:$0xff]
        %v3679 = vld [vmem:[#allocation14 + $0xa8] sm:$0xff]
        %v3680 = vld [vmem:[#allocation14 + $0xb0] sm:$0xff]
        %v3681 = vld [vmem:[#allocation14 + $0xb8] sm:$0xff]
        %v3682 = vld [vmem:[#allocation14 + $0xc0] sm:$0xff]
        %v3683 = vld [vmem:[#allocation14 + $0xc8] sm:$0xff]
        %v3684 = vld [vmem:[#allocation14 + $0xd0] sm:$0xff]
        %v3685 = vld [vmem:[#allocation14 + $0xd8] sm:$0xff]
        %v3686 = vld [vmem:[#allocation14 + $0xe0] sm:$0xff]
        %v3687 = vld [vmem:[#allocation14 + $0xe8] sm:$0xff]
        %v3688 = vld [vmem:[#allocation14 + $0xf0] sm:$0xff]
        %v3689 = vld [vmem:[#allocation14 + $0xf8] sm:$0xff]
        %v3690 = vld [vmem:[%s8] sm:$0x3]
        %v3723 = vunpack.c.l.b16 %v3658
        %v3724 = vunpack.c.h.b16 %v3658
        %v3725 = vunpack.c.l.b16 %v3659
        %v3726 = vunpack.c.h.b16 %v3659
        %v3727 = vunpack.c.l.b16 %v3660
        %v3728 = vunpack.c.h.b16 %v3660
        %v3729 = vunpack.c.l.b16 %v3661
        %v3730 = vunpack.c.h.b16 %v3661
        %v3731 = vunpack.c.l.b16 %v3662
        %v3732 = vunpack.c.h.b16 %v3662
        %v3733 = vunpack.c.l.b16 %v3663
        %v3734 = vunpack.c.h.b16 %v3663
        %v3735 = vunpack.c.l.b16 %v3664
        %v3736 = vunpack.c.h.b16 %v3664
        %v3737 = vunpack.c.l.b16 %v3665
        %v3738 = vunpack.c.h.b16 %v3665
        %v3739 = vunpack.c.l.b16 %v3666
        %v3740 = vunpack.c.h.b16 %v3666
        %v3741 = vunpack.c.l.b16 %v3667
        %v3742 = vunpack.c.h.b16 %v3667
        %v3743 = vunpack.c.l.b16 %v3668
        %v3744 = vunpack.c.h.b16 %v3668
        %v3745 = vunpack.c.l.b16 %v3669
        %v3746 = vunpack.c.h.b16 %v3669
        %v3747 = vunpack.c.l.b16 %v3670
        %v3748 = vunpack.c.h.b16 %v3670
        %v3749 = vunpack.c.l.b16 %v3671
        %v3750 = vunpack.c.h.b16 %v3671
        %v3751 = vunpack.c.l.b16 %v3672
        %v3752 = vunpack.c.h.b16 %v3672
        %v3753 = vunpack.c.l.b16 %v3673
        %v3754 = vunpack.c.h.b16 %v3673
        %v3755 = vunpack.c.l.b16 %v3674
        %v3756 = vunpack.c.h.b16 %v3674
        %v3757 = vunpack.c.l.b16 %v3675
        %v3758 = vunpack.c.h.b16 %v3675
        %v3759 = vunpack.c.l.b16 %v3676
        %v3760 = vunpack.c.h.b16 %v3676
        %v3761 = vunpack.c.l.b16 %v3677
        %v3762 = vunpack.c.h.b16 %v3677
        %v3763 = vunpack.c.l.b16 %v3678
        %v3764 = vunpack.c.h.b16 %v3678
        %v3765 = vunpack.c.l.b16 %v3679
        %v3766 = vunpack.c.h.b16 %v3679
        %v3767 = vunpack.c.l.b16 %v3680
        %v3768 = vunpack.c.h.b16 %v3680
        %v3769 = vunpack.c.l.b16 %v3681
        %v3770 = vunpack.c.h.b16 %v3681
        %v3771 = vunpack.c.l.b16 %v3682
        %v3772 = vunpack.c.h.b16 %v3682
        %v3773 = vunpack.c.l.b16 %v3683
        %v3774 = vunpack.c.h.b16 %v3683
        %v3775 = vunpack.c.l.b16 %v3684
        %v3776 = vunpack.c.h.b16 %v3684
        %v3777 = vunpack.c.l.b16 %v3685
        %v3778 = vunpack.c.h.b16 %v3685
        %v3779 = vunpack.c.l.b16 %v3686
        %v3780 = vunpack.c.h.b16 %v3686
        %v3781 = vunpack.c.l.b16 %v3687
        %v3782 = vunpack.c.h.b16 %v3687
        %v3783 = vunpack.c.l.b16 %v3688
        %v3784 = vunpack.c.h.b16 %v3688
        %v3785 = vunpack.c.l.b16 %v3689
        %v3786 = vunpack.c.h.b16 %v3689
        %v3787 = vpack.c.b16 %v3725, %v3723
        %v3788 = vpack.c.b16 %v3726, %v3724
        %v3789 = vpack.c.b16 %v3729, %v3727
        %v3790 = vpack.c.b16 %v3730, %v3728
        %v3791 = vpack.c.b16 %v3733, %v3731
        %v3792 = vpack.c.b16 %v3734, %v3732
        %v3793 = vpack.c.b16 %v3737, %v3735
        %v3794 = vpack.c.b16 %v3738, %v3736
        %v3795 = vpack.c.b16 %v3741, %v3739
        %v3796 = vpack.c.b16 %v3742, %v3740
        %v3797 = vpack.c.b16 %v3745, %v3743
        %v3798 = vpack.c.b16 %v3746, %v3744
        %v3799 = vpack.c.b16 %v3749, %v3747
        %v3800 = vpack.c.b16 %v3750, %v3748
        %v3801 = vpack.c.b16 %v3753, %v3751
        %v3802 = vpack.c.b16 %v3754, %v3752
        %v3803 = vpack.c.b16 %v3757, %v3755
        %v3804 = vpack.c.b16 %v3758, %v3756
        %v3805 = vpack.c.b16 %v3761, %v3759
        %v3806 = vpack.c.b16 %v3762, %v3760
        %v3807 = vpack.c.b16 %v3765, %v3763
        %v3808 = vpack.c.b16 %v3766, %v3764
        %v3809 = vpack.c.b16 %v3769, %v3767
        %v3810 = vpack.c.b16 %v3770, %v3768
        %v3811 = vpack.c.b16 %v3773, %v3771
        %v3812 = vpack.c.b16 %v3774, %v3772
        %v3813 = vpack.c.b16 %v3777, %v3775
        %v3814 = vpack.c.b16 %v3778, %v3776
        %v3815 = vpack.c.b16 %v3781, %v3779
        %v3816 = vpack.c.b16 %v3782, %v3780
        %v3817 = vpack.c.b16 %v3785, %v3783
        %v3818 = vpack.c.b16 %v3786, %v3784
        %v3852 = vperm.slane %v3690, 0
        %v3853 = vperm.slane %v3690, 1
        %3856 = vmatpush.bf16.msra.mxu0 %v3801
        %3857 = vmatpush.bf16.msra.mxu0 %v3799
        %3858 = vmatpush.bf16.msra.mxu0 %v3797
        %3859 = vmatpush.bf16.msra.mxu0 %v3795
        %3860 = vmatpush.bf16.msra.mxu0 %v3793
        %3861 = vmatpush.bf16.msra.mxu0 %v3791
        %3862 = vmatpush.bf16.msra.mxu0 %v3789
        %3863 = vmatpush.bf16.msra.mxu0 %v3787
        %3864 = vmatmul.bf16.gmra.mxu0 %v1546
        %v3865 = vpop.f32.mrf.mxu0
        %v3866 = vadd.f32 %v3852, %v3865
        %v3867 = vpop.f32.mrf.mxu0
        %3868 = vdwg.mxu0
        %3869 = vmatpush.bf16.msra.mxu0 %v3817
        %3870 = vmatpush.bf16.msra.mxu0 %v3815
        %3871 = vmatpush.bf16.msra.mxu0 %v3813
        %3872 = vmatpush.bf16.msra.mxu0 %v3811
        %3873 = vmatpush.bf16.msra.mxu0 %v3809
        %3874 = vmatpush.bf16.msra.mxu0 %v3807
        %3875 = vmatpush.bf16.msra.mxu0 %v3805
        %3876 = vmatpush.bf16.msra.mxu0 %v3803
        %3877 = vmatmul.bf16.gmra.mxu0 %v3657
        %v3878 = vpop.f32.mrf.mxu0
        %v3879 = vadd.f32 %v3866, %v3878
        %v3880 = vpop.f32.mrf.mxu0
        %3881 = vdwg.mxu0
        %3882 = vmatpush.bf16.msra.mxu0 %v3802
        %3883 = vmatpush.bf16.msra.mxu0 %v3800
        %3884 = vmatpush.bf16.msra.mxu0 %v3798
        %3885 = vmatpush.bf16.msra.mxu0 %v3796
        %3886 = vmatpush.bf16.msra.mxu0 %v3794
        %3887 = vmatpush.bf16.msra.mxu0 %v3792
        %3888 = vmatpush.bf16.msra.mxu0 %v3790
        %3889 = vmatpush.bf16.msra.mxu0 %v3788
        %3890 = vmatmul.bf16.gmra.mxu0 %v1546
        %v3891 = vpop.f32.mrf.mxu0
        %v3892 = vadd.f32 %v3853, %v3891
        %v3893 = vpop.f32.mrf.mxu0
        %3894 = vdwg.mxu0
        %3895 = vmatpush.bf16.msra.mxu0 %v3818
        %3896 = vmatpush.bf16.msra.mxu0 %v3816
        %3897 = vmatpush.bf16.msra.mxu0 %v3814
        %3898 = vmatpush.bf16.msra.mxu0 %v3812
        %3899 = vmatpush.bf16.msra.mxu0 %v3810
        %3900 = vmatpush.bf16.msra.mxu0 %v3808
        %3901 = vmatpush.bf16.msra.mxu0 %v3806
        %3902 = vmatpush.bf16.msra.mxu0 %v3804
        %3903 = vmatmul.bf16.gmra.mxu0 %v3657
        %v3904 = vpop.f32.mrf.mxu0
        %v3905 = vadd.f32 %v3892, %v3904
        %v3906 = vpop.f32.mrf.mxu0
        %3907 = vdwg.mxu0
        %vm3908 = vcmask 1040384
        %v3909 = vsel %vm3908, %v3879, 0.0
        %3910 = vadd.xlane.f32.xlu0 %v3909
        %v3911 = vpop.xlane.xlu0 %3910
        %v3912 = vmul.f32 %v3911, %v3365
        %v3913 = vsub.f32 %v3879, %v3912
        %v3914 = vmul.f32 %v3913, %v3913
        %v3915 = vsel %vm3908, %v3914, 0.0
        %3916 = vadd.xlane.f32.xlu0 %v3915
        %v3917 = vpop.xlane.xlu0 %3916
        %v3918 = vmul.f32 %v3917, %v3365
        %v3919 = vadd.f32 %v3918, 1e-05
        %v3920 = vrsqrt.pop %v3919
        %v3921 = vmul.f32 %v3920, %v3919
        %v3922 = vmul.f32 %v3921, %v3920
        %v3923 = vmul.f32 0.5, %v3922
        %v3924 = vsub.f32 1.5, %v3923
        %v3925 = vmul.f32 %v3920, %v3924
        %vm3926 = vweird.f32 %v3919
        %vm3927 = vweird.f32 %v3920
        %vm3928 = vmor %vm3926, %vm3927
        %v3929 = vsel %vm3928, %v3920, %v3925
        %v3930 = vmul.f32 %v3913, %v3929
        %v3931 = vxor.u32 %v3930, 2147483648
        %v3932 = vmul.f32 %v3931, 1.442695
        %v3933 = vpow.pop %v3932
        %v3934 = vadd.f32 %v3933, 1.0
        %v3935 = vrcp.pop %v3934
        %v3936 = vmul.f32 %v3934, %v3935
        %v3937 = vsub.f32 1.0, %v3936
        %v3938 = vmul.f32 %v3935, %v3937
        %v3939 = vadd.f32 %v3935, %v3938
        %vm3940 = vweird.f32 %v3934
        %vm3941 = vweird.f32 %v3935
        %vm3942 = vmor %vm3940, %vm3941
        %v3943 = vsel %vm3942, %v3935, %v3939
        %v3944 = vand.u32 2147483647, %v3934
        %vm3945 = vcmp.eq.f32.partialorder %v3944, 8.507059e+37
        %v3946 = vand.u32 %v3934, 2147483648
        %v3947 = vor.u32 1.1754944e-38, %v3946
        %v3948 = vsel %vm3945, %v3947, %v3943
        %v3949 = vmul.f32 1.0, %v3948
        %v3950 = vsel %vm3908, %v3905, 0.0
        %3951 = vadd.xlane.f32.xlu0 %v3950
        %v3952 = vpop.xlane.xlu0 %3951
        %v3953 = vmul.f32 %v3952, %v3365
        %v3954 = vsub.f32 %v3905, %v3953
        %v3955 = vmul.f32 %v3954, %v3954
        %v3956 = vsel %vm3908, %v3955, 0.0
        %3957 = vadd.xlane.f32.xlu0 %v3956
        %v3958 = vpop.xlane.xlu0 %3957
        %v3959 = vmul.f32 %v3958, %v3365
        %v3960 = vadd.f32 %v3959, 1e-05
        %v3961 = vrsqrt.pop %v3960
        %v3962 = vmul.f32 %v3961, %v3960
        %v3963 = vmul.f32 %v3962, %v3961
        %v3964 = vmul.f32 0.5, %v3963
        %v3965 = vsub.f32 1.5, %v3964
        %v3966 = vmul.f32 %v3961, %v3965
        %vm3967 = vweird.f32 %v3960
        %vm3968 = vweird.f32 %v3961
        %vm3969 = vmor %vm3967, %vm3968
        %v3970 = vsel %vm3969, %v3961, %v3966
        %v3971 = vmul.f32 %v3954, %v3970
        %v3972 = vxor.u32 %v3971, 2147483648
        %v3973 = vmul.f32 %v3972, 1.442695
        %v3974 = vpow.pop %v3973
        %v3975 = vadd.f32 %v3974, 1.0
        %v3976 = vrcp.pop %v3975
        %v3977 = vmul.f32 %v3975, %v3976
        %v3978 = vsub.f32 1.0, %v3977
        %v3979 = vmul.f32 %v3976, %v3978
        %v3980 = vadd.f32 %v3976, %v3979
        %vm3981 = vweird.f32 %v3975
        %vm3982 = vweird.f32 %v3976
        %vm3983 = vmor %vm3981, %vm3982
        %v3984 = vsel %vm3983, %v3976, %v3980
        %v3985 = vand.u32 2147483647, %v3975
        %vm3986 = vcmp.eq.f32.partialorder %v3985, 8.507059e+37
        %v3987 = vand.u32 %v3975, 2147483648
        %v3988 = vor.u32 1.1754944e-38, %v3987
        %v3989 = vsel %vm3986, %v3988, %v3984
        %v3990 = vmul.f32 1.0, %v3989
        %v3991 = vpack.c.bf16 %v3641, %v3641
        %v3992 = vld [vmem:[#allocation15 + $0x40] sm:$0xf]
        %v3993 = vld [vmem:[#allocation15 + $0x44] sm:$0xf]
        %v3994 = vld [vmem:[#allocation15 + $0x48] sm:$0xf]
        %v3995 = vld [vmem:[#allocation15 + $0x4c] sm:$0xf]
        %v3996 = vld [vmem:[#allocation15 + $0x50] sm:$0xf]
        %v3997 = vld [vmem:[#allocation15 + $0x54] sm:$0xf]
        %v3998 = vld [vmem:[#allocation15 + $0x58] sm:$0xf]
        %v3999 = vld [vmem:[#allocation15 + $0x5c] sm:$0xf]
        %v4000 = vld [vmem:[#allocation15 + $0x60] sm:$0xf]
        %v4001 = vld [vmem:[#allocation15 + $0x64] sm:$0xf]
        %v4002 = vld [vmem:[#allocation15 + $0x68] sm:$0xf]
        %v4003 = vld [vmem:[#allocation15 + $0x6c] sm:$0xf]
        %v4004 = vld [vmem:[#allocation15 + $0x70] sm:$0xf]
        %v4005 = vld [vmem:[#allocation15 + $0x74] sm:$0xf]
        %v4006 = vld [vmem:[#allocation15 + $0x78] sm:$0xf]
        %v4007 = vld [vmem:[#allocation15 + $0x7c] sm:$0xf]
        %v4008 = vld [vmem:[#allocation15] sm:$0xf]
        %v4009 = vld [vmem:[#allocation15 + $0x4] sm:$0xf]
        %v4010 = vld [vmem:[#allocation15 + $0x8] sm:$0xf]
        %v4011 = vld [vmem:[#allocation15 + $0xc] sm:$0xf]
        %v4012 = vld [vmem:[#allocation15 + $0x10] sm:$0xf]
        %v4013 = vld [vmem:[#allocation15 + $0x14] sm:$0xf]
        %v4014 = vld [vmem:[#allocation15 + $0x18] sm:$0xf]
        %v4015 = vld [vmem:[#allocation15 + $0x1c] sm:$0xf]
        %v4016 = vld [vmem:[#allocation15 + $0x20] sm:$0xf]
        %v4017 = vld [vmem:[#allocation15 + $0x24] sm:$0xf]
        %v4018 = vld [vmem:[#allocation15 + $0x28] sm:$0xf]
        %v4019 = vld [vmem:[#allocation15 + $0x2c] sm:$0xf]
        %v4020 = vld [vmem:[#allocation15 + $0x30] sm:$0xf]
        %v4021 = vld [vmem:[#allocation15 + $0x34] sm:$0xf]
        %v4022 = vld [vmem:[#allocation15 + $0x38] sm:$0xf]
        %v4023 = vld [vmem:[#allocation15 + $0x3c] sm:$0xf]
        %v4040 = vunpack.c.l.b16 %v4008
        %v4041 = vunpack.c.l.b16 %v4009
        %v4042 = vunpack.c.l.b16 %v4010
        %v4043 = vunpack.c.l.b16 %v4011
        %v4044 = vunpack.c.l.b16 %v4012
        %v4045 = vunpack.c.l.b16 %v4013
        %v4046 = vunpack.c.l.b16 %v4014
        %v4047 = vunpack.c.l.b16 %v4015
        %v4048 = vunpack.c.l.b16 %v4016
        %v4049 = vunpack.c.l.b16 %v4017
        %v4050 = vunpack.c.l.b16 %v4018
        %v4051 = vunpack.c.l.b16 %v4019
        %v4052 = vunpack.c.l.b16 %v4020
        %v4053 = vunpack.c.l.b16 %v4021
        %v4054 = vunpack.c.l.b16 %v4022
        %v4055 = vunpack.c.l.b16 %v4023
        %v4056 = vpack.c.b16 %v4041, %v4040
        %v4057 = vpack.c.b16 %v4043, %v4042
        %v4058 = vpack.c.b16 %v4045, %v4044
        %v4059 = vpack.c.b16 %v4047, %v4046
        %v4060 = vpack.c.b16 %v4049, %v4048
        %v4061 = vpack.c.b16 %v4051, %v4050
        %v4062 = vpack.c.b16 %v4053, %v4052
        %v4063 = vpack.c.b16 %v4055, %v4054
        %4072 = vmatpush.bf16.msra.mxu0 %v4063
        %4073 = vmatpush.bf16.msra.mxu0 %v4062
        %4074 = vmatpush.bf16.msra.mxu0 %v4061
        %4075 = vmatpush.bf16.msra.mxu0 %v4060
        %4076 = vmatpush.bf16.msra.mxu0 %v4059
        %4077 = vmatpush.bf16.msra.mxu0 %v4058
        %4078 = vmatpush.bf16.msra.mxu0 %v4057
        %4079 = vmatpush.bf16.msra.mxu0 %v4056
        %4080 = vmatmul.bf16.gmra.mxu0 %v1546
        %v4081 = vpop.f32.mrf.mxu0
        %v4082 = vadd.f32 0.0, %v4081
        %v4083 = vpop.f32.mrf.mxu0
        %4084 = vdwg.mxu0
        %v4085 = vperm.slane %v4082, 0
        %v4102 = vunpack.c.l.b16 %v3992
        %v4103 = vunpack.c.l.b16 %v3993
        %v4104 = vunpack.c.l.b16 %v3994
        %v4105 = vunpack.c.l.b16 %v3995
        %v4106 = vunpack.c.l.b16 %v3996
        %v4107 = vunpack.c.l.b16 %v3997
        %v4108 = vunpack.c.l.b16 %v3998
        %v4109 = vunpack.c.l.b16 %v3999
        %v4110 = vunpack.c.l.b16 %v4000
        %v4111 = vunpack.c.l.b16 %v4001
        %v4112 = vunpack.c.l.b16 %v4002
        %v4113 = vunpack.c.l.b16 %v4003
        %v4114 = vunpack.c.l.b16 %v4004
        %v4115 = vunpack.c.l.b16 %v4005
        %v4116 = vunpack.c.l.b16 %v4006
        %v4117 = vunpack.c.l.b16 %v4007
        %v4118 = vpack.c.b16 %v4103, %v4102
        %v4119 = vpack.c.b16 %v4105, %v4104
        %v4120 = vpack.c.b16 %v4107, %v4106
        %v4121 = vpack.c.b16 %v4109, %v4108
        %v4122 = vpack.c.b16 %v4111, %v4110
        %v4123 = vpack.c.b16 %v4113, %v4112
        %v4124 = vpack.c.b16 %v4115, %v4114
        %v4125 = vpack.c.b16 %v4117, %v4116
        %4134 = vmatpush.bf16.msra.mxu0 %v4125
        %4135 = vmatpush.bf16.msra.mxu0 %v4124
        %4136 = vmatpush.bf16.msra.mxu0 %v4123
        %4137 = vmatpush.bf16.msra.mxu0 %v4122
        %4138 = vmatpush.bf16.msra.mxu0 %v4121
        %4139 = vmatpush.bf16.msra.mxu0 %v4120
        %4140 = vmatpush.bf16.msra.mxu0 %v4119
        %4141 = vmatpush.bf16.msra.mxu0 %v4118
        %4142 = vmatmul.bf16.gmra.mxu0 %v3991
        %v4143 = vpop.f32.mrf.mxu0
        %v4144 = vadd.f32 %v4085, %v4143
        %v4145 = vpop.f32.mrf.mxu0
        %4146 = vdwg.mxu0
        %v4147 = vld [vmem:[%s10] sm:$0x1]
        %v4149 = vperm.slane %v4147, 0
        %v4151 = vadd.f32 %v4144, %v4149
        %4152 = vadd.xlane.f32.xlu0 %v4151
        %v4153 = vpop.xlane.xlu0 %4152
        %v4154 = vmul.f32 %v4153, %v3365
        %v4155 = vsub.f32 %v4151, %v4154
        %v4156 = vmul.f32 %v4155, %v4155
        %4157 = vadd.xlane.f32.xlu0 %v4156
        %v4158 = vpop.xlane.xlu0 %4157
        %v4159 = vmul.f32 %v4158, %v3365
        %v4160 = vadd.f32 %v4159, 1e-05
        %v4161 = vrsqrt.pop %v4160
        %v4162 = vmul.f32 %v4161, %v4160
        %v4163 = vmul.f32 %v4162, %v4161
        %v4164 = vmul.f32 0.5, %v4163
        %v4165 = vsub.f32 1.5, %v4164
        %v4166 = vmul.f32 %v4161, %v4165
        %vm4167 = vweird.f32 %v4160
        %vm4168 = vweird.f32 %v4161
        %vm4169 = vmor %vm4167, %vm4168
        %v4170 = vsel %vm4169, %v4161, %v4166
        %v4171 = vmul.f32 %v4155, %v4170
        %v4172 = vxor.u32 %v4171, 2147483648
        %v4173 = vmul.f32 %v4172, 1.442695
        %v4174 = vpow.pop %v4173
        %v4175 = vadd.f32 %v4174, 1.0
        %v4176 = vrcp.pop %v4175
        %v4177 = vmul.f32 %v4175, %v4176
        %v4178 = vsub.f32 1.0, %v4177
        %v4179 = vmul.f32 %v4176, %v4178
        %v4180 = vadd.f32 %v4176, %v4179
        %vm4181 = vweird.f32 %v4175
        %vm4182 = vweird.f32 %v4176
        %vm4183 = vmor %vm4181, %vm4182
        %v4184 = vsel %vm4183, %v4176, %v4180
        %v4185 = vand.u32 2147483647, %v4175
        %vm4186 = vcmp.eq.f32.partialorder %v4185, 8.507059e+37
        %v4187 = vand.u32 %v4175, 2147483648
        %v4188 = vor.u32 1.1754944e-38, %v4187
        %v4189 = vsel %vm4186, %v4188, %v4184
        %v4190 = vmul.f32 1.0, %v4189
        %4192 = vset.pattern.permute.xlu0 0
        %4193 = vperm.xlu0 %4192, %v658
        %v4194 = vpop.permute.xlu0 %4193
        %v4196 = vadd.f32 %v4190, %v4194
        %v4197 = vmul.f32 %v4196, 0.5
        %v4198 = vmul.f32 %v3949, 0.5
        %v4199 = vrot.slane %v4197, 4
        %v4200 = vmax.f32 %v4197, %v4199
        %v4201 = vrot.slane %v4200, 2
        %v4202 = vmax.f32 %v4200, %v4201
        %v4203 = vrot.slane %v4202, 1
        %v4204 = vmax.f32 %v4202, %v4203
        %v4205 = vmax.f32 %v4204, %v4198
        %v4206 = vperm.slane %v4205, 0
        %v4207 = vsub.f32 %v4197, %v4206
        %v4208 = vmul.f32 %v4207, 1.442695
        %v4209 = vpow.pop %v4208
        %v4210 = vsub.f32 %v4198, %v4205
        %v4211 = vmul.f32 %v4210, 1.442695
        %v4212 = vpow.pop %v4211
        %v4213 = vrot.slane %v4209, 4
        %v4214 = vadd.f32 %v4209, %v4213
        %v4215 = vrot.slane %v4214, 2
        %v4216 = vadd.f32 %v4214, %v4215
        %v4217 = vrot.slane %v4216, 1
        %v4218 = vadd.f32 %v4216, %v4217
        %v4219 = vadd.f32 %v4218, %v4212
        %v4220 = vrcp.pop %v4219
        %v4221 = vperm.slane %v4220, 0
        %v4222 = vmul.f32 %v4209, %v4221
        %v4223 = vmul.f32 %v4212, %v4220
        %v4224 = vmul.f32 %v4222, %v3642
        %v4225 = vrot.slane %v4224, 4
        %v4226 = vadd.f32 %v4224, %v4225
        %v4227 = vrot.slane %v4226, 2
        %v4228 = vadd.f32 %v4226, %v4227
        %v4229 = vrot.slane %v4228, 1
        %v4230 = vadd.f32 %v4228, %v4229
        %v4231 = vmul.f32 %v4223, %v1279
        %v4232 = vadd.f32 %v4230, %v4231
        %v4233 = vtanh.pop %v4232
        %v4234 = vmul.f32 %v3990, %v4233
        %4235 = vst [vmem:[%s634] sm:$0x1] %v4234
        %4236 = vst [vmem:[%s640] sm:$0x1] %v4232
        %4237 = vst [vmem:[#allocation2] sm:$0x1] %v4234
        %4238 = vst [vmem:[#allocation3] sm:$0x1] %v4232
        %s4239 = sand.u32 %s301, 1
        %s4240 = scalar_lea.sflag [#allocation8], %s4239
        %s4241 = sand.u32 %s301, 1
        %s4242 = smul.addr %s4241, 8
        %s4243 = scalar_lea.vmem [#allocation17], %s4242
        %s4244 = sand.u32 %s40, 1
        %s4245 = scalar_lea.sflag [#allocation19], %s4244
        %s4246 = sand.u32 %s327, 1
        %s4247 = smul.addr %s4246, 8
        %s4248 = scalar_lea.vmem [#allocation18], %s4247
        %s4249 = sand.u32 %s40, 1
        %s4250 = scalar_lea.sflag [#allocation19], %s4249
        %s4251 = sand.u32 %s355, 1
        %s4252 = scalar_lea.vmem [#allocation20], %s4251
        %s4253 = sand.u32 %s40, 1
        %s4254 = scalar_lea.sflag [#allocation22], %s4253
        %s4255 = sand.u32 %s383, 1
        %s4256 = scalar_lea.vmem [#allocation21], %s4255
        %s4257 = sand.u32 %s40, 1
        %s4258 = scalar_lea.sflag [#allocation22], %s4257
        %s4259 = sand.u32 %s411, 1
        %s4260 = smul.addr %s4259, 8
        %s4261 = scalar_lea.vmem [#allocation23], %s4260
        // Predicated region
        $region93: #{tpu_custom_call.1} parent=63 // pred_check
          %p4262 = pneg %p311
        $region94: #{tpu_custom_call.1} parent=63 // pred_check_branch
          %4264 = sbr.rel (%p4262) target = $region96
        $region95: #{tpu_custom_call.1} parent=63 // pred_region
          %4266 = vsyncadd %s4240, 0
          %s4267 = smul.addr %s44, 8
          %s4268 = scalar_lea.hbm %s11, %s4267
          %s4270 = sshll.u32 %s4243, 4
          %s4271 = int_to_ptr.vmem [resolvable:$true] %s4270
          %s4272 = sshll.u32 %s4268, 4
          %s4273 = int_to_ptr.hbm [resolvable:$true] %s4272
          %4275 = dma.vmem_to_hbm [thread:$0]  %s4271, 128, %s4273, %s4240
        $region96: #{tpu_custom_call.1} parent=63 // pred_fallthru
          _
        // Predicated region
        $region97: #{tpu_custom_call.1} parent=63 // pred_check
          %p4276 = pneg %p337
        $region98: #{tpu_custom_call.1} parent=63 // pred_check_branch
          %4278 = sbr.rel (%p4276) target = $region100
        $region99: #{tpu_custom_call.1} parent=63 // pred_region
          %4280 = vsyncadd %s4245, 0
          %s4281 = smul.addr %s44, 8
          %s4282 = scalar_lea.hbm %s12, %s4281
          %s4284 = sshll.u32 %s4248, 4
          %s4285 = int_to_ptr.vmem [resolvable:$true] %s4284
          %s4286 = sshll.u32 %s4282, 4
          %s4287 = int_to_ptr.hbm [resolvable:$true] %s4286
          %4289 = dma.vmem_to_hbm [thread:$0]  %s4285, 128, %s4287, %s4245
        $region100: #{tpu_custom_call.1} parent=63 // pred_fallthru
          _
        // Predicated region
        $region101: #{tpu_custom_call.1} parent=63 // pred_check
          %p4290 = pneg %p365
        $region102: #{tpu_custom_call.1} parent=63 // pred_check_branch
          %4292 = sbr.rel (%p4290) target = $region104
        $region103: #{tpu_custom_call.1} parent=63 // pred_region
          %4294 = vsyncadd %s4250, 0
          %s4295 = smul.addr %s45, 2
          %s4296 = sadd.s32 %s44, %s4295
          %s4297 = scalar_lea.hbm %s13, %s4296
          %s4299 = sshll.u32 %s4252, 4
          %s4300 = int_to_ptr.vmem [resolvable:$true] %s4299
          %s4301 = sshll.u32 %s4297, 4
          %s4302 = int_to_ptr.hbm [resolvable:$true] %s4301
          %4304 = dma.vmem_to_hbm [thread:$0]  %s4300, 16, %s4302, %s4250
        $region104: #{tpu_custom_call.1} parent=63 // pred_fallthru
          _
        // Predicated region
        $region105: #{tpu_custom_call.1} parent=63 // pred_check
          %p4305 = pneg %p393
        $region106: #{tpu_custom_call.1} parent=63 // pred_check_branch
          %4307 = sbr.rel (%p4305) target = $region108
        $region107: #{tpu_custom_call.1} parent=63 // pred_region
          %4309 = vsyncadd %s4254, 0
          %s4310 = smul.addr %s45, 2
          %s4311 = sadd.s32 %s44, %s4310
          %s4312 = scalar_lea.hbm %s14, %s4311
          %s4314 = sshll.u32 %s4256, 4
          %s4315 = int_to_ptr.vmem [resolvable:$true] %s4314
          %s4316 = sshll.u32 %s4312, 4
          %s4317 = int_to_ptr.hbm [resolvable:$true] %s4316
          %4319 = dma.vmem_to_hbm [thread:$0]  %s4315, 16, %s4317, %s4254
        $region108: #{tpu_custom_call.1} parent=63 // pred_fallthru
          _
        // Predicated region
        $region109: #{tpu_custom_call.1} parent=63 // pred_check
          %p4320 = pneg %p421
        $region110: #{tpu_custom_call.1} parent=63 // pred_check_branch
          %4322 = sbr.rel (%p4320) target = $region112
        $region111: #{tpu_custom_call.1} parent=63 // pred_region
          %4324 = vsyncadd %s4258, 0
          %s4325 = smul.addr %s45, 2
          %s4326 = sadd.s32 %s44, %s4325
          %s4327 = smul.addr %s4326, 8
          %s4328 = scalar_lea.hbm %s15, %s4327
          %s4330 = sshll.u32 %s4261, 4
          %s4331 = int_to_ptr.vmem [resolvable:$true] %s4330
          %s4332 = sshll.u32 %s4328, 4
          %s4333 = int_to_ptr.hbm [resolvable:$true] %s4332
          %4335 = dma.vmem_to_hbm [thread:$0]  %s4331, 128, %s4333, %s4258
        $region112: #{tpu_custom_call.1} parent=63 // pred_fallthru
          _
      $region64: #{tpu_custom_call.1} parent=5 // pred_fallthru
        _
      %p4336 = scmp.le.s32.totalorder 2, %s35
      // Predicated region
      $region113: #{tpu_custom_call.1} parent=5 // pred_check
        %p4337 = pneg %p4336
      $region114: #{tpu_custom_call.1} parent=5 // pred_check_branch
        %4339 = sbr.rel (%p4337) target = $region116
      $region115: #{tpu_custom_call.1} parent=5 // pred_region
        %s4340 = ssub.s32 %s35, 2
        // Predicated region
        $region117: #{tpu_custom_call.1} parent=115 // pred_check
          %p4341 = pneg %p317
        $region118: #{tpu_custom_call.1} parent=115 // pred_check_branch
          %4343 = sbr.rel (%p4341) target = $region120
        $region119: #{tpu_custom_call.1} parent=115 // pred_region
          %s4344 = sand.u32 %s302, 1
          %s4345 = scalar_lea.sflag [#allocation8], %s4344
          %s4346 = sand.u32 %s302, 1
          %s4347 = smul.addr %s4346, 8
          %s4348 = scalar_lea.vmem [#allocation17], %s4347
          %4350 = dma.done %s4345, 128
        $region120: #{tpu_custom_call.1} parent=115 // pred_fallthru
          _
        // Predicated region
        $region121: #{tpu_custom_call.1} parent=115 // pred_check
          %p4351 = pneg %p343
        $region122: #{tpu_custom_call.1} parent=115 // pred_check_branch
          %4353 = sbr.rel (%p4351) target = $region124
        $region123: #{tpu_custom_call.1} parent=115 // pred_region
          %s4354 = sand.u32 %s41, 1
          %s4355 = scalar_lea.sflag [#allocation19], %s4354
          %s4356 = sand.u32 %s328, 1
          %s4357 = smul.addr %s4356, 8
          %s4358 = scalar_lea.vmem [#allocation18], %s4357
          %4360 = dma.done %s4355, 128
        $region124: #{tpu_custom_call.1} parent=115 // pred_fallthru
          _
        // Predicated region
        $region125: #{tpu_custom_call.1} parent=115 // pred_check
          %p4361 = pneg %p371
        $region126: #{tpu_custom_call.1} parent=115 // pred_check_branch
          %4363 = sbr.rel (%p4361) target = $region128
        $region127: #{tpu_custom_call.1} parent=115 // pred_region
          %s4364 = sand.u32 %s41, 1
          %s4365 = scalar_lea.sflag [#allocation19], %s4364
          %s4366 = sand.u32 %s356, 1
          %s4367 = scalar_lea.vmem [#allocation20], %s4366
          %4369 = dma.done %s4365, 16
        $region128: #{tpu_custom_call.1} parent=115 // pred_fallthru
          _
        // Predicated region
        $region129: #{tpu_custom_call.1} parent=115 // pred_check
          %p4370 = pneg %p399
        $region130: #{tpu_custom_call.1} parent=115 // pred_check_branch
          %4372 = sbr.rel (%p4370) target = $region132
        $region131: #{tpu_custom_call.1} parent=115 // pred_region
          %s4373 = sand.u32 %s41, 1
          %s4374 = scalar_lea.sflag [#allocation22], %s4373
          %s4375 = sand.u32 %s384, 1
          %s4376 = scalar_lea.vmem [#allocation21], %s4375
          %4378 = dma.done %s4374, 16
        $region132: #{tpu_custom_call.1} parent=115 // pred_fallthru
          _
        // Predicated region
        $region133: #{tpu_custom_call.1} parent=115 // pred_check
          %p4379 = pneg %p427
        $region134: #{tpu_custom_call.1} parent=115 // pred_check_branch
          %4381 = sbr.rel (%p4379) target = $region136
        $region135: #{tpu_custom_call.1} parent=115 // pred_region
          %s4382 = sand.u32 %s41, 1
          %s4383 = scalar_lea.sflag [#allocation22], %s4382
          %s4384 = sand.u32 %s412, 1
          %s4385 = smul.addr %s4384, 8
          %s4386 = scalar_lea.vmem [#allocation23], %s4385
          %4388 = dma.done %s4383, 128
        $region136: #{tpu_custom_call.1} parent=115 // pred_fallthru
          _
      $region116: #{tpu_custom_call.1} parent=5 // pred_fallthru
        _
    $region6: #{tpu_custom_call.1} parent=1 // loop_footer
      %s39 = sadd.s32 1, %s35
    $region7: #{tpu_custom_call.1} parent=1 // loop_footer_branch
      %34 = sbr.rel target = $region3
    $region8: #{tpu_custom_call.1} parent=1 // loop_exit
      _
    %4389 = vsyncpa [#allocation7], 1
    %s4390 = scalar_lea.sflag [#allocation7], 1
    %4391 = vsyncpa %s4390, 1
    %4392 = vsyncpa [#allocation10], 1
    %4393 = vsyncpa [#allocation13], 1
    %4394 = vsyncpa [#allocation16], 1
    %4395 = vsyncpa [#allocation8], 1
    %s4396 = scalar_lea.sflag [#allocation8], 1
    %4397 = vsyncpa %s4396, 1
    %4398 = vsyncpa [#allocation19], 1
    %s4399 = scalar_lea.sflag [#allocation19], 1
    %4400 = vsyncpa %s4399, 1
    %4401 = vsyncpa [#allocation22], 1
    %s4402 = scalar_lea.sflag [#allocation22], 1
    %4403 = vsyncpa %s4402, 1

</llo_original>
